<compile_context>
chip_gen: v6e
topology: v6e:2x2x1
jax: 0.10.0
libtpu: 0.0.40
codegen_flags: <defaults>
</compile_context>

<pallas_src>
import jax
import jax.numpy as jnp
from jax.experimental import pallas as pl
from jax.experimental.pallas import tpu as pltpu


def _basic_block_kernel(xp_ref, w1_ref, w2_ref, b1_ref, b2_ref, o_ref,
                        mid_ref, patch_ref):
    # xp_ref   : (BN, H+2, W+2, Cp) spatially pre-padded, channel-padded input
    # w*_ref   : (9*Cp, Cp)   3x3 conv weights (tap-major), BN scale folded in
    # b*_ref   : (1, Cp)      folded BN bias
    # o_ref    : (BN, H, W, Cp)
    # mid_ref  : VMEM (BN, H+2, W+2, Cp) f32 scratch, padded conv1 activation
    # patch_ref: VMEM (BN*H*W, 9*Cp) im2col scratch (compute dtype)
    BN, Hp, Wp, Cp = xp_ref.shape
    H, W = Hp - 2, Wp - 2
    M = BN * H * W

    def im2col(src_ref):
        # Write each of the 9 taps into its 128-aligned column block of the
        # patch scratch; one big matmul per conv instead of 9 tiny ones.
        for kh in range(3):
            for kw in range(3):
                t = kh * 3 + kw
                patch_ref[:, t * Cp:(t + 1) * Cp] = (
                    src_ref[:, kh:kh + H, kw:kw + W, :]
                    .reshape(M, Cp).astype(patch_ref.dtype))

    # ---- conv1 (BN1 scale folded into weights) + bias + ReLU ----
    im2col(xp_ref)
    h1 = jnp.dot(patch_ref[...], w1_ref[...],
                 preferred_element_type=jnp.float32)
    h1 = jnp.maximum(h1 + b1_ref[...], 0.0)

    # ---- re-pad the intermediate into the persistent VMEM scratch ----
    # (zeroed every step so the kernel is safe under "parallel" megacore
    #  sharding; the zero-fill is tiny next to the two matmuls)
    mid_ref[...] = jnp.zeros_like(mid_ref)
    mid_ref[:, 1:1 + H, 1:1 + W, :] = h1.reshape(BN, H, W, Cp)

    # ---- conv2 (BN2 scale folded) + bias ----
    im2col(mid_ref)
    h2 = jnp.dot(patch_ref[...], w2_ref[...],
                 preferred_element_type=jnp.float32)
    h2 = h2 + b2_ref[...]

    # ---- identity residual (downsample is None) + last ReLU ----
    res = xp_ref[:, 1:1 + H, 1:1 + W, :].reshape(M, Cp)
    out = jnp.maximum(h2 + res, 0.0)
    o_ref[...] = out.reshape(BN, H, W, Cp).astype(o_ref.dtype)


def basic_block_forward(x_nchw, w1, w2, bn1, bn2, *, eps=1e-5,
                        batch_block=1, compute_dtype=jnp.float32):
    """x_nchw: (N, C, H, W) f32; w*: (C, C, 3, 3) f32; bn*: (gamma, beta, mean, var)."""
    N, C, H, W = x_nchw.shape
    assert w1.shape == (C, C, 3, 3) and w2.shape == (C, C, 3, 3), (
        "kernel implements the identity-residual config (Cin == Cout, stride=1)")

    Cp = ((C + 127) // 128) * 128            # lane-dense channel padding
    BN = max(1, min(batch_block, N))         # batch elements per grid step
    Npad = ((N + BN - 1) // BN) * BN

    # NCHW -> NHWC; pad channels to Cp and spatially by 1 once in HBM so the
    # kernel never concatenates for padding.
    x = jnp.transpose(x_nchw, (0, 2, 3, 1)).astype(jnp.float32)
    xp = jnp.pad(x, ((0, Npad - N), (1, 1), (1, 1), (0, Cp - C)))

    def fold(w, bn):
        gamma, beta, mean, var = bn
        scale = gamma / jnp.sqrt(var + eps)
        bias = beta - mean * scale
        w = w * scale[:, None, None, None]              # fold BN scale (per Cout)
        w = jnp.transpose(w, (2, 3, 1, 0))              # OIHW -> (kh, kw, Cin, Cout)
        w = jnp.pad(w, ((0, 0), (0, 0), (0, Cp - C), (0, Cp - C)))
        w = w.reshape(9 * Cp, Cp).astype(compute_dtype)  # tap-major (9*Cp, Cp)
        b = jnp.pad(bias, (0, Cp - C)).reshape(1, Cp).astype(jnp.float32)
        return w, b

    w1k, b1 = fold(w1, bn1)
    w2k, b2 = fold(w2, bn2)

    out = pl.pallas_call(
        _basic_block_kernel,
        out_shape=jax.ShapeDtypeStruct((Npad, H, W, Cp), jnp.float32),
        grid_spec=pltpu.PrefetchScalarGridSpec(
            num_scalar_prefetch=0,
            grid=(Npad // BN,),
            in_specs=[
                pl.BlockSpec((BN, H + 2, W + 2, Cp), lambda n: (n, 0, 0, 0)),
                pl.BlockSpec((9 * Cp, Cp), lambda n: (0, 0)),   # grid-invariant
                pl.BlockSpec((9 * Cp, Cp), lambda n: (0, 0)),   # grid-invariant
                pl.BlockSpec((1, Cp), lambda n: (0, 0)),
                pl.BlockSpec((1, Cp), lambda n: (0, 0)),
            ],
            out_specs=pl.BlockSpec((BN, H, W, Cp), lambda n: (n, 0, 0, 0)),
            scratch_shapes=[
                pltpu.VMEM((BN, H + 2, W + 2, Cp), jnp.float32),   # padded conv1 act
                pltpu.VMEM((BN * H * W, 9 * Cp), compute_dtype),   # im2col buffer
            ],
        ),
        compiler_params=pltpu.CompilerParams(
            dimension_semantics=("parallel",)),
    )(xp, w1k, w2k, b1, b2)

    # drop batch/channel padding, back to NCHW
    return jnp.transpose(out[:N, :, :, :C], (0, 3, 1, 2))


def basic_block_reference(x, w1, w2, bn1, bn2, eps=1e-5):
    """Pure-JAX NCHW reference matching the PyTorch forward (eval-mode BN)."""
    def conv(a, w):
        return jax.lax.conv_general_dilated(
            a, w, window_strides=(1, 1), padding=((1, 1), (1, 1)),
            dimension_numbers=("NCHW", "OIHW", "NCHW"))

    def bn(a, p):
        g, b, m, v = (t[None, :, None, None] for t in p)
        return (a - m) / jnp.sqrt(v + eps) * g + b

    out = jax.nn.relu(bn(conv(x, w1), bn1))
    out = bn(conv(out, w2), bn2)
    out = out + x
    return jax.nn.relu(out)


if __name__ == "__main__":
    key = jax.random.PRNGKey(0)
    N, C, H, W = 2, 8, 16, 16  # inplanes == planes (identity residual block)
    k = jax.random.split(key, 10)

    x = jax.random.normal(k[0], (N, C, H, W), dtype=jnp.float32)
    w1 = jax.random.normal(k[1], (C, C, 3, 3), dtype=jnp.float32) * 0.1
    w2 = jax.random.normal(k[2], (C, C, 3, 3), dtype=jnp.float32) * 0.1
    bn1 = (jax.random.uniform(k[3], (C,), minval=0.5, maxval=1.5),
           jax.random.normal(k[4], (C,)) * 0.1,
           jax.random.normal(k[5], (C,)) * 0.1,
           jax.random.uniform(k[6], (C,), minval=0.5, maxval=1.5))
    bn2 = (jax.random.uniform(k[7], (C,), minval=0.5, maxval=1.5),
           jax.random.normal(k[8], (C,)) * 0.1,
           jax.random.normal(k[9], (C,)) * 0.1,
           jax.random.uniform(k[3], (C,), minval=0.5, maxval=1.5))

    out = basic_block_forward(x, w1, w2, bn1, bn2)
    out = jax.block_until_ready(out)

    ref = basic_block_reference(x, w1, w2, bn1, bn2)
    assert out.shape == ref.shape == (N, C, H, W)
    assert jnp.allclose(out, ref, atol=2e-4, rtol=2e-4), (
        f"max abs err {jnp.max(jnp.abs(out - ref))}")

    print("KERNEL_OK")
</pallas_src>

<mosaic_0001>
module attributes {stable_mosaic.version = 11 : i64} {
  func.func @_basic_block_kernel(%arg0: i32, %arg1: memref<1x18x18x128xf32, #tpu.memory_space<vmem>>, %arg2: memref<1152x128xf32, #tpu.memory_space<vmem>>, %arg3: memref<1152x128xf32, #tpu.memory_space<vmem>>, %arg4: memref<1x128xf32, #tpu.memory_space<vmem>>, %arg5: memref<1x128xf32, #tpu.memory_space<vmem>>, %arg6: memref<1x16x16x128xf32, #tpu.memory_space<vmem>>, %arg7: memref<1x18x18x128xf32, #tpu.memory_space<vmem>>, %arg8: memref<256x1152xf32, #tpu.memory_space<vmem>>) attributes {dimension_semantics = [#tpu.dimension_semantics<parallel>], iteration_bounds = array<i64: 2>, scalar_prefetch = 0 : i64, scratch_operands = 2 : i64, tpu.core_type = #tpu.core_type<tc>, window_params = [{transform_indices = @transform_0, window_bounds = array<i64: 1, 18, 18, 128>}, {pipeline_mode = #tpu.pipeline_mode<synchronous>, transform_indices = @transform_1, window_bounds = array<i64: 1152, 128>}, {pipeline_mode = #tpu.pipeline_mode<synchronous>, transform_indices = @transform_2, window_bounds = array<i64: 1152, 128>}, {pipeline_mode = #tpu.pipeline_mode<synchronous>, transform_indices = @transform_3, window_bounds = array<i64: 1, 128>}, {pipeline_mode = #tpu.pipeline_mode<synchronous>, transform_indices = @transform_4, window_bounds = array<i64: 1, 128>}, {transform_indices = @transform_5, window_bounds = array<i64: 1, 16, 16, 128>}]} {
    %c0 = arith.constant 0 : index
    %c0_0 = arith.constant 0 : index
    %c0_1 = arith.constant 0 : index
    %c0_2 = arith.constant 0 : index
    %0 = vector.load %arg1[%c0, %c0_0, %c0_1, %c0_2] : memref<1x18x18x128xf32, #tpu.memory_space<vmem>>, vector<1x16x16x128xf32>
    %1 = vector.shape_cast %0 : vector<1x16x16x128xf32> to vector<256x128xf32>
    %c0_3 = arith.constant 0 : index
    %c0_4 = arith.constant 0 : index
    %2 = vector.load %arg8[%c0_3, %c0_4] : memref<256x1152xf32, #tpu.memory_space<vmem>>, vector<256x128xf32>
    tpu.vector_store %arg8[%c0_3, %c0_4], %1 {strides = array<i32>} : memref<256x1152xf32, #tpu.memory_space<vmem>>, vector<256x128xf32>,
    %c0_5 = arith.constant 0 : index
    %c0_6 = arith.constant 0 : index
    %c1 = arith.constant 1 : index
    %c0_7 = arith.constant 0 : index
    %3 = vector.load %arg1[%c0_5, %c0_6, %c1, %c0_7] : memref<1x18x18x128xf32, #tpu.memory_space<vmem>>, vector<1x16x16x128xf32>
    %4 = vector.shape_cast %3 : vector<1x16x16x128xf32> to vector<256x128xf32>
    %c0_8 = arith.constant 0 : index
    %c128 = arith.constant 128 : index
    %5 = vector.load %arg8[%c0_8, %c128] : memref<256x1152xf32, #tpu.memory_space<vmem>>, vector<256x128xf32>
    tpu.vector_store %arg8[%c0_8, %c128], %4 {strides = array<i32>} : memref<256x1152xf32, #tpu.memory_space<vmem>>, vector<256x128xf32>,
    %c0_9 = arith.constant 0 : index
    %c0_10 = arith.constant 0 : index
    %c2 = arith.constant 2 : index
    %c0_11 = arith.constant 0 : index
    %6 = vector.load %arg1[%c0_9, %c0_10, %c2, %c0_11] : memref<1x18x18x128xf32, #tpu.memory_space<vmem>>, vector<1x16x16x128xf32>
    %7 = vector.shape_cast %6 : vector<1x16x16x128xf32> to vector<256x128xf32>
    %c0_12 = arith.constant 0 : index
    %c256 = arith.constant 256 : index
    %8 = vector.load %arg8[%c0_12, %c256] : memref<256x1152xf32, #tpu.memory_space<vmem>>, vector<256x128xf32>
    tpu.vector_store %arg8[%c0_12, %c256], %7 {strides = array<i32>} : memref<256x1152xf32, #tpu.memory_space<vmem>>, vector<256x128xf32>,
    %c0_13 = arith.constant 0 : index
    %c1_14 = arith.constant 1 : index
    %c0_15 = arith.constant 0 : index
    %c0_16 = arith.constant 0 : index
    %9 = vector.load %arg1[%c0_13, %c1_14, %c0_15, %c0_16] : memref<1x18x18x128xf32, #tpu.memory_space<vmem>>, vector<1x16x16x128xf32>
    %10 = vector.shape_cast %9 : vector<1x16x16x128xf32> to vector<256x128xf32>
    %c0_17 = arith.constant 0 : index
    %c384 = arith.constant 384 : index
    %11 = vector.load %arg8[%c0_17, %c384] : memref<256x1152xf32, #tpu.memory_space<vmem>>, vector<256x128xf32>
    tpu.vector_store %arg8[%c0_17, %c384], %10 {strides = array<i32>} : memref<256x1152xf32, #tpu.memory_space<vmem>>, vector<256x128xf32>,
    %c0_18 = arith.constant 0 : index
    %c1_19 = arith.constant 1 : index
    %c1_20 = arith.constant 1 : index
    %c0_21 = arith.constant 0 : index
    %12 = vector.load %arg1[%c0_18, %c1_19, %c1_20, %c0_21] : memref<1x18x18x128xf32, #tpu.memory_space<vmem>>, vector<1x16x16x128xf32>
    %13 = vector.shape_cast %12 : vector<1x16x16x128xf32> to vector<256x128xf32>
    %c0_22 = arith.constant 0 : index
    %c512 = arith.constant 512 : index
    %14 = vector.load %arg8[%c0_22, %c512] : memref<256x1152xf32, #tpu.memory_space<vmem>>, vector<256x128xf32>
    tpu.vector_store %arg8[%c0_22, %c512], %13 {strides = array<i32>} : memref<256x1152xf32, #tpu.memory_space<vmem>>, vector<256x128xf32>,
    %c0_23 = arith.constant 0 : index
    %c1_24 = arith.constant 1 : index
    %c2_25 = arith.constant 2 : index
    %c0_26 = arith.constant 0 : index
    %15 = vector.load %arg1[%c0_23, %c1_24, %c2_25, %c0_26] : memref<1x18x18x128xf32, #tpu.memory_space<vmem>>, vector<1x16x16x128xf32>
    %16 = vector.shape_cast %15 : vector<1x16x16x128xf32> to vector<256x128xf32>
    %c0_27 = arith.constant 0 : index
    %c640 = arith.constant 640 : index
    %17 = vector.load %arg8[%c0_27, %c640] : memref<256x1152xf32, #tpu.memory_space<vmem>>, vector<256x128xf32>
    tpu.vector_store %arg8[%c0_27, %c640], %16 {strides = array<i32>} : memref<256x1152xf32, #tpu.memory_space<vmem>>, vector<256x128xf32>,
    %c0_28 = arith.constant 0 : index
    %c2_29 = arith.constant 2 : index
    %c0_30 = arith.constant 0 : index
    %c0_31 = arith.constant 0 : index
    %18 = vector.load %arg1[%c0_28, %c2_29, %c0_30, %c0_31] : memref<1x18x18x128xf32, #tpu.memory_space<vmem>>, vector<1x16x16x128xf32>
    %19 = vector.shape_cast %18 : vector<1x16x16x128xf32> to vector<256x128xf32>
    %c0_32 = arith.constant 0 : index
    %c768 = arith.constant 768 : index
    %20 = vector.load %arg8[%c0_32, %c768] : memref<256x1152xf32, #tpu.memory_space<vmem>>, vector<256x128xf32>
    tpu.vector_store %arg8[%c0_32, %c768], %19 {strides = array<i32>} : memref<256x1152xf32, #tpu.memory_space<vmem>>, vector<256x128xf32>,
    %c0_33 = arith.constant 0 : index
    %c2_34 = arith.constant 2 : index
    %c1_35 = arith.constant 1 : index
    %c0_36 = arith.constant 0 : index
    %21 = vector.load %arg1[%c0_33, %c2_34, %c1_35, %c0_36] : memref<1x18x18x128xf32, #tpu.memory_space<vmem>>, vector<1x16x16x128xf32>
    %22 = vector.shape_cast %21 : vector<1x16x16x128xf32> to vector<256x128xf32>
    %c0_37 = arith.constant 0 : index
    %c896 = arith.constant 896 : index
    %23 = vector.load %arg8[%c0_37, %c896] : memref<256x1152xf32, #tpu.memory_space<vmem>>, vector<256x128xf32>
    tpu.vector_store %arg8[%c0_37, %c896], %22 {strides = array<i32>} : memref<256x1152xf32, #tpu.memory_space<vmem>>, vector<256x128xf32>,
    %c0_38 = arith.constant 0 : index
    %c2_39 = arith.constant 2 : index
    %c2_40 = arith.constant 2 : index
    %c0_41 = arith.constant 0 : index
    %24 = vector.load %arg1[%c0_38, %c2_39, %c2_40, %c0_41] : memref<1x18x18x128xf32, #tpu.memory_space<vmem>>, vector<1x16x16x128xf32>
    %25 = vector.shape_cast %24 : vector<1x16x16x128xf32> to vector<256x128xf32>
    %c0_42 = arith.constant 0 : index
    %c1024 = arith.constant 1024 : index
    %26 = vector.load %arg8[%c0_42, %c1024] : memref<256x1152xf32, #tpu.memory_space<vmem>>, vector<256x128xf32>
    tpu.vector_store %arg8[%c0_42, %c1024], %25 {strides = array<i32>} : memref<256x1152xf32, #tpu.memory_space<vmem>>, vector<256x128xf32>,
    %c0_43 = arith.constant 0 : index
    %c0_44 = arith.constant 0 : index
    %27 = vector.load %arg8[%c0_43, %c0_44] : memref<256x1152xf32, #tpu.memory_space<vmem>>, vector<256x1152xf32>
    %c0_45 = arith.constant 0 : index
    %c0_46 = arith.constant 0 : index
    %28 = vector.load %arg2[%c0_45, %c0_46] : memref<1152x128xf32, #tpu.memory_space<vmem>>, vector<1152x128xf32>
    %cst = arith.constant dense<0.000000e+00> : vector<256x128xf32>
    %29 = tpu.matmul %27, %28, %cst {dimension_numbers = #tpu.dot_dimension_numbers<[1], [0], [0], [1], [0, 0, 1, 1], [], []>} : vector<256x1152xf32>, vector<1152x128xf32>, vector<256x128xf32> -> vector<256x128xf32>
    %c0_47 = arith.constant 0 : index
    %c0_48 = arith.constant 0 : index
    %30 = vector.load %arg4[%c0_47, %c0_48] : memref<1x128xf32, #tpu.memory_space<vmem>>, vector<1x128xf32>
    %31 = vector.broadcast %30 : vector<1x128xf32> to vector<256x128xf32>
    %32 = arith.addf %29, %31 : vector<256x128xf32>
    %cst_49 = arith.constant 0.000000e+00 : f32
    %33 = vector.broadcast %cst_49 : f32 to vector<256x128xf32>
    %34 = arith.maximumf %32, %33 : vector<256x128xf32>
    %cst_50 = arith.constant 0.000000e+00 : f32
    %35 = vector.broadcast %cst_50 : f32 to vector<1x18x18x128xf32>
    %c0_51 = arith.constant 0 : index
    %c0_52 = arith.constant 0 : index
    %c0_53 = arith.constant 0 : index
    %c0_54 = arith.constant 0 : index
    %36 = vector.load %arg7[%c0_51, %c0_52, %c0_53, %c0_54] : memref<1x18x18x128xf32, #tpu.memory_space<vmem>>, vector<1x18x18x128xf32>
    tpu.vector_store %arg7[%c0_51, %c0_52, %c0_53, %c0_54], %35 {strides = array<i32>} : memref<1x18x18x128xf32, #tpu.memory_space<vmem>>, vector<1x18x18x128xf32>,
    %37 = vector.shape_cast %34 : vector<256x128xf32> to vector<1x16x16x128xf32>
    %c0_55 = arith.constant 0 : index
    %c1_56 = arith.constant 1 : index
    %c1_57 = arith.constant 1 : index
    %c0_58 = arith.constant 0 : index
    %38 = vector.load %arg7[%c0_55, %c1_56, %c1_57, %c0_58] : memref<1x18x18x128xf32, #tpu.memory_space<vmem>>, vector<1x16x16x128xf32>
    tpu.vector_store %arg7[%c0_55, %c1_56, %c1_57, %c0_58], %37 {strides = array<i32>} : memref<1x18x18x128xf32, #tpu.memory_space<vmem>>, vector<1x16x16x128xf32>,
    %c0_59 = arith.constant 0 : index
    %c0_60 = arith.constant 0 : index
    %c0_61 = arith.constant 0 : index
    %c0_62 = arith.constant 0 : index
    %39 = vector.load %arg7[%c0_59, %c0_60, %c0_61, %c0_62] : memref<1x18x18x128xf32, #tpu.memory_space<vmem>>, vector<1x16x16x128xf32>
    %40 = vector.shape_cast %39 : vector<1x16x16x128xf32> to vector<256x128xf32>
    %c0_63 = arith.constant 0 : index
    %c0_64 = arith.constant 0 : index
    %41 = vector.load %arg8[%c0_63, %c0_64] : memref<256x1152xf32, #tpu.memory_space<vmem>>, vector<256x128xf32>
    tpu.vector_store %arg8[%c0_63, %c0_64], %40 {strides = array<i32>} : memref<256x1152xf32, #tpu.memory_space<vmem>>, vector<256x128xf32>,
    %c0_65 = arith.constant 0 : index
    %c0_66 = arith.constant 0 : index
    %c1_67 = arith.constant 1 : index
    %c0_68 = arith.constant 0 : index
    %42 = vector.load %arg7[%c0_65, %c0_66, %c1_67, %c0_68] : memref<1x18x18x128xf32, #tpu.memory_space<vmem>>, vector<1x16x16x128xf32>
    %43 = vector.shape_cast %42 : vector<1x16x16x128xf32> to vector<256x128xf32>
    %c0_69 = arith.constant 0 : index
    %c128_70 = arith.constant 128 : index
    %44 = vector.load %arg8[%c0_69, %c128_70] : memref<256x1152xf32, #tpu.memory_space<vmem>>, vector<256x128xf32>
    tpu.vector_store %arg8[%c0_69, %c128_70], %43 {strides = array<i32>} : memref<256x1152xf32, #tpu.memory_space<vmem>>, vector<256x128xf32>,
    %c0_71 = arith.constant 0 : index
    %c0_72 = arith.constant 0 : index
    %c2_73 = arith.constant 2 : index
    %c0_74 = arith.constant 0 : index
    %45 = vector.load %arg7[%c0_71, %c0_72, %c2_73, %c0_74] : memref<1x18x18x128xf32, #tpu.memory_space<vmem>>, vector<1x16x16x128xf32>
    %46 = vector.shape_cast %45 : vector<1x16x16x128xf32> to vector<256x128xf32>
    %c0_75 = arith.constant 0 : index
    %c256_76 = arith.constant 256 : index
    %47 = vector.load %arg8[%c0_75, %c256_76] : memref<256x1152xf32, #tpu.memory_space<vmem>>, vector<256x128xf32>
    tpu.vector_store %arg8[%c0_75, %c256_76], %46 {strides = array<i32>} : memref<256x1152xf32, #tpu.memory_space<vmem>>, vector<256x128xf32>,
    %c0_77 = arith.constant 0 : index
    %c1_78 = arith.constant 1 : index
    %c0_79 = arith.constant 0 : index
    %c0_80 = arith.constant 0 : index
    %48 = vector.load %arg7[%c0_77, %c1_78, %c0_79, %c0_80] : memref<1x18x18x128xf32, #tpu.memory_space<vmem>>, vector<1x16x16x128xf32>
    %49 = vector.shape_cast %48 : vector<1x16x16x128xf32> to vector<256x128xf32>
    %c0_81 = arith.constant 0 : index
    %c384_82 = arith.constant 384 : index
    %50 = vector.load %arg8[%c0_81, %c384_82] : memref<256x1152xf32, #tpu.memory_space<vmem>>, vector<256x128xf32>
    tpu.vector_store %arg8[%c0_81, %c384_82], %49 {strides = array<i32>} : memref<256x1152xf32, #tpu.memory_space<vmem>>, vector<256x128xf32>,
    %c0_83 = arith.constant 0 : index
    %c1_84 = arith.constant 1 : index
    %c1_85 = arith.constant 1 : index
    %c0_86 = arith.constant 0 : index
    %51 = vector.load %arg7[%c0_83, %c1_84, %c1_85, %c0_86] : memref<1x18x18x128xf32, #tpu.memory_space<vmem>>, vector<1x16x16x128xf32>
    %52 = vector.shape_cast %51 : vector<1x16x16x128xf32> to vector<256x128xf32>
    %c0_87 = arith.constant 0 : index
    %c512_88 = arith.constant 512 : index
    %53 = vector.load %arg8[%c0_87, %c512_88] : memref<256x1152xf32, #tpu.memory_space<vmem>>, vector<256x128xf32>
    tpu.vector_store %arg8[%c0_87, %c512_88], %52 {strides = array<i32>} : memref<256x1152xf32, #tpu.memory_space<vmem>>, vector<256x128xf32>,
    %c0_89 = arith.constant 0 : index
    %c1_90 = arith.constant 1 : index
    %c2_91 = arith.constant 2 : index
    %c0_92 = arith.constant 0 : index
    %54 = vector.load %arg7[%c0_89, %c1_90, %c2_91, %c0_92] : memref<1x18x18x128xf32, #tpu.memory_space<vmem>>, vector<1x16x16x128xf32>
    %55 = vector.shape_cast %54 : vector<1x16x16x128xf32> to vector<256x128xf32>
    %c0_93 = arith.constant 0 : index
    %c640_94 = arith.constant 640 : index
    %56 = vector.load %arg8[%c0_93, %c640_94] : memref<256x1152xf32, #tpu.memory_space<vmem>>, vector<256x128xf32>
    tpu.vector_store %arg8[%c0_93, %c640_94], %55 {strides = array<i32>} : memref<256x1152xf32, #tpu.memory_space<vmem>>, vector<256x128xf32>,
    %c0_95 = arith.constant 0 : index
    %c2_96 = arith.constant 2 : index
    %c0_97 = arith.constant 0 : index
    %c0_98 = arith.constant 0 : index
    %57 = vector.load %arg7[%c0_95, %c2_96, %c0_97, %c0_98] : memref<1x18x18x128xf32, #tpu.memory_space<vmem>>, vector<1x16x16x128xf32>
    %58 = vector.shape_cast %57 : vector<1x16x16x128xf32> to vector<256x128xf32>
    %c0_99 = arith.constant 0 : index
    %c768_100 = arith.constant 768 : index
    %59 = vector.load %arg8[%c0_99, %c768_100] : memref<256x1152xf32, #tpu.memory_space<vmem>>, vector<256x128xf32>
    tpu.vector_store %arg8[%c0_99, %c768_100], %58 {strides = array<i32>} : memref<256x1152xf32, #tpu.memory_space<vmem>>, vector<256x128xf32>,
    %c0_101 = arith.constant 0 : index
    %c2_102 = arith.constant 2 : index
    %c1_103 = arith.constant 1 : index
    %c0_104 = arith.constant 0 : index
    %60 = vector.load %arg7[%c0_101, %c2_102, %c1_103, %c0_104] : memref<1x18x18x128xf32, #tpu.memory_space<vmem>>, vector<1x16x16x128xf32>
    %61 = vector.shape_cast %60 : vector<1x16x16x128xf32> to vector<256x128xf32>
    %c0_105 = arith.constant 0 : index
    %c896_106 = arith.constant 896 : index
    %62 = vector.load %arg8[%c0_105, %c896_106] : memref<256x1152xf32, #tpu.memory_space<vmem>>, vector<256x128xf32>
    tpu.vector_store %arg8[%c0_105, %c896_106], %61 {strides = array<i32>} : memref<256x1152xf32, #tpu.memory_space<vmem>>, vector<256x128xf32>,
    %c0_107 = arith.constant 0 : index
    %c2_108 = arith.constant 2 : index
    %c2_109 = arith.constant 2 : index
    %c0_110 = arith.constant 0 : index
    %63 = vector.load %arg7[%c0_107, %c2_108, %c2_109, %c0_110] : memref<1x18x18x128xf32, #tpu.memory_space<vmem>>, vector<1x16x16x128xf32>
    %64 = vector.shape_cast %63 : vector<1x16x16x128xf32> to vector<256x128xf32>
    %c0_111 = arith.constant 0 : index
    %c1024_112 = arith.constant 1024 : index
    %65 = vector.load %arg8[%c0_111, %c1024_112] : memref<256x1152xf32, #tpu.memory_space<vmem>>, vector<256x128xf32>
    tpu.vector_store %arg8[%c0_111, %c1024_112], %64 {strides = array<i32>} : memref<256x1152xf32, #tpu.memory_space<vmem>>, vector<256x128xf32>,
    %c0_113 = arith.constant 0 : index
    %c0_114 = arith.constant 0 : index
    %66 = vector.load %arg8[%c0_113, %c0_114] : memref<256x1152xf32, #tpu.memory_space<vmem>>, vector<256x1152xf32>
    %c0_115 = arith.constant 0 : index
    %c0_116 = arith.constant 0 : index
    %67 = vector.load %arg3[%c0_115, %c0_116] : memref<1152x128xf32, #tpu.memory_space<vmem>>, vector<1152x128xf32>
    %cst_117 = arith.constant dense<0.000000e+00> : vector<256x128xf32>
    %68 = tpu.matmul %66, %67, %cst_117 {dimension_numbers = #tpu.dot_dimension_numbers<[1], [0], [0], [1], [0, 0, 1, 1], [], []>} : vector<256x1152xf32>, vector<1152x128xf32>, vector<256x128xf32> -> vector<256x128xf32>
    %c0_118 = arith.constant 0 : index
    %c0_119 = arith.constant 0 : index
    %69 = vector.load %arg5[%c0_118, %c0_119] : memref<1x128xf32, #tpu.memory_space<vmem>>, vector<1x128xf32>
    %70 = vector.broadcast %69 : vector<1x128xf32> to vector<256x128xf32>
    %71 = arith.addf %68, %70 : vector<256x128xf32>
    %c0_120 = arith.constant 0 : index
    %c1_121 = arith.constant 1 : index
    %c1_122 = arith.constant 1 : index
    %c0_123 = arith.constant 0 : index
    %72 = vector.load %arg1[%c0_120, %c1_121, %c1_122, %c0_123] : memref<1x18x18x128xf32, #tpu.memory_space<vmem>>, vector<1x16x16x128xf32>
    %73 = vector.shape_cast %72 : vector<1x16x16x128xf32> to vector<256x128xf32>
    %74 = arith.addf %71, %73 : vector<256x128xf32>
    %cst_124 = arith.constant 0.000000e+00 : f32
    %75 = vector.broadcast %cst_124 : f32 to vector<256x128xf32>
    %76 = arith.maximumf %74, %75 : vector<256x128xf32>
    %77 = vector.shape_cast %76 : vector<256x128xf32> to vector<1x16x16x128xf32>
    %c0_125 = arith.constant 0 : index
    %c0_126 = arith.constant 0 : index
    %c0_127 = arith.constant 0 : index
    %c0_128 = arith.constant 0 : index
    %78 = vector.load %arg6[%c0_125, %c0_126, %c0_127, %c0_128] : memref<1x16x16x128xf32, #tpu.memory_space<vmem>>, vector<1x16x16x128xf32>
    tpu.vector_store %arg6[%c0_125, %c0_126, %c0_127, %c0_128], %77 {strides = array<i32>} : memref<1x16x16x128xf32, #tpu.memory_space<vmem>>, vector<1x16x16x128xf32>,
    return
  }
  func.func @transform_0(%arg0: i32) -> (i32, i32, i32, i32) {
    %c0_i32 = arith.constant 0 : i32
    %c0_i32_0 = arith.constant 0 : i32
    %c0_i32_1 = arith.constant 0 : i32
    %c0_i32_2 = arith.constant 0 : i32
    return %arg0, %c0_i32, %c0_i32_0, %c0_i32_1 : i32, i32, i32, i32
  }
  func.func @transform_1(%arg0: i32) -> (i32, i32) {
    %c0_i32 = arith.constant 0 : i32
    %c0_i32_0 = arith.constant 0 : i32
    %c0_i32_1 = arith.constant 0 : i32
    return %c0_i32, %c0_i32_0 : i32, i32
  }
  func.func @transform_2(%arg0: i32) -> (i32, i32) {
    %c0_i32 = arith.constant 0 : i32
    %c0_i32_0 = arith.constant 0 : i32
    %c0_i32_1 = arith.constant 0 : i32
    return %c0_i32, %c0_i32_0 : i32, i32
  }
  func.func @transform_3(%arg0: i32) -> (i32, i32) {
    %c0_i32 = arith.constant 0 : i32
    %c0_i32_0 = arith.constant 0 : i32
    %c0_i32_1 = arith.constant 0 : i32
    return %c0_i32, %c0_i32_0 : i32, i32
  }
  func.func @transform_4(%arg0: i32) -> (i32, i32) {
    %c0_i32 = arith.constant 0 : i32
    %c0_i32_0 = arith.constant 0 : i32
    %c0_i32_1 = arith.constant 0 : i32
    return %c0_i32, %c0_i32_0 : i32, i32
  }
  func.func @transform_5(%arg0: i32) -> (i32, i32, i32, i32) {
    %c0_i32 = arith.constant 0 : i32
    %c0_i32_0 = arith.constant 0 : i32
    %c0_i32_1 = arith.constant 0 : i32
    %c0_i32_2 = arith.constant 0 : i32
    return %arg0, %c0_i32, %c0_i32_0, %c0_i32_1 : i32, i32, i32, i32
  }
}

</mosaic_0001>

<llo_original>
// kernel: tpu_custom_call.1
$region0: #{tpu_custom_call.1}
  #allocation0 [shape = 'u32[]', space=smem, size = 0x4, offset = 0x4, fixed_abs, tag = 'smem constant byte address 0x4 - core index']
  #allocation1 [shape = 'u32[144,128]{1,0:T(1,128)}', space=vmem, size = 0x12000, scoped, tag = 'internal scratch']
  #allocation2 [shape = 'f32[1,18,18,128]{3,2,1,0:T(8,128)}', space=vmem, size = 0x36000, scoped, tag = 'scratch operand']
  #allocation3 [shape = 'f32[256,1152]{1,0:T(8,128)}', space=vmem, size = 0x120000, scoped, tag = 'scratch operand']
  %s0 = inlined_call_operand.vmem [shape: f32[2,18,18,128], index: 0, kind: input, shape index: {}]
  %s1 = inlined_call_operand.vmem [shape: f32[1152,128], index: 1, kind: input, shape index: {}]
  %s2 = inlined_call_operand.hbm [shape: f32[1152,128], index: 2, kind: input, shape index: {}]
  %s3 = inlined_call_operand.vmem [shape: f32[1,128], index: 3, kind: input, shape index: {}]
  %s4 = inlined_call_operand.vmem [shape: f32[1,128], index: 4, kind: input, shape index: {}]
  %s5 = inlined_call_operand.hbm [shape: f32[2,16,16,128], index: 5, kind: output, shape index: {}]
  %s6 = sld [smem:[#allocation0]]
  $region57: #{tpu_custom_call.1} parent=0
    _
  %s8 = ssub.s32 1, %s6
  %s9 = scalar_select 0, %s8, %s6
  $region1: #{tpu_custom_call.1} parent=0
    #allocation4 [shape = 'u8[589824]{0}', space=vmem, size = 0x90000, scoped, tag = 'input window, operand 2, single buffered']
    #allocation5 [shape = 's32[2]{0}', space=sflag, size = 0x8, scoped, tag = 'scoped memory for tpu_custom_call.1']
    #allocation6 [shape = 's32[2]{0}', space=sflag, size = 0x8, scoped, tag = 'scoped memory for tpu_custom_call.1']
    #allocation7 [shape = 'u8[262144]{0}', space=vmem, size = 0x40000, scoped, tag = 'output window, operand 0']
    %10 = vsyncpa [#allocation5], 0
    %11 = vsyncpa [#allocation6], 0
    %s12 = scalar_lea.sflag [#allocation6], 1
    %13 = vsyncpa %s12, 0
    loop: start=0, step=1, limit=4
    $region2: #{tpu_custom_call.1} parent=1 // loop_pre_header
      _
    $region3: #{tpu_custom_call.1} parent=1 // loop_header
      %s15 = sphi 0, %s19
      %p16 = scmp.ge.s32.totalorder %s15, 4
      %s25 = sphi 0, %s27
      %s28 = sphi 0, %s25
      %s29 = sphi 0, %s28
      %s45 = sphi 0, %s29
      %s49 = sphi 0, %s49
      %s51 = sphi 0, %s49
      %s52 = sphi 0, %s51
      %s66 = sphi 0, %s52
      %s70 = sphi 0, %s70
      %s72 = sphi 0, %s70
      %s73 = sphi 0, %s72
      %s87 = sphi 0, %s73
      %s91 = sphi 0, %s91
      %s93 = sphi 0, %s91
      %s94 = sphi 0, %s93
      %s108 = sphi 0, %s94
      %s112 = sphi 0, %s112
      %s114 = sphi 0, %s112
      %s115 = sphi 0, %s114
      %s129 = sphi 0, %s115
      %s135 = sphi 0, %s137
      %s138 = sphi 0, %s135
      %s139 = sphi 0, %s138
      %s155 = sphi 0, %s139
    $region4: #{tpu_custom_call.1} parent=1 // loop_header_branch
      %18 = sbr.rel (%p16) target = $region8
    $region5: #{tpu_custom_call.1} parent=1 // loop_body
      %s20 = ssub.s32 %s15, 1
      %s21 = ssub.s32 %s15, 2
      %s22 = sadd.s32 %s15, 1
      %s23 = ssub.s32 %s15, %s22
      %p24 = scmp.eq.s32.totalorder %s23, 0
      %s26 = sadd.s32 %s25, 1
      %s27 = scalar_select %p24, %s25, %s26
      %p30 = pneg %p24
      %p31 = scmp.eq.s32.totalorder %s15, 1
      %p32 = por %p30, %p31
      %p33 = scmp.ne.s32.totalorder %s25, %s28
      %p34 = scmp.eq.s32.totalorder %s15, 0
      %p35 = por %p33, %p34
      %p36 = scmp.ne.s32.totalorder %s25, %s28
      %p37 = scmp.eq.s32.totalorder %s20, 1
      %p38 = por %p36, %p37
      %p39 = scmp.ne.s32.totalorder %s28, %s29
      %p40 = scmp.eq.s32.totalorder %s20, 0
      %p41 = por %p39, %p40
      %p42 = scmp.ne.s32.totalorder %s28, %s29
      %p43 = scmp.eq.s32.totalorder %s21, 1
      %p44 = por %p42, %p43
      %p46 = scmp.ne.s32.totalorder %s29, %s45
      %p47 = scmp.eq.s32.totalorder %s21, 0
      %p48 = por %p46, %p47
      %s50 = sadd.s32 %s49, 1
      %p53 = scmp.eq.s32.totalorder %s15, 1
      %p54 = scmp.ne.s32.totalorder %s49, %s51
      %p55 = scmp.eq.s32.totalorder %s15, 0
      %p56 = por %p54, %p55
      %p57 = scmp.ne.s32.totalorder %s49, %s51
      %p58 = scmp.eq.s32.totalorder %s20, 1
      %p59 = por %p57, %p58
      %p60 = scmp.ne.s32.totalorder %s51, %s52
      %p61 = scmp.eq.s32.totalorder %s20, 0
      %p62 = por %p60, %p61
      %p63 = scmp.ne.s32.totalorder %s51, %s52
      %p64 = scmp.eq.s32.totalorder %s21, 1
      %p65 = por %p63, %p64
      %p67 = scmp.ne.s32.totalorder %s52, %s66
      %p68 = scmp.eq.s32.totalorder %s21, 0
      %p69 = por %p67, %p68
      %s71 = sadd.s32 %s70, 1
      %p74 = scmp.eq.s32.totalorder %s15, 1
      %p75 = scmp.ne.s32.totalorder %s70, %s72
      %p76 = scmp.eq.s32.totalorder %s15, 0
      %p77 = por %p75, %p76
      %p78 = scmp.ne.s32.totalorder %s70, %s72
      %p79 = scmp.eq.s32.totalorder %s20, 1
      %p80 = por %p78, %p79
      %p81 = scmp.ne.s32.totalorder %s72, %s73
      %p82 = scmp.eq.s32.totalorder %s20, 0
      %p83 = por %p81, %p82
      %p84 = scmp.ne.s32.totalorder %s72, %s73
      %p85 = scmp.eq.s32.totalorder %s21, 1
      %p86 = por %p84, %p85
      %p88 = scmp.ne.s32.totalorder %s73, %s87
      %p89 = scmp.eq.s32.totalorder %s21, 0
      %p90 = por %p88, %p89
      %s92 = sadd.s32 %s91, 1
      %p95 = scmp.eq.s32.totalorder %s15, 1
      %p96 = scmp.ne.s32.totalorder %s91, %s93
      %p97 = scmp.eq.s32.totalorder %s15, 0
      %p98 = por %p96, %p97
      %p99 = scmp.ne.s32.totalorder %s91, %s93
      %p100 = scmp.eq.s32.totalorder %s20, 1
      %p101 = por %p99, %p100
      %p102 = scmp.ne.s32.totalorder %s93, %s94
      %p103 = scmp.eq.s32.totalorder %s20, 0
      %p104 = por %p102, %p103
      %p105 = scmp.ne.s32.totalorder %s93, %s94
      %p106 = scmp.eq.s32.totalorder %s21, 1
      %p107 = por %p105, %p106
      %p109 = scmp.ne.s32.totalorder %s94, %s108
      %p110 = scmp.eq.s32.totalorder %s21, 0
      %p111 = por %p109, %p110
      %s113 = sadd.s32 %s112, 1
      %p116 = scmp.eq.s32.totalorder %s15, 1
      %p117 = scmp.ne.s32.totalorder %s112, %s114
      %p118 = scmp.eq.s32.totalorder %s15, 0
      %p119 = por %p117, %p118
      %p120 = scmp.ne.s32.totalorder %s112, %s114
      %p121 = scmp.eq.s32.totalorder %s20, 1
      %p122 = por %p120, %p121
      %p123 = scmp.ne.s32.totalorder %s114, %s115
      %p124 = scmp.eq.s32.totalorder %s20, 0
      %p125 = por %p123, %p124
      %p126 = scmp.ne.s32.totalorder %s114, %s115
      %p127 = scmp.eq.s32.totalorder %s21, 1
      %p128 = por %p126, %p127
      %p130 = scmp.ne.s32.totalorder %s115, %s129
      %p131 = scmp.eq.s32.totalorder %s21, 0
      %p132 = por %p130, %p131
      %s133 = ssub.s32 %s15, %s22
      %p134 = scmp.eq.s32.totalorder %s133, 0
      %s136 = sadd.s32 %s135, 1
      %s137 = scalar_select %p134, %s135, %s136
      %p140 = pneg %p134
      %p141 = scmp.eq.s32.totalorder %s15, 1
      %p142 = por %p140, %p141
      %p143 = scmp.ne.s32.totalorder %s135, %s138
      %p144 = scmp.eq.s32.totalorder %s15, 0
      %p145 = por %p143, %p144
      %p146 = scmp.ne.s32.totalorder %s135, %s138
      %p147 = scmp.eq.s32.totalorder %s20, 1
      %p148 = por %p146, %p147
      %p149 = scmp.ne.s32.totalorder %s138, %s139
      %p150 = scmp.eq.s32.totalorder %s20, 0
      %p151 = por %p149, %p150
      %p152 = scmp.ne.s32.totalorder %s138, %s139
      %p153 = scmp.eq.s32.totalorder %s21, 1
      %p154 = por %p152, %p153
      %p156 = scmp.ne.s32.totalorder %s139, %s155
      %p157 = scmp.eq.s32.totalorder %s21, 0
      %p158 = por %p156, %p157
      %p159 = scmp.le.s32.totalorder 1, %s15
      %p160 = scmp.lt.s32.totalorder %s15, 3
      %p161 = pnand %p159, %p160
      %p162 = pneg %p161
      // Predicated region
      $region9: #{tpu_custom_call.1} parent=5 // pred_check
        _
      $region10: #{tpu_custom_call.1} parent=5 // pred_check_branch
        %164 = sbr.rel (%p161) target = $region12
      $region11: #{tpu_custom_call.1} parent=5 // pred_region
        %s165 = ssub.s32 %s15, 1
        // Predicated region
        $region13: #{tpu_custom_call.1} parent=11 // pred_check
          %p166 = pneg %p62
        $region14: #{tpu_custom_call.1} parent=11 // pred_check_branch
          %168 = sbr.rel (%p166) target = $region16
        $region15: #{tpu_custom_call.1} parent=11 // pred_region
          _
        $region16: #{tpu_custom_call.1} parent=11 // pred_fallthru
          _
        // Predicated region
        $region17: #{tpu_custom_call.1} parent=11 // pred_check
          %p169 = pneg %p83
        $region18: #{tpu_custom_call.1} parent=11 // pred_check_branch
          %171 = sbr.rel (%p169) target = $region20
        $region19: #{tpu_custom_call.1} parent=11 // pred_region
          %s173 = ssub.s32 18432, 18432
          %174 = vsyncadd [#allocation5], %s173
          %s175 = sshll.u32 [#allocation4], 4
          %s176 = int_to_ptr.vmem [resolvable:$true] %s175
          %181 = dma.hbm_to_vmem [thread:$0]  %s2, 18432, %s176, [#allocation5], 128, 128, 8
        $region20: #{tpu_custom_call.1} parent=11 // pred_fallthru
          _
        // Predicated region
        $region21: #{tpu_custom_call.1} parent=11 // pred_check
          %p182 = pneg %p104
        $region22: #{tpu_custom_call.1} parent=11 // pred_check_branch
          %184 = sbr.rel (%p182) target = $region24
        $region23: #{tpu_custom_call.1} parent=11 // pred_region
          _
        $region24: #{tpu_custom_call.1} parent=11 // pred_fallthru
          _
        // Predicated region
        $region25: #{tpu_custom_call.1} parent=11 // pred_check
          %p185 = pneg %p125
        $region26: #{tpu_custom_call.1} parent=11 // pred_check_branch
          %187 = sbr.rel (%p185) target = $region28
        $region27: #{tpu_custom_call.1} parent=11 // pred_region
          _
        $region28: #{tpu_custom_call.1} parent=11 // pred_fallthru
          _
      $region12: #{tpu_custom_call.1} parent=5 // pred_fallthru
        _
      %p188 = scmp.lt.s32.totalorder %s15, 2
      // Predicated region
      $region29: #{tpu_custom_call.1} parent=5 // pred_check
        %p189 = pneg %p188
      $region30: #{tpu_custom_call.1} parent=5 // pred_check_branch
        %191 = sbr.rel (%p189) target = $region32
      $region31: #{tpu_custom_call.1} parent=5 // pred_region
        // Predicated region
        $region33: #{tpu_custom_call.1} parent=31 // pred_check
          %p192 = pneg %p35
        $region34: #{tpu_custom_call.1} parent=31 // pred_check_branch
          %194 = sbr.rel (%p192) target = $region36
        $region35: #{tpu_custom_call.1} parent=31 // pred_region
          %p195 = scmp.lt.s32.totalorder %s15, 1
          %s196 = scalar_select %p195, %s15, 1
          %s197 = smul.addr %s196, 54
          %s198 = smul.addr %s197, 8
          %s199 = scalar_lea.vmem %s0, %s198
        $region36: #{tpu_custom_call.1} parent=31 // pred_fallthru
          _
      $region32: #{tpu_custom_call.1} parent=5 // pred_fallthru
        _
      %p200 = scmp.le.s32.totalorder 1, %s15
      %p201 = scmp.lt.s32.totalorder %s15, 3
      %p202 = pnand %p200, %p201
      %p203 = pneg %p202
      // Predicated region
      $region37: #{tpu_custom_call.1} parent=5 // pred_check
        _
      $region38: #{tpu_custom_call.1} parent=5 // pred_check_branch
        %205 = sbr.rel (%p202) target = $region40
      $region39: #{tpu_custom_call.1} parent=5 // pred_region
        %s206 = ssub.s32 %s15, 1
        // Predicated region
        $region41: #{tpu_custom_call.1} parent=39 // pred_check
          %p207 = pneg %p83
        $region42: #{tpu_custom_call.1} parent=39 // pred_check_branch
          %209 = sbr.rel (%p207) target = $region44
        $region43: #{tpu_custom_call.1} parent=39 // pred_region
          %210 = dma.done [#allocation5], 18432
        $region44: #{tpu_custom_call.1} parent=39 // pred_fallthru
          _
        %p211 = scmp.lt.s32.totalorder %s20, 1
        %s212 = scalar_select %p211, %s20, 1
        %s213 = smul.addr %s212, 54
        %s214 = smul.addr %s213, 8
        %s215 = scalar_lea.vmem %s0, %s214
        %p216 = pneg %p41
        %p217 = pneg %p38
        %p218 = pneg %p62
        %p219 = pneg %p59
        %p220 = pneg %p83
        %p221 = pneg %p80
        %p222 = pneg %p104
        %p223 = pneg %p101
        %p224 = pneg %p125
        %p225 = pneg %p122
        %p226 = pneg %p151
        %p227 = pneg %p148
        %s228 = sand.u32 %s138, 1
        %s229 = scalar_lea.sflag [#allocation6], %s228
        %s230 = sand.u32 %s138, 1
        %s231 = smul.addr %s230, 256
        %s232 = scalar_lea.vmem [#allocation7], %s231
        %p233 = scmp.lt.s32.totalorder %s20, 1
        %s234 = scalar_select %p233, %s20, 1
        %s235 = smul.addr %s234, 54
        %s236 = smul.addr %s235, 8
        %s237 = scalar_lea.vmem %s0, %s236
        %v238 = vld [vmem:[%s237] sm:$0xff]
        %v239 = vld [vmem:[%s237 + $0x8] sm:$0xff]
        %v240 = vld [vmem:[%s237 + $0x18] sm:$0xff]
        %v241 = vld [vmem:[%s237 + $0x20] sm:$0xff]
        %v242 = vld [vmem:[%s237 + $0x30] sm:$0xff]
        %v243 = vld [vmem:[%s237 + $0x38] sm:$0xff]
        %v244 = vld [vmem:[%s237 + $0x48] sm:$0xff]
        %v245 = vld [vmem:[%s237 + $0x50] sm:$0xff]
        %v246 = vld [vmem:[%s237 + $0x60] sm:$0xff]
        %v247 = vld [vmem:[%s237 + $0x68] sm:$0xff]
        %v248 = vld [vmem:[%s237 + $0x78] sm:$0xff]
        %v249 = vld [vmem:[%s237 + $0x80] sm:$0xff]
        %v250 = vld [vmem:[%s237 + $0x90] sm:$0xff]
        %v251 = vld [vmem:[%s237 + $0x98] sm:$0xff]
        %v252 = vld [vmem:[%s237 + $0xa8] sm:$0xff]
        %v253 = vld [vmem:[%s237 + $0xb0] sm:$0xff]
        %v254 = vld [vmem:[%s237 + $0xc0] sm:$0xff]
        %v255 = vld [vmem:[%s237 + $0xc8] sm:$0xff]
        %v256 = vld [vmem:[%s237 + $0xd8] sm:$0xff]
        %v257 = vld [vmem:[%s237 + $0xe0] sm:$0xff]
        %v258 = vld [vmem:[%s237 + $0xf0] sm:$0xff]
        %v259 = vld [vmem:[%s237 + $0xf8] sm:$0xff]
        %v260 = vld [vmem:[%s237 + $0x108] sm:$0xff]
        %v261 = vld [vmem:[%s237 + $0x110] sm:$0xff]
        %v262 = vld [vmem:[%s237 + $0x120] sm:$0xff]
        %v263 = vld [vmem:[%s237 + $0x128] sm:$0xff]
        %v264 = vld [vmem:[%s237 + $0x138] sm:$0xff]
        %v265 = vld [vmem:[%s237 + $0x140] sm:$0xff]
        %v266 = vld [vmem:[%s237 + $0x150] sm:$0xff]
        %v267 = vld [vmem:[%s237 + $0x158] sm:$0xff]
        %v268 = vld [vmem:[%s237 + $0x168] sm:$0xff]
        %v269 = vld [vmem:[%s237 + $0x170] sm:$0xff]
        %270 = vst [vmem:[#allocation3] sm:$0xff] %v238
        %271 = vst [vmem:[#allocation3 + $0x48] sm:$0xff] %v239
        %272 = vst [vmem:[#allocation3 + $0x90] sm:$0xff] %v240
        %273 = vst [vmem:[#allocation3 + $0xd8] sm:$0xff] %v241
        %274 = vst [vmem:[#allocation3 + $0x120] sm:$0xff] %v242
        %275 = vst [vmem:[#allocation3 + $0x168] sm:$0xff] %v243
        %276 = vst [vmem:[#allocation3 + $0x1b0] sm:$0xff] %v244
        %277 = vst [vmem:[#allocation3 + $0x1f8] sm:$0xff] %v245
        %278 = vst [vmem:[#allocation3 + $0x240] sm:$0xff] %v246
        %279 = vst [vmem:[#allocation3 + $0x288] sm:$0xff] %v247
        %280 = vst [vmem:[#allocation3 + $0x2d0] sm:$0xff] %v248
        %281 = vst [vmem:[#allocation3 + $0x318] sm:$0xff] %v249
        %282 = vst [vmem:[#allocation3 + $0x360] sm:$0xff] %v250
        %283 = vst [vmem:[#allocation3 + $0x3a8] sm:$0xff] %v251
        %284 = vst [vmem:[#allocation3 + $0x3f0] sm:$0xff] %v252
        %285 = vst [vmem:[#allocation3 + $0x438] sm:$0xff] %v253
        %286 = vst [vmem:[#allocation3 + $0x480] sm:$0xff] %v254
        %287 = vst [vmem:[#allocation3 + $0x4c8] sm:$0xff] %v255
        %288 = vst [vmem:[#allocation3 + $0x510] sm:$0xff] %v256
        %289 = vst [vmem:[#allocation3 + $0x558] sm:$0xff] %v257
        %290 = vst [vmem:[#allocation3 + $0x5a0] sm:$0xff] %v258
        %291 = vst [vmem:[#allocation3 + $0x5e8] sm:$0xff] %v259
        %292 = vst [vmem:[#allocation3 + $0x630] sm:$0xff] %v260
        %293 = vst [vmem:[#allocation3 + $0x678] sm:$0xff] %v261
        %294 = vst [vmem:[#allocation3 + $0x6c0] sm:$0xff] %v262
        %295 = vst [vmem:[#allocation3 + $0x708] sm:$0xff] %v263
        %296 = vst [vmem:[#allocation3 + $0x750] sm:$0xff] %v264
        %297 = vst [vmem:[#allocation3 + $0x798] sm:$0xff] %v265
        %298 = vst [vmem:[#allocation3 + $0x7e0] sm:$0xff] %v266
        %299 = vst [vmem:[#allocation3 + $0x828] sm:$0xff] %v267
        %300 = vst [vmem:[#allocation3 + $0x870] sm:$0xff] %v268
        %301 = vst [vmem:[#allocation3 + $0x8b8] sm:$0xff] %v269
        %v302 = vld [vmem:[%s237 + $0x1] sm:$0xff]
        %v303 = vld [vmem:[%s237 + $0x9] sm:$0xff]
        %v304 = vld [vmem:[%s237 + $0x19] sm:$0xff]
        %v305 = vld [vmem:[%s237 + $0x21] sm:$0xff]
        %v306 = vld [vmem:[%s237 + $0x31] sm:$0xff]
        %v307 = vld [vmem:[%s237 + $0x39] sm:$0xff]
        %v308 = vld [vmem:[%s237 + $0x49] sm:$0xff]
        %v309 = vld [vmem:[%s237 + $0x51] sm:$0xff]
        %v310 = vld [vmem:[%s237 + $0x61] sm:$0xff]
        %v311 = vld [vmem:[%s237 + $0x69] sm:$0xff]
        %v312 = vld [vmem:[%s237 + $0x79] sm:$0xff]
        %v313 = vld [vmem:[%s237 + $0x81] sm:$0xff]
        %v314 = vld [vmem:[%s237 + $0x91] sm:$0xff]
        %v315 = vld [vmem:[%s237 + $0x99] sm:$0xff]
        %v316 = vld [vmem:[%s237 + $0xa9] sm:$0xff]
        %v317 = vld [vmem:[%s237 + $0xb1] sm:$0xff]
        %v318 = vld [vmem:[%s237 + $0xc1] sm:$0xff]
        %v319 = vld [vmem:[%s237 + $0xc9] sm:$0xff]
        %v320 = vld [vmem:[%s237 + $0xd9] sm:$0xff]
        %v321 = vld [vmem:[%s237 + $0xe1] sm:$0xff]
        %v322 = vld [vmem:[%s237 + $0xf1] sm:$0xff]
        %v323 = vld [vmem:[%s237 + $0xf9] sm:$0xff]
        %v324 = vld [vmem:[%s237 + $0x109] sm:$0xff]
        %v325 = vld [vmem:[%s237 + $0x111] sm:$0xff]
        %v326 = vld [vmem:[%s237 + $0x121] sm:$0xff]
        %v327 = vld [vmem:[%s237 + $0x129] sm:$0xff]
        %v328 = vld [vmem:[%s237 + $0x139] sm:$0xff]
        %v329 = vld [vmem:[%s237 + $0x141] sm:$0xff]
        %v330 = vld [vmem:[%s237 + $0x151] sm:$0xff]
        %v331 = vld [vmem:[%s237 + $0x159] sm:$0xff]
        %v332 = vld [vmem:[%s237 + $0x169] sm:$0xff]
        %v333 = vld [vmem:[%s237 + $0x171] sm:$0xff]
        %334 = vst [vmem:[#allocation3 + $0x8] sm:$0xff] %v302
        %335 = vst [vmem:[#allocation3 + $0x50] sm:$0xff] %v303
        %336 = vst [vmem:[#allocation3 + $0x98] sm:$0xff] %v304
        %337 = vst [vmem:[#allocation3 + $0xe0] sm:$0xff] %v305
        %338 = vst [vmem:[#allocation3 + $0x128] sm:$0xff] %v306
        %339 = vst [vmem:[#allocation3 + $0x170] sm:$0xff] %v307
        %340 = vst [vmem:[#allocation3 + $0x1b8] sm:$0xff] %v308
        %341 = vst [vmem:[#allocation3 + $0x200] sm:$0xff] %v309
        %342 = vst [vmem:[#allocation3 + $0x248] sm:$0xff] %v310
        %343 = vst [vmem:[#allocation3 + $0x290] sm:$0xff] %v311
        %344 = vst [vmem:[#allocation3 + $0x2d8] sm:$0xff] %v312
        %345 = vst [vmem:[#allocation3 + $0x320] sm:$0xff] %v313
        %346 = vst [vmem:[#allocation3 + $0x368] sm:$0xff] %v314
        %347 = vst [vmem:[#allocation3 + $0x3b0] sm:$0xff] %v315
        %348 = vst [vmem:[#allocation3 + $0x3f8] sm:$0xff] %v316
        %349 = vst [vmem:[#allocation3 + $0x440] sm:$0xff] %v317
        %350 = vst [vmem:[#allocation3 + $0x488] sm:$0xff] %v318
        %351 = vst [vmem:[#allocation3 + $0x4d0] sm:$0xff] %v319
        %352 = vst [vmem:[#allocation3 + $0x518] sm:$0xff] %v320
        %353 = vst [vmem:[#allocation3 + $0x560] sm:$0xff] %v321
        %354 = vst [vmem:[#allocation3 + $0x5a8] sm:$0xff] %v322
        %355 = vst [vmem:[#allocation3 + $0x5f0] sm:$0xff] %v323
        %356 = vst [vmem:[#allocation3 + $0x638] sm:$0xff] %v324
        %357 = vst [vmem:[#allocation3 + $0x680] sm:$0xff] %v325
        %358 = vst [vmem:[#allocation3 + $0x6c8] sm:$0xff] %v326
        %359 = vst [vmem:[#allocation3 + $0x710] sm:$0xff] %v327
        %360 = vst [vmem:[#allocation3 + $0x758] sm:$0xff] %v328
        %361 = vst [vmem:[#allocation3 + $0x7a0] sm:$0xff] %v329
        %362 = vst [vmem:[#allocation3 + $0x7e8] sm:$0xff] %v330
        %363 = vst [vmem:[#allocation3 + $0x830] sm:$0xff] %v331
        %364 = vst [vmem:[#allocation3 + $0x878] sm:$0xff] %v332
        %365 = vst [vmem:[#allocation3 + $0x8c0] sm:$0xff] %v333
        %v366 = vld [vmem:[%s237 + $0x2] sm:$0xff]
        %v367 = vld [vmem:[%s237 + $0xa] sm:$0xff]
        %v368 = vld [vmem:[%s237 + $0x1a] sm:$0xff]
        %v369 = vld [vmem:[%s237 + $0x22] sm:$0xff]
        %v370 = vld [vmem:[%s237 + $0x32] sm:$0xff]
        %v371 = vld [vmem:[%s237 + $0x3a] sm:$0xff]
        %v372 = vld [vmem:[%s237 + $0x4a] sm:$0xff]
        %v373 = vld [vmem:[%s237 + $0x52] sm:$0xff]
        %v374 = vld [vmem:[%s237 + $0x62] sm:$0xff]
        %v375 = vld [vmem:[%s237 + $0x6a] sm:$0xff]
        %v376 = vld [vmem:[%s237 + $0x7a] sm:$0xff]
        %v377 = vld [vmem:[%s237 + $0x82] sm:$0xff]
        %v378 = vld [vmem:[%s237 + $0x92] sm:$0xff]
        %v379 = vld [vmem:[%s237 + $0x9a] sm:$0xff]
        %v380 = vld [vmem:[%s237 + $0xaa] sm:$0xff]
        %v381 = vld [vmem:[%s237 + $0xb2] sm:$0xff]
        %v382 = vld [vmem:[%s237 + $0xc2] sm:$0xff]
        %v383 = vld [vmem:[%s237 + $0xca] sm:$0xff]
        %v384 = vld [vmem:[%s237 + $0xda] sm:$0xff]
        %v385 = vld [vmem:[%s237 + $0xe2] sm:$0xff]
        %v386 = vld [vmem:[%s237 + $0xf2] sm:$0xff]
        %v387 = vld [vmem:[%s237 + $0xfa] sm:$0xff]
        %v388 = vld [vmem:[%s237 + $0x10a] sm:$0xff]
        %v389 = vld [vmem:[%s237 + $0x112] sm:$0xff]
        %v390 = vld [vmem:[%s237 + $0x122] sm:$0xff]
        %v391 = vld [vmem:[%s237 + $0x12a] sm:$0xff]
        %v392 = vld [vmem:[%s237 + $0x13a] sm:$0xff]
        %v393 = vld [vmem:[%s237 + $0x142] sm:$0xff]
        %v394 = vld [vmem:[%s237 + $0x152] sm:$0xff]
        %v395 = vld [vmem:[%s237 + $0x15a] sm:$0xff]
        %v396 = vld [vmem:[%s237 + $0x16a] sm:$0xff]
        %v397 = vld [vmem:[%s237 + $0x172] sm:$0xff]
        %398 = vst [vmem:[#allocation3 + $0x10] sm:$0xff] %v366
        %399 = vst [vmem:[#allocation3 + $0x58] sm:$0xff] %v367
        %400 = vst [vmem:[#allocation3 + $0xa0] sm:$0xff] %v368
        %401 = vst [vmem:[#allocation3 + $0xe8] sm:$0xff] %v369
        %402 = vst [vmem:[#allocation3 + $0x130] sm:$0xff] %v370
        %403 = vst [vmem:[#allocation3 + $0x178] sm:$0xff] %v371
        %404 = vst [vmem:[#allocation3 + $0x1c0] sm:$0xff] %v372
        %405 = vst [vmem:[#allocation3 + $0x208] sm:$0xff] %v373
        %406 = vst [vmem:[#allocation3 + $0x250] sm:$0xff] %v374
        %407 = vst [vmem:[#allocation3 + $0x298] sm:$0xff] %v375
        %408 = vst [vmem:[#allocation3 + $0x2e0] sm:$0xff] %v376
        %409 = vst [vmem:[#allocation3 + $0x328] sm:$0xff] %v377
        %410 = vst [vmem:[#allocation3 + $0x370] sm:$0xff] %v378
        %411 = vst [vmem:[#allocation3 + $0x3b8] sm:$0xff] %v379
        %412 = vst [vmem:[#allocation3 + $0x400] sm:$0xff] %v380
        %413 = vst [vmem:[#allocation3 + $0x448] sm:$0xff] %v381
        %414 = vst [vmem:[#allocation3 + $0x490] sm:$0xff] %v382
        %415 = vst [vmem:[#allocation3 + $0x4d8] sm:$0xff] %v383
        %416 = vst [vmem:[#allocation3 + $0x520] sm:$0xff] %v384
        %417 = vst [vmem:[#allocation3 + $0x568] sm:$0xff] %v385
        %418 = vst [vmem:[#allocation3 + $0x5b0] sm:$0xff] %v386
        %419 = vst [vmem:[#allocation3 + $0x5f8] sm:$0xff] %v387
        %420 = vst [vmem:[#allocation3 + $0x640] sm:$0xff] %v388
        %421 = vst [vmem:[#allocation3 + $0x688] sm:$0xff] %v389
        %422 = vst [vmem:[#allocation3 + $0x6d0] sm:$0xff] %v390
        %423 = vst [vmem:[#allocation3 + $0x718] sm:$0xff] %v391
        %424 = vst [vmem:[#allocation3 + $0x760] sm:$0xff] %v392
        %425 = vst [vmem:[#allocation3 + $0x7a8] sm:$0xff] %v393
        %426 = vst [vmem:[#allocation3 + $0x7f0] sm:$0xff] %v394
        %427 = vst [vmem:[#allocation3 + $0x838] sm:$0xff] %v395
        %428 = vst [vmem:[#allocation3 + $0x880] sm:$0xff] %v396
        %429 = vst [vmem:[#allocation3 + $0x8c8] sm:$0xff] %v397
        %s430 = scalar_lea.vmem %s237, 24
        %v431 = vld [vmem:[%s430] sm:$0xff]
        %v432 = vld [vmem:[%s430 + $0x8] sm:$0xff]
        %v433 = vld [vmem:[%s430 + $0x18] sm:$0xff]
        %v434 = vld [vmem:[%s430 + $0x20] sm:$0xff]
        %v435 = vld [vmem:[%s430 + $0x30] sm:$0xff]
        %v436 = vld [vmem:[%s430 + $0x38] sm:$0xff]
        %v437 = vld [vmem:[%s430 + $0x48] sm:$0xff]
        %v438 = vld [vmem:[%s430 + $0x50] sm:$0xff]
        %v439 = vld [vmem:[%s430 + $0x60] sm:$0xff]
        %v440 = vld [vmem:[%s430 + $0x68] sm:$0xff]
        %v441 = vld [vmem:[%s430 + $0x78] sm:$0xff]
        %v442 = vld [vmem:[%s430 + $0x80] sm:$0xff]
        %v443 = vld [vmem:[%s430 + $0x90] sm:$0xff]
        %v444 = vld [vmem:[%s430 + $0x98] sm:$0xff]
        %v445 = vld [vmem:[%s430 + $0xa8] sm:$0xff]
        %v446 = vld [vmem:[%s430 + $0xb0] sm:$0xff]
        %v447 = vld [vmem:[%s430 + $0xc0] sm:$0xff]
        %v448 = vld [vmem:[%s430 + $0xc8] sm:$0xff]
        %v449 = vld [vmem:[%s430 + $0xd8] sm:$0xff]
        %v450 = vld [vmem:[%s430 + $0xe0] sm:$0xff]
        %v451 = vld [vmem:[%s430 + $0xf0] sm:$0xff]
        %v452 = vld [vmem:[%s430 + $0xf8] sm:$0xff]
        %v453 = vld [vmem:[%s430 + $0x108] sm:$0xff]
        %v454 = vld [vmem:[%s430 + $0x110] sm:$0xff]
        %v455 = vld [vmem:[%s430 + $0x120] sm:$0xff]
        %v456 = vld [vmem:[%s430 + $0x128] sm:$0xff]
        %v457 = vld [vmem:[%s430 + $0x138] sm:$0xff]
        %v458 = vld [vmem:[%s430 + $0x140] sm:$0xff]
        %v459 = vld [vmem:[%s430 + $0x150] sm:$0xff]
        %v460 = vld [vmem:[%s430 + $0x158] sm:$0xff]
        %v461 = vld [vmem:[%s430 + $0x168] sm:$0xff]
        %v462 = vld [vmem:[%s430 + $0x170] sm:$0xff]
        %463 = vst [vmem:[#allocation3 + $0x18] sm:$0xff] %v431
        %464 = vst [vmem:[#allocation3 + $0x60] sm:$0xff] %v432
        %465 = vst [vmem:[#allocation3 + $0xa8] sm:$0xff] %v433
        %466 = vst [vmem:[#allocation3 + $0xf0] sm:$0xff] %v434
        %467 = vst [vmem:[#allocation3 + $0x138] sm:$0xff] %v435
        %468 = vst [vmem:[#allocation3 + $0x180] sm:$0xff] %v436
        %469 = vst [vmem:[#allocation3 + $0x1c8] sm:$0xff] %v437
        %470 = vst [vmem:[#allocation3 + $0x210] sm:$0xff] %v438
        %471 = vst [vmem:[#allocation3 + $0x258] sm:$0xff] %v439
        %472 = vst [vmem:[#allocation3 + $0x2a0] sm:$0xff] %v440
        %473 = vst [vmem:[#allocation3 + $0x2e8] sm:$0xff] %v441
        %474 = vst [vmem:[#allocation3 + $0x330] sm:$0xff] %v442
        %475 = vst [vmem:[#allocation3 + $0x378] sm:$0xff] %v443
        %476 = vst [vmem:[#allocation3 + $0x3c0] sm:$0xff] %v444
        %477 = vst [vmem:[#allocation3 + $0x408] sm:$0xff] %v445
        %478 = vst [vmem:[#allocation3 + $0x450] sm:$0xff] %v446
        %479 = vst [vmem:[#allocation3 + $0x498] sm:$0xff] %v447
        %480 = vst [vmem:[#allocation3 + $0x4e0] sm:$0xff] %v448
        %481 = vst [vmem:[#allocation3 + $0x528] sm:$0xff] %v449
        %482 = vst [vmem:[#allocation3 + $0x570] sm:$0xff] %v450
        %483 = vst [vmem:[#allocation3 + $0x5b8] sm:$0xff] %v451
        %484 = vst [vmem:[#allocation3 + $0x600] sm:$0xff] %v452
        %485 = vst [vmem:[#allocation3 + $0x648] sm:$0xff] %v453
        %486 = vst [vmem:[#allocation3 + $0x690] sm:$0xff] %v454
        %487 = vst [vmem:[#allocation3 + $0x6d8] sm:$0xff] %v455
        %488 = vst [vmem:[#allocation3 + $0x720] sm:$0xff] %v456
        %489 = vst [vmem:[#allocation3 + $0x768] sm:$0xff] %v457
        %490 = vst [vmem:[#allocation3 + $0x7b0] sm:$0xff] %v458
        %491 = vst [vmem:[#allocation3 + $0x7f8] sm:$0xff] %v459
        %492 = vst [vmem:[#allocation3 + $0x840] sm:$0xff] %v460
        %493 = vst [vmem:[#allocation3 + $0x888] sm:$0xff] %v461
        %494 = vst [vmem:[#allocation3 + $0x8d0] sm:$0xff] %v462
        %v495 = vld [vmem:[%s430 + $0x1] sm:$0xff]
        %v496 = vld [vmem:[%s430 + $0x9] sm:$0xff]
        %v497 = vld [vmem:[%s430 + $0x19] sm:$0xff]
        %v498 = vld [vmem:[%s430 + $0x21] sm:$0xff]
        %v499 = vld [vmem:[%s430 + $0x31] sm:$0xff]
        %v500 = vld [vmem:[%s430 + $0x39] sm:$0xff]
        %v501 = vld [vmem:[%s430 + $0x49] sm:$0xff]
        %v502 = vld [vmem:[%s430 + $0x51] sm:$0xff]
        %v503 = vld [vmem:[%s430 + $0x61] sm:$0xff]
        %v504 = vld [vmem:[%s430 + $0x69] sm:$0xff]
        %v505 = vld [vmem:[%s430 + $0x79] sm:$0xff]
        %v506 = vld [vmem:[%s430 + $0x81] sm:$0xff]
        %v507 = vld [vmem:[%s430 + $0x91] sm:$0xff]
        %v508 = vld [vmem:[%s430 + $0x99] sm:$0xff]
        %v509 = vld [vmem:[%s430 + $0xa9] sm:$0xff]
        %v510 = vld [vmem:[%s430 + $0xb1] sm:$0xff]
        %v511 = vld [vmem:[%s430 + $0xc1] sm:$0xff]
        %v512 = vld [vmem:[%s430 + $0xc9] sm:$0xff]
        %v513 = vld [vmem:[%s430 + $0xd9] sm:$0xff]
        %v514 = vld [vmem:[%s430 + $0xe1] sm:$0xff]
        %v515 = vld [vmem:[%s430 + $0xf1] sm:$0xff]
        %v516 = vld [vmem:[%s430 + $0xf9] sm:$0xff]
        %v517 = vld [vmem:[%s430 + $0x109] sm:$0xff]
        %v518 = vld [vmem:[%s430 + $0x111] sm:$0xff]
        %v519 = vld [vmem:[%s430 + $0x121] sm:$0xff]
        %v520 = vld [vmem:[%s430 + $0x129] sm:$0xff]
        %v521 = vld [vmem:[%s430 + $0x139] sm:$0xff]
        %v522 = vld [vmem:[%s430 + $0x141] sm:$0xff]
        %v523 = vld [vmem:[%s430 + $0x151] sm:$0xff]
        %v524 = vld [vmem:[%s430 + $0x159] sm:$0xff]
        %v525 = vld [vmem:[%s430 + $0x169] sm:$0xff]
        %v526 = vld [vmem:[%s430 + $0x171] sm:$0xff]
        %527 = vst [vmem:[#allocation3 + $0x20] sm:$0xff] %v495
        %528 = vst [vmem:[#allocation3 + $0x68] sm:$0xff] %v496
        %529 = vst [vmem:[#allocation3 + $0xb0] sm:$0xff] %v497
        %530 = vst [vmem:[#allocation3 + $0xf8] sm:$0xff] %v498
        %531 = vst [vmem:[#allocation3 + $0x140] sm:$0xff] %v499
        %532 = vst [vmem:[#allocation3 + $0x188] sm:$0xff] %v500
        %533 = vst [vmem:[#allocation3 + $0x1d0] sm:$0xff] %v501
        %534 = vst [vmem:[#allocation3 + $0x218] sm:$0xff] %v502
        %535 = vst [vmem:[#allocation3 + $0x260] sm:$0xff] %v503
        %536 = vst [vmem:[#allocation3 + $0x2a8] sm:$0xff] %v504
        %537 = vst [vmem:[#allocation3 + $0x2f0] sm:$0xff] %v505
        %538 = vst [vmem:[#allocation3 + $0x338] sm:$0xff] %v506
        %539 = vst [vmem:[#allocation3 + $0x380] sm:$0xff] %v507
        %540 = vst [vmem:[#allocation3 + $0x3c8] sm:$0xff] %v508
        %541 = vst [vmem:[#allocation3 + $0x410] sm:$0xff] %v509
        %542 = vst [vmem:[#allocation3 + $0x458] sm:$0xff] %v510
        %543 = vst [vmem:[#allocation3 + $0x4a0] sm:$0xff] %v511
        %544 = vst [vmem:[#allocation3 + $0x4e8] sm:$0xff] %v512
        %545 = vst [vmem:[#allocation3 + $0x530] sm:$0xff] %v513
        %546 = vst [vmem:[#allocation3 + $0x578] sm:$0xff] %v514
        %547 = vst [vmem:[#allocation3 + $0x5c0] sm:$0xff] %v515
        %548 = vst [vmem:[#allocation3 + $0x608] sm:$0xff] %v516
        %549 = vst [vmem:[#allocation3 + $0x650] sm:$0xff] %v517
        %550 = vst [vmem:[#allocation3 + $0x698] sm:$0xff] %v518
        %551 = vst [vmem:[#allocation3 + $0x6e0] sm:$0xff] %v519
        %552 = vst [vmem:[#allocation3 + $0x728] sm:$0xff] %v520
        %553 = vst [vmem:[#allocation3 + $0x770] sm:$0xff] %v521
        %554 = vst [vmem:[#allocation3 + $0x7b8] sm:$0xff] %v522
        %555 = vst [vmem:[#allocation3 + $0x800] sm:$0xff] %v523
        %556 = vst [vmem:[#allocation3 + $0x848] sm:$0xff] %v524
        %557 = vst [vmem:[#allocation3 + $0x890] sm:$0xff] %v525
        %558 = vst [vmem:[#allocation3 + $0x8d8] sm:$0xff] %v526
        %v559 = vld [vmem:[%s430 + $0x2] sm:$0xff]
        %v560 = vld [vmem:[%s430 + $0xa] sm:$0xff]
        %v561 = vld [vmem:[%s430 + $0x1a] sm:$0xff]
        %v562 = vld [vmem:[%s430 + $0x22] sm:$0xff]
        %v563 = vld [vmem:[%s430 + $0x32] sm:$0xff]
        %v564 = vld [vmem:[%s430 + $0x3a] sm:$0xff]
        %v565 = vld [vmem:[%s430 + $0x4a] sm:$0xff]
        %v566 = vld [vmem:[%s430 + $0x52] sm:$0xff]
        %v567 = vld [vmem:[%s430 + $0x62] sm:$0xff]
        %v568 = vld [vmem:[%s430 + $0x6a] sm:$0xff]
        %v569 = vld [vmem:[%s430 + $0x7a] sm:$0xff]
        %v570 = vld [vmem:[%s430 + $0x82] sm:$0xff]
        %v571 = vld [vmem:[%s430 + $0x92] sm:$0xff]
        %v572 = vld [vmem:[%s430 + $0x9a] sm:$0xff]
        %v573 = vld [vmem:[%s430 + $0xaa] sm:$0xff]
        %v574 = vld [vmem:[%s430 + $0xb2] sm:$0xff]
        %v575 = vld [vmem:[%s430 + $0xc2] sm:$0xff]
        %v576 = vld [vmem:[%s430 + $0xca] sm:$0xff]
        %v577 = vld [vmem:[%s430 + $0xda] sm:$0xff]
        %v578 = vld [vmem:[%s430 + $0xe2] sm:$0xff]
        %v579 = vld [vmem:[%s430 + $0xf2] sm:$0xff]
        %v580 = vld [vmem:[%s430 + $0xfa] sm:$0xff]
        %v581 = vld [vmem:[%s430 + $0x10a] sm:$0xff]
        %v582 = vld [vmem:[%s430 + $0x112] sm:$0xff]
        %v583 = vld [vmem:[%s430 + $0x122] sm:$0xff]
        %v584 = vld [vmem:[%s430 + $0x12a] sm:$0xff]
        %v585 = vld [vmem:[%s430 + $0x13a] sm:$0xff]
        %v586 = vld [vmem:[%s430 + $0x142] sm:$0xff]
        %v587 = vld [vmem:[%s430 + $0x152] sm:$0xff]
        %v588 = vld [vmem:[%s430 + $0x15a] sm:$0xff]
        %v589 = vld [vmem:[%s430 + $0x16a] sm:$0xff]
        %v590 = vld [vmem:[%s430 + $0x172] sm:$0xff]
        %591 = vst [vmem:[#allocation3 + $0x28] sm:$0xff] %v559
        %592 = vst [vmem:[#allocation3 + $0x70] sm:$0xff] %v560
        %593 = vst [vmem:[#allocation3 + $0xb8] sm:$0xff] %v561
        %594 = vst [vmem:[#allocation3 + $0x100] sm:$0xff] %v562
        %595 = vst [vmem:[#allocation3 + $0x148] sm:$0xff] %v563
        %596 = vst [vmem:[#allocation3 + $0x190] sm:$0xff] %v564
        %597 = vst [vmem:[#allocation3 + $0x1d8] sm:$0xff] %v565
        %598 = vst [vmem:[#allocation3 + $0x220] sm:$0xff] %v566
        %599 = vst [vmem:[#allocation3 + $0x268] sm:$0xff] %v567
        %600 = vst [vmem:[#allocation3 + $0x2b0] sm:$0xff] %v568
        %601 = vst [vmem:[#allocation3 + $0x2f8] sm:$0xff] %v569
        %602 = vst [vmem:[#allocation3 + $0x340] sm:$0xff] %v570
        %603 = vst [vmem:[#allocation3 + $0x388] sm:$0xff] %v571
        %604 = vst [vmem:[#allocation3 + $0x3d0] sm:$0xff] %v572
        %605 = vst [vmem:[#allocation3 + $0x418] sm:$0xff] %v573
        %606 = vst [vmem:[#allocation3 + $0x460] sm:$0xff] %v574
        %607 = vst [vmem:[#allocation3 + $0x4a8] sm:$0xff] %v575
        %608 = vst [vmem:[#allocation3 + $0x4f0] sm:$0xff] %v576
        %609 = vst [vmem:[#allocation3 + $0x538] sm:$0xff] %v577
        %610 = vst [vmem:[#allocation3 + $0x580] sm:$0xff] %v578
        %611 = vst [vmem:[#allocation3 + $0x5c8] sm:$0xff] %v579
        %612 = vst [vmem:[#allocation3 + $0x610] sm:$0xff] %v580
        %613 = vst [vmem:[#allocation3 + $0x658] sm:$0xff] %v581
        %614 = vst [vmem:[#allocation3 + $0x6a0] sm:$0xff] %v582
        %615 = vst [vmem:[#allocation3 + $0x6e8] sm:$0xff] %v583
        %616 = vst [vmem:[#allocation3 + $0x730] sm:$0xff] %v584
        %617 = vst [vmem:[#allocation3 + $0x778] sm:$0xff] %v585
        %618 = vst [vmem:[#allocation3 + $0x7c0] sm:$0xff] %v586
        %619 = vst [vmem:[#allocation3 + $0x808] sm:$0xff] %v587
        %620 = vst [vmem:[#allocation3 + $0x850] sm:$0xff] %v588
        %621 = vst [vmem:[#allocation3 + $0x898] sm:$0xff] %v589
        %622 = vst [vmem:[#allocation3 + $0x8e0] sm:$0xff] %v590
        %s623 = scalar_lea.vmem %s237, 48
        %v624 = vld [vmem:[%s623] sm:$0xff]
        %v625 = vld [vmem:[%s623 + $0x8] sm:$0xff]
        %v626 = vld [vmem:[%s623 + $0x18] sm:$0xff]
        %v627 = vld [vmem:[%s623 + $0x20] sm:$0xff]
        %v628 = vld [vmem:[%s623 + $0x30] sm:$0xff]
        %v629 = vld [vmem:[%s623 + $0x38] sm:$0xff]
        %v630 = vld [vmem:[%s623 + $0x48] sm:$0xff]
        %v631 = vld [vmem:[%s623 + $0x50] sm:$0xff]
        %v632 = vld [vmem:[%s623 + $0x60] sm:$0xff]
        %v633 = vld [vmem:[%s623 + $0x68] sm:$0xff]
        %v634 = vld [vmem:[%s623 + $0x78] sm:$0xff]
        %v635 = vld [vmem:[%s623 + $0x80] sm:$0xff]
        %v636 = vld [vmem:[%s623 + $0x90] sm:$0xff]
        %v637 = vld [vmem:[%s623 + $0x98] sm:$0xff]
        %v638 = vld [vmem:[%s623 + $0xa8] sm:$0xff]
        %v639 = vld [vmem:[%s623 + $0xb0] sm:$0xff]
        %v640 = vld [vmem:[%s623 + $0xc0] sm:$0xff]
        %v641 = vld [vmem:[%s623 + $0xc8] sm:$0xff]
        %v642 = vld [vmem:[%s623 + $0xd8] sm:$0xff]
        %v643 = vld [vmem:[%s623 + $0xe0] sm:$0xff]
        %v644 = vld [vmem:[%s623 + $0xf0] sm:$0xff]
        %v645 = vld [vmem:[%s623 + $0xf8] sm:$0xff]
        %v646 = vld [vmem:[%s623 + $0x108] sm:$0xff]
        %v647 = vld [vmem:[%s623 + $0x110] sm:$0xff]
        %v648 = vld [vmem:[%s623 + $0x120] sm:$0xff]
        %v649 = vld [vmem:[%s623 + $0x128] sm:$0xff]
        %v650 = vld [vmem:[%s623 + $0x138] sm:$0xff]
        %v651 = vld [vmem:[%s623 + $0x140] sm:$0xff]
        %v652 = vld [vmem:[%s623 + $0x150] sm:$0xff]
        %v653 = vld [vmem:[%s623 + $0x158] sm:$0xff]
        %v654 = vld [vmem:[%s623 + $0x168] sm:$0xff]
        %v655 = vld [vmem:[%s623 + $0x170] sm:$0xff]
        %656 = vst [vmem:[#allocation3 + $0x30] sm:$0xff] %v624
        %657 = vst [vmem:[#allocation3 + $0x78] sm:$0xff] %v625
        %658 = vst [vmem:[#allocation3 + $0xc0] sm:$0xff] %v626
        %659 = vst [vmem:[#allocation3 + $0x108] sm:$0xff] %v627
        %660 = vst [vmem:[#allocation3 + $0x150] sm:$0xff] %v628
        %661 = vst [vmem:[#allocation3 + $0x198] sm:$0xff] %v629
        %662 = vst [vmem:[#allocation3 + $0x1e0] sm:$0xff] %v630
        %663 = vst [vmem:[#allocation3 + $0x228] sm:$0xff] %v631
        %664 = vst [vmem:[#allocation3 + $0x270] sm:$0xff] %v632
        %665 = vst [vmem:[#allocation3 + $0x2b8] sm:$0xff] %v633
        %666 = vst [vmem:[#allocation3 + $0x300] sm:$0xff] %v634
        %667 = vst [vmem:[#allocation3 + $0x348] sm:$0xff] %v635
        %668 = vst [vmem:[#allocation3 + $0x390] sm:$0xff] %v636
        %669 = vst [vmem:[#allocation3 + $0x3d8] sm:$0xff] %v637
        %670 = vst [vmem:[#allocation3 + $0x420] sm:$0xff] %v638
        %671 = vst [vmem:[#allocation3 + $0x468] sm:$0xff] %v639
        %672 = vst [vmem:[#allocation3 + $0x4b0] sm:$0xff] %v640
        %673 = vst [vmem:[#allocation3 + $0x4f8] sm:$0xff] %v641
        %674 = vst [vmem:[#allocation3 + $0x540] sm:$0xff] %v642
        %675 = vst [vmem:[#allocation3 + $0x588] sm:$0xff] %v643
        %676 = vst [vmem:[#allocation3 + $0x5d0] sm:$0xff] %v644
        %677 = vst [vmem:[#allocation3 + $0x618] sm:$0xff] %v645
        %678 = vst [vmem:[#allocation3 + $0x660] sm:$0xff] %v646
        %679 = vst [vmem:[#allocation3 + $0x6a8] sm:$0xff] %v647
        %680 = vst [vmem:[#allocation3 + $0x6f0] sm:$0xff] %v648
        %681 = vst [vmem:[#allocation3 + $0x738] sm:$0xff] %v649
        %682 = vst [vmem:[#allocation3 + $0x780] sm:$0xff] %v650
        %683 = vst [vmem:[#allocation3 + $0x7c8] sm:$0xff] %v651
        %684 = vst [vmem:[#allocation3 + $0x810] sm:$0xff] %v652
        %685 = vst [vmem:[#allocation3 + $0x858] sm:$0xff] %v653
        %686 = vst [vmem:[#allocation3 + $0x8a0] sm:$0xff] %v654
        %687 = vst [vmem:[#allocation3 + $0x8e8] sm:$0xff] %v655
        %v688 = vld [vmem:[%s623 + $0x1] sm:$0xff]
        %v689 = vld [vmem:[%s623 + $0x9] sm:$0xff]
        %v690 = vld [vmem:[%s623 + $0x19] sm:$0xff]
        %v691 = vld [vmem:[%s623 + $0x21] sm:$0xff]
        %v692 = vld [vmem:[%s623 + $0x31] sm:$0xff]
        %v693 = vld [vmem:[%s623 + $0x39] sm:$0xff]
        %v694 = vld [vmem:[%s623 + $0x49] sm:$0xff]
        %v695 = vld [vmem:[%s623 + $0x51] sm:$0xff]
        %v696 = vld [vmem:[%s623 + $0x61] sm:$0xff]
        %v697 = vld [vmem:[%s623 + $0x69] sm:$0xff]
        %v698 = vld [vmem:[%s623 + $0x79] sm:$0xff]
        %v699 = vld [vmem:[%s623 + $0x81] sm:$0xff]
        %v700 = vld [vmem:[%s623 + $0x91] sm:$0xff]
        %v701 = vld [vmem:[%s623 + $0x99] sm:$0xff]
        %v702 = vld [vmem:[%s623 + $0xa9] sm:$0xff]
        %v703 = vld [vmem:[%s623 + $0xb1] sm:$0xff]
        %v704 = vld [vmem:[%s623 + $0xc1] sm:$0xff]
        %v705 = vld [vmem:[%s623 + $0xc9] sm:$0xff]
        %v706 = vld [vmem:[%s623 + $0xd9] sm:$0xff]
        %v707 = vld [vmem:[%s623 + $0xe1] sm:$0xff]
        %v708 = vld [vmem:[%s623 + $0xf1] sm:$0xff]
        %v709 = vld [vmem:[%s623 + $0xf9] sm:$0xff]
        %v710 = vld [vmem:[%s623 + $0x109] sm:$0xff]
        %v711 = vld [vmem:[%s623 + $0x111] sm:$0xff]
        %v712 = vld [vmem:[%s623 + $0x121] sm:$0xff]
        %v713 = vld [vmem:[%s623 + $0x129] sm:$0xff]
        %v714 = vld [vmem:[%s623 + $0x139] sm:$0xff]
        %v715 = vld [vmem:[%s623 + $0x141] sm:$0xff]
        %v716 = vld [vmem:[%s623 + $0x151] sm:$0xff]
        %v717 = vld [vmem:[%s623 + $0x159] sm:$0xff]
        %v718 = vld [vmem:[%s623 + $0x169] sm:$0xff]
        %v719 = vld [vmem:[%s623 + $0x171] sm:$0xff]
        %720 = vst [vmem:[#allocation3 + $0x38] sm:$0xff] %v688
        %721 = vst [vmem:[#allocation3 + $0x80] sm:$0xff] %v689
        %722 = vst [vmem:[#allocation3 + $0xc8] sm:$0xff] %v690
        %723 = vst [vmem:[#allocation3 + $0x110] sm:$0xff] %v691
        %724 = vst [vmem:[#allocation3 + $0x158] sm:$0xff] %v692
        %725 = vst [vmem:[#allocation3 + $0x1a0] sm:$0xff] %v693
        %726 = vst [vmem:[#allocation3 + $0x1e8] sm:$0xff] %v694
        %727 = vst [vmem:[#allocation3 + $0x230] sm:$0xff] %v695
        %728 = vst [vmem:[#allocation3 + $0x278] sm:$0xff] %v696
        %729 = vst [vmem:[#allocation3 + $0x2c0] sm:$0xff] %v697
        %730 = vst [vmem:[#allocation3 + $0x308] sm:$0xff] %v698
        %731 = vst [vmem:[#allocation3 + $0x350] sm:$0xff] %v699
        %732 = vst [vmem:[#allocation3 + $0x398] sm:$0xff] %v700
        %733 = vst [vmem:[#allocation3 + $0x3e0] sm:$0xff] %v701
        %734 = vst [vmem:[#allocation3 + $0x428] sm:$0xff] %v702
        %735 = vst [vmem:[#allocation3 + $0x470] sm:$0xff] %v703
        %736 = vst [vmem:[#allocation3 + $0x4b8] sm:$0xff] %v704
        %737 = vst [vmem:[#allocation3 + $0x500] sm:$0xff] %v705
        %738 = vst [vmem:[#allocation3 + $0x548] sm:$0xff] %v706
        %739 = vst [vmem:[#allocation3 + $0x590] sm:$0xff] %v707
        %740 = vst [vmem:[#allocation3 + $0x5d8] sm:$0xff] %v708
        %741 = vst [vmem:[#allocation3 + $0x620] sm:$0xff] %v709
        %742 = vst [vmem:[#allocation3 + $0x668] sm:$0xff] %v710
        %743 = vst [vmem:[#allocation3 + $0x6b0] sm:$0xff] %v711
        %744 = vst [vmem:[#allocation3 + $0x6f8] sm:$0xff] %v712
        %745 = vst [vmem:[#allocation3 + $0x740] sm:$0xff] %v713
        %746 = vst [vmem:[#allocation3 + $0x788] sm:$0xff] %v714
        %747 = vst [vmem:[#allocation3 + $0x7d0] sm:$0xff] %v715
        %748 = vst [vmem:[#allocation3 + $0x818] sm:$0xff] %v716
        %749 = vst [vmem:[#allocation3 + $0x860] sm:$0xff] %v717
        %750 = vst [vmem:[#allocation3 + $0x8a8] sm:$0xff] %v718
        %751 = vst [vmem:[#allocation3 + $0x8f0] sm:$0xff] %v719
        %v752 = vld [vmem:[%s623 + $0x2] sm:$0xff]
        %v753 = vld [vmem:[%s623 + $0xa] sm:$0xff]
        %v754 = vld [vmem:[%s623 + $0x1a] sm:$0xff]
        %v755 = vld [vmem:[%s623 + $0x22] sm:$0xff]
        %v756 = vld [vmem:[%s623 + $0x32] sm:$0xff]
        %v757 = vld [vmem:[%s623 + $0x3a] sm:$0xff]
        %v758 = vld [vmem:[%s623 + $0x4a] sm:$0xff]
        %v759 = vld [vmem:[%s623 + $0x52] sm:$0xff]
        %v760 = vld [vmem:[%s623 + $0x62] sm:$0xff]
        %v761 = vld [vmem:[%s623 + $0x6a] sm:$0xff]
        %v762 = vld [vmem:[%s623 + $0x7a] sm:$0xff]
        %v763 = vld [vmem:[%s623 + $0x82] sm:$0xff]
        %v764 = vld [vmem:[%s623 + $0x92] sm:$0xff]
        %v765 = vld [vmem:[%s623 + $0x9a] sm:$0xff]
        %v766 = vld [vmem:[%s623 + $0xaa] sm:$0xff]
        %v767 = vld [vmem:[%s623 + $0xb2] sm:$0xff]
        %v768 = vld [vmem:[%s623 + $0xc2] sm:$0xff]
        %v769 = vld [vmem:[%s623 + $0xca] sm:$0xff]
        %v770 = vld [vmem:[%s623 + $0xda] sm:$0xff]
        %v771 = vld [vmem:[%s623 + $0xe2] sm:$0xff]
        %v772 = vld [vmem:[%s623 + $0xf2] sm:$0xff]
        %v773 = vld [vmem:[%s623 + $0xfa] sm:$0xff]
        %v774 = vld [vmem:[%s623 + $0x10a] sm:$0xff]
        %v775 = vld [vmem:[%s623 + $0x112] sm:$0xff]
        %v776 = vld [vmem:[%s623 + $0x122] sm:$0xff]
        %v777 = vld [vmem:[%s623 + $0x12a] sm:$0xff]
        %v778 = vld [vmem:[%s623 + $0x13a] sm:$0xff]
        %v779 = vld [vmem:[%s623 + $0x142] sm:$0xff]
        %v780 = vld [vmem:[%s623 + $0x152] sm:$0xff]
        %v781 = vld [vmem:[%s623 + $0x15a] sm:$0xff]
        %v782 = vld [vmem:[%s623 + $0x16a] sm:$0xff]
        %v783 = vld [vmem:[%s623 + $0x172] sm:$0xff]
        %784 = vst [vmem:[#allocation3 + $0x40] sm:$0xff] %v752
        %785 = vst [vmem:[#allocation3 + $0x88] sm:$0xff] %v753
        %786 = vst [vmem:[#allocation3 + $0xd0] sm:$0xff] %v754
        %787 = vst [vmem:[#allocation3 + $0x118] sm:$0xff] %v755
        %788 = vst [vmem:[#allocation3 + $0x160] sm:$0xff] %v756
        %789 = vst [vmem:[#allocation3 + $0x1a8] sm:$0xff] %v757
        %790 = vst [vmem:[#allocation3 + $0x1f0] sm:$0xff] %v758
        %791 = vst [vmem:[#allocation3 + $0x238] sm:$0xff] %v759
        %792 = vst [vmem:[#allocation3 + $0x280] sm:$0xff] %v760
        %793 = vst [vmem:[#allocation3 + $0x2c8] sm:$0xff] %v761
        %794 = vst [vmem:[#allocation3 + $0x310] sm:$0xff] %v762
        %795 = vst [vmem:[#allocation3 + $0x358] sm:$0xff] %v763
        %796 = vst [vmem:[#allocation3 + $0x3a0] sm:$0xff] %v764
        %797 = vst [vmem:[#allocation3 + $0x3e8] sm:$0xff] %v765
        %798 = vst [vmem:[#allocation3 + $0x430] sm:$0xff] %v766
        %799 = vst [vmem:[#allocation3 + $0x478] sm:$0xff] %v767
        %800 = vst [vmem:[#allocation3 + $0x4c0] sm:$0xff] %v768
        %801 = vst [vmem:[#allocation3 + $0x508] sm:$0xff] %v769
        %802 = vst [vmem:[#allocation3 + $0x550] sm:$0xff] %v770
        %803 = vst [vmem:[#allocation3 + $0x598] sm:$0xff] %v771
        %804 = vst [vmem:[#allocation3 + $0x5e0] sm:$0xff] %v772
        %805 = vst [vmem:[#allocation3 + $0x628] sm:$0xff] %v773
        %806 = vst [vmem:[#allocation3 + $0x670] sm:$0xff] %v774
        %807 = vst [vmem:[#allocation3 + $0x6b8] sm:$0xff] %v775
        %808 = vst [vmem:[#allocation3 + $0x700] sm:$0xff] %v776
        %809 = vst [vmem:[#allocation3 + $0x748] sm:$0xff] %v777
        %810 = vst [vmem:[#allocation3 + $0x790] sm:$0xff] %v778
        %811 = vst [vmem:[#allocation3 + $0x7d8] sm:$0xff] %v779
        %812 = vst [vmem:[#allocation3 + $0x820] sm:$0xff] %v780
        %813 = vst [vmem:[#allocation3 + $0x868] sm:$0xff] %v781
        %814 = vst [vmem:[#allocation3 + $0x8b0] sm:$0xff] %v782
        %815 = vst [vmem:[#allocation3 + $0x8f8] sm:$0xff] %v783
        %v816 = vld [vmem:[#allocation3] sm:$0xff]
        %v817 = vld [vmem:[#allocation3 + $0x8] sm:$0xff]
        %v818 = vld [vmem:[#allocation3 + $0x10] sm:$0xff]
        %v819 = vld [vmem:[#allocation3 + $0x18] sm:$0xff]
        %v820 = vld [vmem:[#allocation3 + $0x20] sm:$0xff]
        %v821 = vld [vmem:[#allocation3 + $0x28] sm:$0xff]
        %v822 = vld [vmem:[#allocation3 + $0x30] sm:$0xff]
        %v823 = vld [vmem:[#allocation3 + $0x38] sm:$0xff]
        %v824 = vld [vmem:[#allocation3 + $0x40] sm:$0xff]
        %v825 = vld [vmem:[#allocation3 + $0x48] sm:$0xff]
        %v826 = vld [vmem:[#allocation3 + $0x50] sm:$0xff]
        %v827 = vld [vmem:[#allocation3 + $0x58] sm:$0xff]
        %v828 = vld [vmem:[#allocation3 + $0x60] sm:$0xff]
        %v829 = vld [vmem:[#allocation3 + $0x68] sm:$0xff]
        %v830 = vld [vmem:[#allocation3 + $0x70] sm:$0xff]
        %v831 = vld [vmem:[#allocation3 + $0x78] sm:$0xff]
        %v832 = vld [vmem:[#allocation3 + $0x80] sm:$0xff]
        %v833 = vld [vmem:[#allocation3 + $0x88] sm:$0xff]
        %v834 = vld [vmem:[#allocation3 + $0x90] sm:$0xff]
        %v835 = vld [vmem:[#allocation3 + $0x98] sm:$0xff]
        %v836 = vld [vmem:[#allocation3 + $0xa0] sm:$0xff]
        %v837 = vld [vmem:[#allocation3 + $0xa8] sm:$0xff]
        %v838 = vld [vmem:[#allocation3 + $0xb0] sm:$0xff]
        %v839 = vld [vmem:[#allocation3 + $0xb8] sm:$0xff]
        %v840 = vld [vmem:[#allocation3 + $0xc0] sm:$0xff]
        %v841 = vld [vmem:[#allocation3 + $0xc8] sm:$0xff]
        %v842 = vld [vmem:[#allocation3 + $0xd0] sm:$0xff]
        %v843 = vld [vmem:[#allocation3 + $0xd8] sm:$0xff]
        %v844 = vld [vmem:[#allocation3 + $0xe0] sm:$0xff]
        %v845 = vld [vmem:[#allocation3 + $0xe8] sm:$0xff]
        %v846 = vld [vmem:[#allocation3 + $0xf0] sm:$0xff]
        %v847 = vld [vmem:[#allocation3 + $0xf8] sm:$0xff]
        %v848 = vld [vmem:[#allocation3 + $0x100] sm:$0xff]
        %v849 = vld [vmem:[#allocation3 + $0x108] sm:$0xff]
        %v850 = vld [vmem:[#allocation3 + $0x110] sm:$0xff]
        %v851 = vld [vmem:[#allocation3 + $0x118] sm:$0xff]
        %v852 = vld [vmem:[#allocation3 + $0x120] sm:$0xff]
        %v853 = vld [vmem:[#allocation3 + $0x128] sm:$0xff]
        %v854 = vld [vmem:[#allocation3 + $0x130] sm:$0xff]
        %v855 = vld [vmem:[#allocation3 + $0x138] sm:$0xff]
        %v856 = vld [vmem:[#allocation3 + $0x140] sm:$0xff]
        %v857 = vld [vmem:[#allocation3 + $0x148] sm:$0xff]
        %v858 = vld [vmem:[#allocation3 + $0x150] sm:$0xff]
        %v859 = vld [vmem:[#allocation3 + $0x158] sm:$0xff]
        %v860 = vld [vmem:[#allocation3 + $0x160] sm:$0xff]
        %v861 = vld [vmem:[#allocation3 + $0x168] sm:$0xff]
        %v862 = vld [vmem:[#allocation3 + $0x170] sm:$0xff]
        %v863 = vld [vmem:[#allocation3 + $0x178] sm:$0xff]
        %v864 = vld [vmem:[#allocation3 + $0x180] sm:$0xff]
        %v865 = vld [vmem:[#allocation3 + $0x188] sm:$0xff]
        %v866 = vld [vmem:[#allocation3 + $0x190] sm:$0xff]
        %v867 = vld [vmem:[#allocation3 + $0x198] sm:$0xff]
        %v868 = vld [vmem:[#allocation3 + $0x1a0] sm:$0xff]
        %v869 = vld [vmem:[#allocation3 + $0x1a8] sm:$0xff]
        %v870 = vld [vmem:[#allocation3 + $0x1b0] sm:$0xff]
        %v871 = vld [vmem:[#allocation3 + $0x1b8] sm:$0xff]
        %v872 = vld [vmem:[#allocation3 + $0x1c0] sm:$0xff]
        %v873 = vld [vmem:[#allocation3 + $0x1c8] sm:$0xff]
        %v874 = vld [vmem:[#allocation3 + $0x1d0] sm:$0xff]
        %v875 = vld [vmem:[#allocation3 + $0x1d8] sm:$0xff]
        %v876 = vld [vmem:[#allocation3 + $0x1e0] sm:$0xff]
        %v877 = vld [vmem:[#allocation3 + $0x1e8] sm:$0xff]
        %v878 = vld [vmem:[#allocation3 + $0x1f0] sm:$0xff]
        %v879 = vld [vmem:[#allocation3 + $0x1f8] sm:$0xff]
        %v880 = vld [vmem:[#allocation3 + $0x200] sm:$0xff]
        %v881 = vld [vmem:[#allocation3 + $0x208] sm:$0xff]
        %v882 = vld [vmem:[#allocation3 + $0x210] sm:$0xff]
        %v883 = vld [vmem:[#allocation3 + $0x218] sm:$0xff]
        %v884 = vld [vmem:[#allocation3 + $0x220] sm:$0xff]
        %v885 = vld [vmem:[#allocation3 + $0x228] sm:$0xff]
        %v886 = vld [vmem:[#allocation3 + $0x230] sm:$0xff]
        %v887 = vld [vmem:[#allocation3 + $0x238] sm:$0xff]
        %v888 = vld [vmem:[#allocation3 + $0x240] sm:$0xff]
        %v889 = vld [vmem:[#allocation3 + $0x248] sm:$0xff]
        %v890 = vld [vmem:[#allocation3 + $0x250] sm:$0xff]
        %v891 = vld [vmem:[#allocation3 + $0x258] sm:$0xff]
        %v892 = vld [vmem:[#allocation3 + $0x260] sm:$0xff]
        %v893 = vld [vmem:[#allocation3 + $0x268] sm:$0xff]
        %v894 = vld [vmem:[#allocation3 + $0x270] sm:$0xff]
        %v895 = vld [vmem:[#allocation3 + $0x278] sm:$0xff]
        %v896 = vld [vmem:[#allocation3 + $0x280] sm:$0xff]
        %v897 = vld [vmem:[#allocation3 + $0x288] sm:$0xff]
        %v898 = vld [vmem:[#allocation3 + $0x290] sm:$0xff]
        %v899 = vld [vmem:[#allocation3 + $0x298] sm:$0xff]
        %v900 = vld [vmem:[#allocation3 + $0x2a0] sm:$0xff]
        %v901 = vld [vmem:[#allocation3 + $0x2a8] sm:$0xff]
        %v902 = vld [vmem:[#allocation3 + $0x2b0] sm:$0xff]
        %v903 = vld [vmem:[#allocation3 + $0x2b8] sm:$0xff]
        %v904 = vld [vmem:[#allocation3 + $0x2c0] sm:$0xff]
        %v905 = vld [vmem:[#allocation3 + $0x2c8] sm:$0xff]
        %v906 = vld [vmem:[#allocation3 + $0x2d0] sm:$0xff]
        %v907 = vld [vmem:[#allocation3 + $0x2d8] sm:$0xff]
        %v908 = vld [vmem:[#allocation3 + $0x2e0] sm:$0xff]
        %v909 = vld [vmem:[#allocation3 + $0x2e8] sm:$0xff]
        %v910 = vld [vmem:[#allocation3 + $0x2f0] sm:$0xff]
        %v911 = vld [vmem:[#allocation3 + $0x2f8] sm:$0xff]
        %v912 = vld [vmem:[#allocation3 + $0x300] sm:$0xff]
        %v913 = vld [vmem:[#allocation3 + $0x308] sm:$0xff]
        %v914 = vld [vmem:[#allocation3 + $0x310] sm:$0xff]
        %v915 = vld [vmem:[#allocation3 + $0x318] sm:$0xff]
        %v916 = vld [vmem:[#allocation3 + $0x320] sm:$0xff]
        %v917 = vld [vmem:[#allocation3 + $0x328] sm:$0xff]
        %v918 = vld [vmem:[#allocation3 + $0x330] sm:$0xff]
        %v919 = vld [vmem:[#allocation3 + $0x338] sm:$0xff]
        %v920 = vld [vmem:[#allocation3 + $0x340] sm:$0xff]
        %v921 = vld [vmem:[#allocation3 + $0x348] sm:$0xff]
        %v922 = vld [vmem:[#allocation3 + $0x350] sm:$0xff]
        %v923 = vld [vmem:[#allocation3 + $0x358] sm:$0xff]
        %v924 = vld [vmem:[#allocation3 + $0x360] sm:$0xff]
        %v925 = vld [vmem:[#allocation3 + $0x368] sm:$0xff]
        %v926 = vld [vmem:[#allocation3 + $0x370] sm:$0xff]
        %v927 = vld [vmem:[#allocation3 + $0x378] sm:$0xff]
        %v928 = vld [vmem:[#allocation3 + $0x380] sm:$0xff]
        %v929 = vld [vmem:[#allocation3 + $0x388] sm:$0xff]
        %v930 = vld [vmem:[#allocation3 + $0x390] sm:$0xff]
        %v931 = vld [vmem:[#allocation3 + $0x398] sm:$0xff]
        %v932 = vld [vmem:[#allocation3 + $0x3a0] sm:$0xff]
        %v933 = vld [vmem:[#allocation3 + $0x3a8] sm:$0xff]
        %v934 = vld [vmem:[#allocation3 + $0x3b0] sm:$0xff]
        %v935 = vld [vmem:[#allocation3 + $0x3b8] sm:$0xff]
        %v936 = vld [vmem:[#allocation3 + $0x3c0] sm:$0xff]
        %v937 = vld [vmem:[#allocation3 + $0x3c8] sm:$0xff]
        %v938 = vld [vmem:[#allocation3 + $0x3d0] sm:$0xff]
        %v939 = vld [vmem:[#allocation3 + $0x3d8] sm:$0xff]
        %v940 = vld [vmem:[#allocation3 + $0x3e0] sm:$0xff]
        %v941 = vld [vmem:[#allocation3 + $0x3e8] sm:$0xff]
        %v942 = vld [vmem:[#allocation3 + $0x3f0] sm:$0xff]
        %v943 = vld [vmem:[#allocation3 + $0x3f8] sm:$0xff]
        %v944 = vld [vmem:[#allocation3 + $0x400] sm:$0xff]
        %v945 = vld [vmem:[#allocation3 + $0x408] sm:$0xff]
        %v946 = vld [vmem:[#allocation3 + $0x410] sm:$0xff]
        %v947 = vld [vmem:[#allocation3 + $0x418] sm:$0xff]
        %v948 = vld [vmem:[#allocation3 + $0x420] sm:$0xff]
        %v949 = vld [vmem:[#allocation3 + $0x428] sm:$0xff]
        %v950 = vld [vmem:[#allocation3 + $0x430] sm:$0xff]
        %v951 = vld [vmem:[#allocation3 + $0x438] sm:$0xff]
        %v952 = vld [vmem:[#allocation3 + $0x440] sm:$0xff]
        %v953 = vld [vmem:[#allocation3 + $0x448] sm:$0xff]
        %v954 = vld [vmem:[#allocation3 + $0x450] sm:$0xff]
        %v955 = vld [vmem:[#allocation3 + $0x458] sm:$0xff]
        %v956 = vld [vmem:[#allocation3 + $0x460] sm:$0xff]
        %v957 = vld [vmem:[#allocation3 + $0x468] sm:$0xff]
        %v958 = vld [vmem:[#allocation3 + $0x470] sm:$0xff]
        %v959 = vld [vmem:[#allocation3 + $0x478] sm:$0xff]
        %v960 = vld [vmem:[#allocation3 + $0x480] sm:$0xff]
        %v961 = vld [vmem:[#allocation3 + $0x488] sm:$0xff]
        %v962 = vld [vmem:[#allocation3 + $0x490] sm:$0xff]
        %v963 = vld [vmem:[#allocation3 + $0x498] sm:$0xff]
        %v964 = vld [vmem:[#allocation3 + $0x4a0] sm:$0xff]
        %v965 = vld [vmem:[#allocation3 + $0x4a8] sm:$0xff]
        %v966 = vld [vmem:[#allocation3 + $0x4b0] sm:$0xff]
        %v967 = vld [vmem:[#allocation3 + $0x4b8] sm:$0xff]
        %v968 = vld [vmem:[#allocation3 + $0x4c0] sm:$0xff]
        %v969 = vld [vmem:[#allocation3 + $0x4c8] sm:$0xff]
        %v970 = vld [vmem:[#allocation3 + $0x4d0] sm:$0xff]
        %v971 = vld [vmem:[#allocation3 + $0x4d8] sm:$0xff]
        %v972 = vld [vmem:[#allocation3 + $0x4e0] sm:$0xff]
        %v973 = vld [vmem:[#allocation3 + $0x4e8] sm:$0xff]
        %v974 = vld [vmem:[#allocation3 + $0x4f0] sm:$0xff]
        %v975 = vld [vmem:[#allocation3 + $0x4f8] sm:$0xff]
        %v976 = vld [vmem:[#allocation3 + $0x500] sm:$0xff]
        %v977 = vld [vmem:[#allocation3 + $0x508] sm:$0xff]
        %v978 = vld [vmem:[#allocation3 + $0x510] sm:$0xff]
        %v979 = vld [vmem:[#allocation3 + $0x518] sm:$0xff]
        %v980 = vld [vmem:[#allocation3 + $0x520] sm:$0xff]
        %v981 = vld [vmem:[#allocation3 + $0x528] sm:$0xff]
        %v982 = vld [vmem:[#allocation3 + $0x530] sm:$0xff]
        %v983 = vld [vmem:[#allocation3 + $0x538] sm:$0xff]
        %v984 = vld [vmem:[#allocation3 + $0x540] sm:$0xff]
        %v985 = vld [vmem:[#allocation3 + $0x548] sm:$0xff]
        %v986 = vld [vmem:[#allocation3 + $0x550] sm:$0xff]
        %v987 = vld [vmem:[#allocation3 + $0x558] sm:$0xff]
        %v988 = vld [vmem:[#allocation3 + $0x560] sm:$0xff]
        %v989 = vld [vmem:[#allocation3 + $0x568] sm:$0xff]
        %v990 = vld [vmem:[#allocation3 + $0x570] sm:$0xff]
        %v991 = vld [vmem:[#allocation3 + $0x578] sm:$0xff]
        %v992 = vld [vmem:[#allocation3 + $0x580] sm:$0xff]
        %v993 = vld [vmem:[#allocation3 + $0x588] sm:$0xff]
        %v994 = vld [vmem:[#allocation3 + $0x590] sm:$0xff]
        %v995 = vld [vmem:[#allocation3 + $0x598] sm:$0xff]
        %v996 = vld [vmem:[#allocation3 + $0x5a0] sm:$0xff]
        %v997 = vld [vmem:[#allocation3 + $0x5a8] sm:$0xff]
        %v998 = vld [vmem:[#allocation3 + $0x5b0] sm:$0xff]
        %v999 = vld [vmem:[#allocation3 + $0x5b8] sm:$0xff]
        %v1000 = vld [vmem:[#allocation3 + $0x5c0] sm:$0xff]
        %v1001 = vld [vmem:[#allocation3 + $0x5c8] sm:$0xff]
        %v1002 = vld [vmem:[#allocation3 + $0x5d0] sm:$0xff]
        %v1003 = vld [vmem:[#allocation3 + $0x5d8] sm:$0xff]
        %v1004 = vld [vmem:[#allocation3 + $0x5e0] sm:$0xff]
        %v1005 = vld [vmem:[#allocation3 + $0x5e8] sm:$0xff]
        %v1006 = vld [vmem:[#allocation3 + $0x5f0] sm:$0xff]
        %v1007 = vld [vmem:[#allocation3 + $0x5f8] sm:$0xff]
        %v1008 = vld [vmem:[#allocation3 + $0x600] sm:$0xff]
        %v1009 = vld [vmem:[#allocation3 + $0x608] sm:$0xff]
        %v1010 = vld [vmem:[#allocation3 + $0x610] sm:$0xff]
        %v1011 = vld [vmem:[#allocation3 + $0x618] sm:$0xff]
        %v1012 = vld [vmem:[#allocation3 + $0x620] sm:$0xff]
        %v1013 = vld [vmem:[#allocation3 + $0x628] sm:$0xff]
        %v1014 = vld [vmem:[#allocation3 + $0x630] sm:$0xff]
        %v1015 = vld [vmem:[#allocation3 + $0x638] sm:$0xff]
        %v1016 = vld [vmem:[#allocation3 + $0x640] sm:$0xff]
        %v1017 = vld [vmem:[#allocation3 + $0x648] sm:$0xff]
        %v1018 = vld [vmem:[#allocation3 + $0x650] sm:$0xff]
        %v1019 = vld [vmem:[#allocation3 + $0x658] sm:$0xff]
        %v1020 = vld [vmem:[#allocation3 + $0x660] sm:$0xff]
        %v1021 = vld [vmem:[#allocation3 + $0x668] sm:$0xff]
        %v1022 = vld [vmem:[#allocation3 + $0x670] sm:$0xff]
        %v1023 = vld [vmem:[#allocation3 + $0x678] sm:$0xff]
        %v1024 = vld [vmem:[#allocation3 + $0x680] sm:$0xff]
        %v1025 = vld [vmem:[#allocation3 + $0x688] sm:$0xff]
        %v1026 = vld [vmem:[#allocation3 + $0x690] sm:$0xff]
        %v1027 = vld [vmem:[#allocation3 + $0x698] sm:$0xff]
        %v1028 = vld [vmem:[#allocation3 + $0x6a0] sm:$0xff]
        %v1029 = vld [vmem:[#allocation3 + $0x6a8] sm:$0xff]
        %v1030 = vld [vmem:[#allocation3 + $0x6b0] sm:$0xff]
        %v1031 = vld [vmem:[#allocation3 + $0x6b8] sm:$0xff]
        %v1032 = vld [vmem:[#allocation3 + $0x6c0] sm:$0xff]
        %v1033 = vld [vmem:[#allocation3 + $0x6c8] sm:$0xff]
        %v1034 = vld [vmem:[#allocation3 + $0x6d0] sm:$0xff]
        %v1035 = vld [vmem:[#allocation3 + $0x6d8] sm:$0xff]
        %v1036 = vld [vmem:[#allocation3 + $0x6e0] sm:$0xff]
        %v1037 = vld [vmem:[#allocation3 + $0x6e8] sm:$0xff]
        %v1038 = vld [vmem:[#allocation3 + $0x6f0] sm:$0xff]
        %v1039 = vld [vmem:[#allocation3 + $0x6f8] sm:$0xff]
        %v1040 = vld [vmem:[#allocation3 + $0x700] sm:$0xff]
        %v1041 = vld [vmem:[#allocation3 + $0x708] sm:$0xff]
        %v1042 = vld [vmem:[#allocation3 + $0x710] sm:$0xff]
        %v1043 = vld [vmem:[#allocation3 + $0x718] sm:$0xff]
        %v1044 = vld [vmem:[#allocation3 + $0x720] sm:$0xff]
        %v1045 = vld [vmem:[#allocation3 + $0x728] sm:$0xff]
        %v1046 = vld [vmem:[#allocation3 + $0x730] sm:$0xff]
        %v1047 = vld [vmem:[#allocation3 + $0x738] sm:$0xff]
        %v1048 = vld [vmem:[#allocation3 + $0x740] sm:$0xff]
        %v1049 = vld [vmem:[#allocation3 + $0x748] sm:$0xff]
        %v1050 = vld [vmem:[#allocation3 + $0x750] sm:$0xff]
        %v1051 = vld [vmem:[#allocation3 + $0x758] sm:$0xff]
        %v1052 = vld [vmem:[#allocation3 + $0x760] sm:$0xff]
        %v1053 = vld [vmem:[#allocation3 + $0x768] sm:$0xff]
        %v1054 = vld [vmem:[#allocation3 + $0x770] sm:$0xff]
        %v1055 = vld [vmem:[#allocation3 + $0x778] sm:$0xff]
        %v1056 = vld [vmem:[#allocation3 + $0x780] sm:$0xff]
        %v1057 = vld [vmem:[#allocation3 + $0x788] sm:$0xff]
        %v1058 = vld [vmem:[#allocation3 + $0x790] sm:$0xff]
        %v1059 = vld [vmem:[#allocation3 + $0x798] sm:$0xff]
        %v1060 = vld [vmem:[#allocation3 + $0x7a0] sm:$0xff]
        %v1061 = vld [vmem:[#allocation3 + $0x7a8] sm:$0xff]
        %v1062 = vld [vmem:[#allocation3 + $0x7b0] sm:$0xff]
        %v1063 = vld [vmem:[#allocation3 + $0x7b8] sm:$0xff]
        %v1064 = vld [vmem:[#allocation3 + $0x7c0] sm:$0xff]
        %v1065 = vld [vmem:[#allocation3 + $0x7c8] sm:$0xff]
        %v1066 = vld [vmem:[#allocation3 + $0x7d0] sm:$0xff]
        %v1067 = vld [vmem:[#allocation3 + $0x7d8] sm:$0xff]
        %v1068 = vld [vmem:[#allocation3 + $0x7e0] sm:$0xff]
        %v1069 = vld [vmem:[#allocation3 + $0x7e8] sm:$0xff]
        %v1070 = vld [vmem:[#allocation3 + $0x7f0] sm:$0xff]
        %v1071 = vld [vmem:[#allocation3 + $0x7f8] sm:$0xff]
        %v1072 = vld [vmem:[#allocation3 + $0x800] sm:$0xff]
        %v1073 = vld [vmem:[#allocation3 + $0x808] sm:$0xff]
        %v1074 = vld [vmem:[#allocation3 + $0x810] sm:$0xff]
        %v1075 = vld [vmem:[#allocation3 + $0x818] sm:$0xff]
        %v1076 = vld [vmem:[#allocation3 + $0x820] sm:$0xff]
        %v1077 = vld [vmem:[#allocation3 + $0x828] sm:$0xff]
        %v1078 = vld [vmem:[#allocation3 + $0x830] sm:$0xff]
        %v1079 = vld [vmem:[#allocation3 + $0x838] sm:$0xff]
        %v1080 = vld [vmem:[#allocation3 + $0x840] sm:$0xff]
        %v1081 = vld [vmem:[#allocation3 + $0x848] sm:$0xff]
        %v1082 = vld [vmem:[#allocation3 + $0x850] sm:$0xff]
        %v1083 = vld [vmem:[#allocation3 + $0x858] sm:$0xff]
        %v1084 = vld [vmem:[#allocation3 + $0x860] sm:$0xff]
        %v1085 = vld [vmem:[#allocation3 + $0x868] sm:$0xff]
        %v1086 = vld [vmem:[#allocation3 + $0x870] sm:$0xff]
        %v1087 = vld [vmem:[#allocation3 + $0x878] sm:$0xff]
        %v1088 = vld [vmem:[#allocation3 + $0x880] sm:$0xff]
        %v1089 = vld [vmem:[#allocation3 + $0x888] sm:$0xff]
        %v1090 = vld [vmem:[#allocation3 + $0x890] sm:$0xff]
        %v1091 = vld [vmem:[#allocation3 + $0x898] sm:$0xff]
        %v1092 = vld [vmem:[#allocation3 + $0x8a0] sm:$0xff]
        %v1093 = vld [vmem:[#allocation3 + $0x8a8] sm:$0xff]
        %v1094 = vld [vmem:[#allocation3 + $0x8b0] sm:$0xff]
        %v1095 = vld [vmem:[#allocation3 + $0x8b8] sm:$0xff]
        %v1096 = vld [vmem:[#allocation3 + $0x8c0] sm:$0xff]
        %v1097 = vld [vmem:[#allocation3 + $0x8c8] sm:$0xff]
        %v1098 = vld [vmem:[#allocation3 + $0x8d0] sm:$0xff]
        %v1099 = vld [vmem:[#allocation3 + $0x8d8] sm:$0xff]
        %v1100 = vld [vmem:[#allocation3 + $0x8e0] sm:$0xff]
        %v1101 = vld [vmem:[#allocation3 + $0x8e8] sm:$0xff]
        %v1102 = vld [vmem:[#allocation3 + $0x8f0] sm:$0xff]
        %v1103 = vld [vmem:[#allocation3 + $0x8f8] sm:$0xff]
        %v1104 = vld [vmem:[%s1] sm:$0xff]
        %v1105 = vld [vmem:[%s1 + $0x8] sm:$0xff]
        %v1106 = vld [vmem:[%s1 + $0x10] sm:$0xff]
        %v1107 = vld [vmem:[%s1 + $0x18] sm:$0xff]
        %v1108 = vld [vmem:[%s1 + $0x20] sm:$0xff]
        %v1109 = vld [vmem:[%s1 + $0x28] sm:$0xff]
        %v1110 = vld [vmem:[%s1 + $0x30] sm:$0xff]
        %v1111 = vld [vmem:[%s1 + $0x38] sm:$0xff]
        %v1112 = vld [vmem:[%s1 + $0x40] sm:$0xff]
        %v1113 = vld [vmem:[%s1 + $0x48] sm:$0xff]
        %v1114 = vld [vmem:[%s1 + $0x50] sm:$0xff]
        %v1115 = vld [vmem:[%s1 + $0x58] sm:$0xff]
        %v1116 = vld [vmem:[%s1 + $0x60] sm:$0xff]
        %v1117 = vld [vmem:[%s1 + $0x68] sm:$0xff]
        %v1118 = vld [vmem:[%s1 + $0x70] sm:$0xff]
        %v1119 = vld [vmem:[%s1 + $0x78] sm:$0xff]
        %v1120 = vld [vmem:[%s1 + $0x80] sm:$0xff]
        %v1121 = vld [vmem:[%s1 + $0x88] sm:$0xff]
        %v1122 = vld [vmem:[%s1 + $0x90] sm:$0xff]
        %v1123 = vld [vmem:[%s1 + $0x98] sm:$0xff]
        %v1124 = vld [vmem:[%s1 + $0xa0] sm:$0xff]
        %v1125 = vld [vmem:[%s1 + $0xa8] sm:$0xff]
        %v1126 = vld [vmem:[%s1 + $0xb0] sm:$0xff]
        %v1127 = vld [vmem:[%s1 + $0xb8] sm:$0xff]
        %v1128 = vld [vmem:[%s1 + $0xc0] sm:$0xff]
        %v1129 = vld [vmem:[%s1 + $0xc8] sm:$0xff]
        %v1130 = vld [vmem:[%s1 + $0xd0] sm:$0xff]
        %v1131 = vld [vmem:[%s1 + $0xd8] sm:$0xff]
        %v1132 = vld [vmem:[%s1 + $0xe0] sm:$0xff]
        %v1133 = vld [vmem:[%s1 + $0xe8] sm:$0xff]
        %v1134 = vld [vmem:[%s1 + $0xf0] sm:$0xff]
        %v1135 = vld [vmem:[%s1 + $0xf8] sm:$0xff]
        %v1136 = vld [vmem:[%s1 + $0x100] sm:$0xff]
        %v1137 = vld [vmem:[%s1 + $0x108] sm:$0xff]
        %v1138 = vld [vmem:[%s1 + $0x110] sm:$0xff]
        %v1139 = vld [vmem:[%s1 + $0x118] sm:$0xff]
        %v1140 = vld [vmem:[%s1 + $0x120] sm:$0xff]
        %v1141 = vld [vmem:[%s1 + $0x128] sm:$0xff]
        %v1142 = vld [vmem:[%s1 + $0x130] sm:$0xff]
        %v1143 = vld [vmem:[%s1 + $0x138] sm:$0xff]
        %v1144 = vld [vmem:[%s1 + $0x140] sm:$0xff]
        %v1145 = vld [vmem:[%s1 + $0x148] sm:$0xff]
        %v1146 = vld [vmem:[%s1 + $0x150] sm:$0xff]
        %v1147 = vld [vmem:[%s1 + $0x158] sm:$0xff]
        %v1148 = vld [vmem:[%s1 + $0x160] sm:$0xff]
        %v1149 = vld [vmem:[%s1 + $0x168] sm:$0xff]
        %v1150 = vld [vmem:[%s1 + $0x170] sm:$0xff]
        %v1151 = vld [vmem:[%s1 + $0x178] sm:$0xff]
        %v1152 = vld [vmem:[%s1 + $0x180] sm:$0xff]
        %v1153 = vld [vmem:[%s1 + $0x188] sm:$0xff]
        %v1154 = vld [vmem:[%s1 + $0x190] sm:$0xff]
        %v1155 = vld [vmem:[%s1 + $0x198] sm:$0xff]
        %v1156 = vld [vmem:[%s1 + $0x1a0] sm:$0xff]
        %v1157 = vld [vmem:[%s1 + $0x1a8] sm:$0xff]
        %v1158 = vld [vmem:[%s1 + $0x1b0] sm:$0xff]
        %v1159 = vld [vmem:[%s1 + $0x1b8] sm:$0xff]
        %v1160 = vld [vmem:[%s1 + $0x1c0] sm:$0xff]
        %v1161 = vld [vmem:[%s1 + $0x1c8] sm:$0xff]
        %v1162 = vld [vmem:[%s1 + $0x1d0] sm:$0xff]
        %v1163 = vld [vmem:[%s1 + $0x1d8] sm:$0xff]
        %v1164 = vld [vmem:[%s1 + $0x1e0] sm:$0xff]
        %v1165 = vld [vmem:[%s1 + $0x1e8] sm:$0xff]
        %v1166 = vld [vmem:[%s1 + $0x1f0] sm:$0xff]
        %v1167 = vld [vmem:[%s1 + $0x1f8] sm:$0xff]
        %v1168 = vld [vmem:[%s1 + $0x200] sm:$0xff]
        %v1169 = vld [vmem:[%s1 + $0x208] sm:$0xff]
        %v1170 = vld [vmem:[%s1 + $0x210] sm:$0xff]
        %v1171 = vld [vmem:[%s1 + $0x218] sm:$0xff]
        %v1172 = vld [vmem:[%s1 + $0x220] sm:$0xff]
        %v1173 = vld [vmem:[%s1 + $0x228] sm:$0xff]
        %v1174 = vld [vmem:[%s1 + $0x230] sm:$0xff]
        %v1175 = vld [vmem:[%s1 + $0x238] sm:$0xff]
        %v1176 = vld [vmem:[%s1 + $0x240] sm:$0xff]
        %v1177 = vld [vmem:[%s1 + $0x248] sm:$0xff]
        %v1178 = vld [vmem:[%s1 + $0x250] sm:$0xff]
        %v1179 = vld [vmem:[%s1 + $0x258] sm:$0xff]
        %v1180 = vld [vmem:[%s1 + $0x260] sm:$0xff]
        %v1181 = vld [vmem:[%s1 + $0x268] sm:$0xff]
        %v1182 = vld [vmem:[%s1 + $0x270] sm:$0xff]
        %v1183 = vld [vmem:[%s1 + $0x278] sm:$0xff]
        %v1184 = vld [vmem:[%s1 + $0x280] sm:$0xff]
        %v1185 = vld [vmem:[%s1 + $0x288] sm:$0xff]
        %v1186 = vld [vmem:[%s1 + $0x290] sm:$0xff]
        %v1187 = vld [vmem:[%s1 + $0x298] sm:$0xff]
        %v1188 = vld [vmem:[%s1 + $0x2a0] sm:$0xff]
        %v1189 = vld [vmem:[%s1 + $0x2a8] sm:$0xff]
        %v1190 = vld [vmem:[%s1 + $0x2b0] sm:$0xff]
        %v1191 = vld [vmem:[%s1 + $0x2b8] sm:$0xff]
        %v1192 = vld [vmem:[%s1 + $0x2c0] sm:$0xff]
        %v1193 = vld [vmem:[%s1 + $0x2c8] sm:$0xff]
        %v1194 = vld [vmem:[%s1 + $0x2d0] sm:$0xff]
        %v1195 = vld [vmem:[%s1 + $0x2d8] sm:$0xff]
        %v1196 = vld [vmem:[%s1 + $0x2e0] sm:$0xff]
        %v1197 = vld [vmem:[%s1 + $0x2e8] sm:$0xff]
        %v1198 = vld [vmem:[%s1 + $0x2f0] sm:$0xff]
        %v1199 = vld [vmem:[%s1 + $0x2f8] sm:$0xff]
        %v1200 = vld [vmem:[%s1 + $0x300] sm:$0xff]
        %v1201 = vld [vmem:[%s1 + $0x308] sm:$0xff]
        %v1202 = vld [vmem:[%s1 + $0x310] sm:$0xff]
        %v1203 = vld [vmem:[%s1 + $0x318] sm:$0xff]
        %v1204 = vld [vmem:[%s1 + $0x320] sm:$0xff]
        %v1205 = vld [vmem:[%s1 + $0x328] sm:$0xff]
        %v1206 = vld [vmem:[%s1 + $0x330] sm:$0xff]
        %v1207 = vld [vmem:[%s1 + $0x338] sm:$0xff]
        %v1208 = vld [vmem:[%s1 + $0x340] sm:$0xff]
        %v1209 = vld [vmem:[%s1 + $0x348] sm:$0xff]
        %v1210 = vld [vmem:[%s1 + $0x350] sm:$0xff]
        %v1211 = vld [vmem:[%s1 + $0x358] sm:$0xff]
        %v1212 = vld [vmem:[%s1 + $0x360] sm:$0xff]
        %v1213 = vld [vmem:[%s1 + $0x368] sm:$0xff]
        %v1214 = vld [vmem:[%s1 + $0x370] sm:$0xff]
        %v1215 = vld [vmem:[%s1 + $0x378] sm:$0xff]
        %v1216 = vld [vmem:[%s1 + $0x380] sm:$0xff]
        %v1217 = vld [vmem:[%s1 + $0x388] sm:$0xff]
        %v1218 = vld [vmem:[%s1 + $0x390] sm:$0xff]
        %v1219 = vld [vmem:[%s1 + $0x398] sm:$0xff]
        %v1220 = vld [vmem:[%s1 + $0x3a0] sm:$0xff]
        %v1221 = vld [vmem:[%s1 + $0x3a8] sm:$0xff]
        %v1222 = vld [vmem:[%s1 + $0x3b0] sm:$0xff]
        %v1223 = vld [vmem:[%s1 + $0x3b8] sm:$0xff]
        %v1224 = vld [vmem:[%s1 + $0x3c0] sm:$0xff]
        %v1225 = vld [vmem:[%s1 + $0x3c8] sm:$0xff]
        %v1226 = vld [vmem:[%s1 + $0x3d0] sm:$0xff]
        %v1227 = vld [vmem:[%s1 + $0x3d8] sm:$0xff]
        %v1228 = vld [vmem:[%s1 + $0x3e0] sm:$0xff]
        %v1229 = vld [vmem:[%s1 + $0x3e8] sm:$0xff]
        %v1230 = vld [vmem:[%s1 + $0x3f0] sm:$0xff]
        %v1231 = vld [vmem:[%s1 + $0x3f8] sm:$0xff]
        %v1232 = vld [vmem:[%s1 + $0x400] sm:$0xff]
        %v1233 = vld [vmem:[%s1 + $0x408] sm:$0xff]
        %v1234 = vld [vmem:[%s1 + $0x410] sm:$0xff]
        %v1235 = vld [vmem:[%s1 + $0x418] sm:$0xff]
        %v1236 = vld [vmem:[%s1 + $0x420] sm:$0xff]
        %v1237 = vld [vmem:[%s1 + $0x428] sm:$0xff]
        %v1238 = vld [vmem:[%s1 + $0x430] sm:$0xff]
        %v1239 = vld [vmem:[%s1 + $0x438] sm:$0xff]
        %v1240 = vld [vmem:[%s1 + $0x440] sm:$0xff]
        %v1241 = vld [vmem:[%s1 + $0x448] sm:$0xff]
        %v1242 = vld [vmem:[%s1 + $0x450] sm:$0xff]
        %v1243 = vld [vmem:[%s1 + $0x458] sm:$0xff]
        %v1244 = vld [vmem:[%s1 + $0x460] sm:$0xff]
        %v1245 = vld [vmem:[%s1 + $0x468] sm:$0xff]
        %v1246 = vld [vmem:[%s1 + $0x470] sm:$0xff]
        %v1247 = vld [vmem:[%s1 + $0x478] sm:$0xff]
        %v1248 = vld [vmem:[%s3] sm:$0x1]
        %v1250 = vlaneseq
        %v1251 = vshrl.u32 %v1250, 7
        %v1252 = vsub.s32 0, %v1251
        %v1253 = vrot.slane %v1248, %v1252
        %1255 = vmatprep.subr.mxu0 0.0
        %1256 = vmatpush1.msra.mxu0 %v1119
        %1257 = vmatprep.subr.mxu0 0.0
        %1258 = vmatpush1.msra.mxu0 %v1118
        %1259 = vmatprep.subr.mxu0 0.0
        %1260 = vmatpush1.msra.mxu0 %v1117
        %1261 = vmatprep.subr.mxu0 0.0
        %1262 = vmatpush1.msra.mxu0 %v1116
        %1263 = vmatprep.subr.mxu0 0.0
        %1264 = vmatpush1.msra.mxu0 %v1115
        %1265 = vmatprep.subr.mxu0 0.0
        %1266 = vmatpush1.msra.mxu0 %v1114
        %1267 = vmatprep.subr.mxu0 0.0
        %1268 = vmatpush1.msra.mxu0 %v1113
        %1269 = vmatprep.subr.mxu0 0.0
        %1270 = vmatpush1.msra.mxu0 %v1112
        %1271 = vmatprep.subr.mxu0 0.0
        %1272 = vmatpush1.msra.mxu0 %v1111
        %1273 = vmatprep.subr.mxu0 0.0
        %1274 = vmatpush1.msra.mxu0 %v1110
        %1275 = vmatprep.subr.mxu0 0.0
        %1276 = vmatpush1.msra.mxu0 %v1109
        %1277 = vmatprep.subr.mxu0 0.0
        %1278 = vmatpush1.msra.mxu0 %v1108
        %1279 = vmatprep.subr.mxu0 0.0
        %1280 = vmatpush1.msra.mxu0 %v1107
        %1281 = vmatprep.subr.mxu0 0.0
        %1282 = vmatpush1.msra.mxu0 %v1106
        %1283 = vmatprep.subr.mxu0 0.0
        %1284 = vmatpush1.msra.mxu0 %v1105
        %1285 = vmatprep.subr.mxu0 0.0
        %1286 = vmatpush1.msra.mxu0 %v1104
        %1287 = vmatprep.subr.mxu0 0.0
        %1288 = vmatpush2.msra.mxu0 %v1135
        %1289 = vmatprep.subr.mxu0 0.0
        %1290 = vmatpush2.msra.mxu0 %v1134
        %1291 = vmatprep.subr.mxu0 0.0
        %1292 = vmatpush2.msra.mxu0 %v1133
        %1293 = vmatprep.subr.mxu0 0.0
        %1294 = vmatpush2.msra.mxu0 %v1132
        %1295 = vmatprep.subr.mxu0 0.0
        %1296 = vmatpush2.msra.mxu0 %v1131
        %1297 = vmatprep.subr.mxu0 0.0
        %1298 = vmatpush2.msra.mxu0 %v1130
        %1299 = vmatprep.subr.mxu0 0.0
        %1300 = vmatpush2.msra.mxu0 %v1129
        %1301 = vmatprep.subr.mxu0 0.0
        %1302 = vmatpush2.msra.mxu0 %v1128
        %1303 = vmatprep.subr.mxu0 0.0
        %1304 = vmatpush2.msra.mxu0 %v1127
        %1305 = vmatprep.subr.mxu0 0.0
        %1306 = vmatpush2.msra.mxu0 %v1126
        %1307 = vmatprep.subr.mxu0 0.0
        %1308 = vmatpush2.msra.mxu0 %v1125
        %1309 = vmatprep.subr.mxu0 0.0
        %1310 = vmatpush2.msra.mxu0 %v1124
        %1311 = vmatprep.subr.mxu0 0.0
        %1312 = vmatpush2.msra.mxu0 %v1123
        %1313 = vmatprep.subr.mxu0 0.0
        %1314 = vmatpush2.msra.mxu0 %v1122
        %1315 = vmatprep.subr.mxu0 0.0
        %1316 = vmatpush2.msra.mxu0 %v1121
        %1317 = vmatprep.subr.mxu0 0.0
        %1318 = vmatpush2.msra.mxu0 %v1120
        %1319 = vmatprep.mubr.f32.mxu0 %v817
        %1320 = vmatmul.mubr.f32.gmra.mxu0 %v816
        %v1321 = vpop.f32.mrf.mxu0
        %v1322 = vadd.f32 %v1253, %v1321
        %v1323 = vpop.f32.mrf.mxu0
        %1324 = vmatprep.mubr.f32.mxu0 %v826
        %1325 = vmatmul.mubr.f32.gmra.mxu0 %v825
        %v1326 = vpop.f32.mrf.mxu0
        %v1327 = vadd.f32 %v1253, %v1326
        %v1328 = vpop.f32.mrf.mxu0
        %1329 = vmatprep.mubr.f32.mxu0 %v835
        %1330 = vmatmul.mubr.f32.gmra.mxu0 %v834
        %v1331 = vpop.f32.mrf.mxu0
        %v1332 = vadd.f32 %v1253, %v1331
        %v1333 = vpop.f32.mrf.mxu0
        %1334 = vmatprep.mubr.f32.mxu0 %v844
        %1335 = vmatmul.mubr.f32.gmra.mxu0 %v843
        %v1336 = vpop.f32.mrf.mxu0
        %v1337 = vadd.f32 %v1253, %v1336
        %v1338 = vpop.f32.mrf.mxu0
        %1339 = vmatprep.mubr.f32.mxu0 %v853
        %1340 = vmatmul.mubr.f32.gmra.mxu0 %v852
        %v1341 = vpop.f32.mrf.mxu0
        %v1342 = vadd.f32 %v1253, %v1341
        %v1343 = vpop.f32.mrf.mxu0
        %1344 = vmatprep.mubr.f32.mxu0 %v862
        %1345 = vmatmul.mubr.f32.gmra.mxu0 %v861
        %v1346 = vpop.f32.mrf.mxu0
        %v1347 = vadd.f32 %v1253, %v1346
        %v1348 = vpop.f32.mrf.mxu0
        %1349 = vmatprep.mubr.f32.mxu0 %v871
        %1350 = vmatmul.mubr.f32.gmra.mxu0 %v870
        %v1351 = vpop.f32.mrf.mxu0
        %v1352 = vadd.f32 %v1253, %v1351
        %v1353 = vpop.f32.mrf.mxu0
        %1354 = vmatprep.mubr.f32.mxu0 %v880
        %1355 = vmatmul.mubr.f32.gmra.mxu0 %v879
        %v1356 = vpop.f32.mrf.mxu0
        %v1357 = vadd.f32 %v1253, %v1356
        %v1358 = vpop.f32.mrf.mxu0
        %1359 = vmatprep.mubr.f32.mxu0 %v889
        %1360 = vmatmul.mubr.f32.gmra.mxu0 %v888
        %v1361 = vpop.f32.mrf.mxu0
        %v1362 = vadd.f32 %v1253, %v1361
        %v1363 = vpop.f32.mrf.mxu0
        %1364 = vmatprep.mubr.f32.mxu0 %v898
        %1365 = vmatmul.mubr.f32.gmra.mxu0 %v897
        %v1366 = vpop.f32.mrf.mxu0
        %v1367 = vadd.f32 %v1253, %v1366
        %v1368 = vpop.f32.mrf.mxu0
        %1369 = vmatprep.mubr.f32.mxu0 %v907
        %1370 = vmatmul.mubr.f32.gmra.mxu0 %v906
        %v1371 = vpop.f32.mrf.mxu0
        %v1372 = vadd.f32 %v1253, %v1371
        %v1373 = vpop.f32.mrf.mxu0
        %1374 = vmatprep.mubr.f32.mxu0 %v916
        %1375 = vmatmul.mubr.f32.gmra.mxu0 %v915
        %v1376 = vpop.f32.mrf.mxu0
        %v1377 = vadd.f32 %v1253, %v1376
        %v1378 = vpop.f32.mrf.mxu0
        %1379 = vmatprep.mubr.f32.mxu0 %v925
        %1380 = vmatmul.mubr.f32.gmra.mxu0 %v924
        %v1381 = vpop.f32.mrf.mxu0
        %v1382 = vadd.f32 %v1253, %v1381
        %v1383 = vpop.f32.mrf.mxu0
        %1384 = vmatprep.mubr.f32.mxu0 %v934
        %1385 = vmatmul.mubr.f32.gmra.mxu0 %v933
        %v1386 = vpop.f32.mrf.mxu0
        %v1387 = vadd.f32 %v1253, %v1386
        %v1388 = vpop.f32.mrf.mxu0
        %1389 = vmatprep.mubr.f32.mxu0 %v943
        %1390 = vmatmul.mubr.f32.gmra.mxu0 %v942
        %v1391 = vpop.f32.mrf.mxu0
        %v1392 = vadd.f32 %v1253, %v1391
        %v1393 = vpop.f32.mrf.mxu0
        %1394 = vmatprep.mubr.f32.mxu0 %v952
        %1395 = vmatmul.mubr.f32.gmra.mxu0 %v951
        %v1396 = vpop.f32.mrf.mxu0
        %v1397 = vadd.f32 %v1253, %v1396
        %v1398 = vpop.f32.mrf.mxu0
        %1399 = vmatprep.mubr.f32.mxu0 %v961
        %1400 = vmatmul.mubr.f32.gmra.mxu0 %v960
        %v1401 = vpop.f32.mrf.mxu0
        %v1402 = vadd.f32 %v1253, %v1401
        %v1403 = vpop.f32.mrf.mxu0
        %1404 = vmatprep.mubr.f32.mxu0 %v970
        %1405 = vmatmul.mubr.f32.gmra.mxu0 %v969
        %v1406 = vpop.f32.mrf.mxu0
        %v1407 = vadd.f32 %v1253, %v1406
        %v1408 = vpop.f32.mrf.mxu0
        %1409 = vmatprep.mubr.f32.mxu0 %v979
        %1410 = vmatmul.mubr.f32.gmra.mxu0 %v978
        %v1411 = vpop.f32.mrf.mxu0
        %v1412 = vadd.f32 %v1253, %v1411
        %v1413 = vpop.f32.mrf.mxu0
        %1414 = vmatprep.mubr.f32.mxu0 %v988
        %1415 = vmatmul.mubr.f32.gmra.mxu0 %v987
        %v1416 = vpop.f32.mrf.mxu0
        %v1417 = vadd.f32 %v1253, %v1416
        %v1418 = vpop.f32.mrf.mxu0
        %1419 = vmatprep.mubr.f32.mxu0 %v997
        %1420 = vmatmul.mubr.f32.gmra.mxu0 %v996
        %v1421 = vpop.f32.mrf.mxu0
        %v1422 = vadd.f32 %v1253, %v1421
        %v1423 = vpop.f32.mrf.mxu0
        %1424 = vmatprep.mubr.f32.mxu0 %v1006
        %1425 = vmatmul.mubr.f32.gmra.mxu0 %v1005
        %v1426 = vpop.f32.mrf.mxu0
        %v1427 = vadd.f32 %v1253, %v1426
        %v1428 = vpop.f32.mrf.mxu0
        %1429 = vmatprep.mubr.f32.mxu0 %v1015
        %1430 = vmatmul.mubr.f32.gmra.mxu0 %v1014
        %v1431 = vpop.f32.mrf.mxu0
        %v1432 = vadd.f32 %v1253, %v1431
        %v1433 = vpop.f32.mrf.mxu0
        %1434 = vmatprep.mubr.f32.mxu0 %v1024
        %1435 = vmatmul.mubr.f32.gmra.mxu0 %v1023
        %v1436 = vpop.f32.mrf.mxu0
        %v1437 = vadd.f32 %v1253, %v1436
        %v1438 = vpop.f32.mrf.mxu0
        %1439 = vmatprep.mubr.f32.mxu0 %v1033
        %1440 = vmatmul.mubr.f32.gmra.mxu0 %v1032
        %v1441 = vpop.f32.mrf.mxu0
        %v1442 = vadd.f32 %v1253, %v1441
        %v1443 = vpop.f32.mrf.mxu0
        %1444 = vmatprep.mubr.f32.mxu0 %v1042
        %1445 = vmatmul.mubr.f32.gmra.mxu0 %v1041
        %v1446 = vpop.f32.mrf.mxu0
        %v1447 = vadd.f32 %v1253, %v1446
        %v1448 = vpop.f32.mrf.mxu0
        %1449 = vmatprep.mubr.f32.mxu0 %v1051
        %1450 = vmatmul.mubr.f32.gmra.mxu0 %v1050
        %v1451 = vpop.f32.mrf.mxu0
        %v1452 = vadd.f32 %v1253, %v1451
        %v1453 = vpop.f32.mrf.mxu0
        %1454 = vmatprep.mubr.f32.mxu0 %v1060
        %1455 = vmatmul.mubr.f32.gmra.mxu0 %v1059
        %v1456 = vpop.f32.mrf.mxu0
        %v1457 = vadd.f32 %v1253, %v1456
        %v1458 = vpop.f32.mrf.mxu0
        %1459 = vmatprep.mubr.f32.mxu0 %v1069
        %1460 = vmatmul.mubr.f32.gmra.mxu0 %v1068
        %v1461 = vpop.f32.mrf.mxu0
        %v1462 = vadd.f32 %v1253, %v1461
        %v1463 = vpop.f32.mrf.mxu0
        %1464 = vmatprep.mubr.f32.mxu0 %v1078
        %1465 = vmatmul.mubr.f32.gmra.mxu0 %v1077
        %v1466 = vpop.f32.mrf.mxu0
        %v1467 = vadd.f32 %v1253, %v1466
        %v1468 = vpop.f32.mrf.mxu0
        %1469 = vmatprep.mubr.f32.mxu0 %v1087
        %1470 = vmatmul.mubr.f32.gmra.mxu0 %v1086
        %v1471 = vpop.f32.mrf.mxu0
        %v1472 = vadd.f32 %v1253, %v1471
        %v1473 = vpop.f32.mrf.mxu0
        %1474 = vmatprep.mubr.f32.mxu0 %v1096
        %1475 = vmatmul.mubr.f32.gmra.mxu0 %v1095
        %v1476 = vpop.f32.mrf.mxu0
        %v1477 = vadd.f32 %v1253, %v1476
        %v1478 = vpop.f32.mrf.mxu0
        %1479 = vdwg.mxu0
        %1480 = vmatprep.subr.mxu0 0.0
        %1481 = vmatpush1.msra.mxu0 %v1151
        %1482 = vmatprep.subr.mxu0 0.0
        %1483 = vmatpush1.msra.mxu0 %v1150
        %1484 = vmatprep.subr.mxu0 0.0
        %1485 = vmatpush1.msra.mxu0 %v1149
        %1486 = vmatprep.subr.mxu0 0.0
        %1487 = vmatpush1.msra.mxu0 %v1148
        %1488 = vmatprep.subr.mxu0 0.0
        %1489 = vmatpush1.msra.mxu0 %v1147
        %1490 = vmatprep.subr.mxu0 0.0
        %1491 = vmatpush1.msra.mxu0 %v1146
        %1492 = vmatprep.subr.mxu0 0.0
        %1493 = vmatpush1.msra.mxu0 %v1145
        %1494 = vmatprep.subr.mxu0 0.0
        %1495 = vmatpush1.msra.mxu0 %v1144
        %1496 = vmatprep.subr.mxu0 0.0
        %1497 = vmatpush1.msra.mxu0 %v1143
        %1498 = vmatprep.subr.mxu0 0.0
        %1499 = vmatpush1.msra.mxu0 %v1142
        %1500 = vmatprep.subr.mxu0 0.0
        %1501 = vmatpush1.msra.mxu0 %v1141
        %1502 = vmatprep.subr.mxu0 0.0
        %1503 = vmatpush1.msra.mxu0 %v1140
        %1504 = vmatprep.subr.mxu0 0.0
        %1505 = vmatpush1.msra.mxu0 %v1139
        %1506 = vmatprep.subr.mxu0 0.0
        %1507 = vmatpush1.msra.mxu0 %v1138
        %1508 = vmatprep.subr.mxu0 0.0
        %1509 = vmatpush1.msra.mxu0 %v1137
        %1510 = vmatprep.subr.mxu0 0.0
        %1511 = vmatpush1.msra.mxu0 %v1136
        %1512 = vmatprep.subr.mxu0 0.0
        %1513 = vmatpush2.msra.mxu0 %v1167
        %1514 = vmatprep.subr.mxu0 0.0
        %1515 = vmatpush2.msra.mxu0 %v1166
        %1516 = vmatprep.subr.mxu0 0.0
        %1517 = vmatpush2.msra.mxu0 %v1165
        %1518 = vmatprep.subr.mxu0 0.0
        %1519 = vmatpush2.msra.mxu0 %v1164
        %1520 = vmatprep.subr.mxu0 0.0
        %1521 = vmatpush2.msra.mxu0 %v1163
        %1522 = vmatprep.subr.mxu0 0.0
        %1523 = vmatpush2.msra.mxu0 %v1162
        %1524 = vmatprep.subr.mxu0 0.0
        %1525 = vmatpush2.msra.mxu0 %v1161
        %1526 = vmatprep.subr.mxu0 0.0
        %1527 = vmatpush2.msra.mxu0 %v1160
        %1528 = vmatprep.subr.mxu0 0.0
        %1529 = vmatpush2.msra.mxu0 %v1159
        %1530 = vmatprep.subr.mxu0 0.0
        %1531 = vmatpush2.msra.mxu0 %v1158
        %1532 = vmatprep.subr.mxu0 0.0
        %1533 = vmatpush2.msra.mxu0 %v1157
        %1534 = vmatprep.subr.mxu0 0.0
        %1535 = vmatpush2.msra.mxu0 %v1156
        %1536 = vmatprep.subr.mxu0 0.0
        %1537 = vmatpush2.msra.mxu0 %v1155
        %1538 = vmatprep.subr.mxu0 0.0
        %1539 = vmatpush2.msra.mxu0 %v1154
        %1540 = vmatprep.subr.mxu0 0.0
        %1541 = vmatpush2.msra.mxu0 %v1153
        %1542 = vmatprep.subr.mxu0 0.0
        %1543 = vmatpush2.msra.mxu0 %v1152
        %1544 = vmatprep.mubr.f32.mxu0 %v819
        %1545 = vmatmul.mubr.f32.gmra.mxu0 %v818
        %v1546 = vpop.f32.mrf.mxu0
        %v1547 = vadd.f32 %v1322, %v1546
        %v1548 = vpop.f32.mrf.mxu0
        %1549 = vmatprep.mubr.f32.mxu0 %v828
        %1550 = vmatmul.mubr.f32.gmra.mxu0 %v827
        %v1551 = vpop.f32.mrf.mxu0
        %v1552 = vadd.f32 %v1327, %v1551
        %v1553 = vpop.f32.mrf.mxu0
        %1554 = vmatprep.mubr.f32.mxu0 %v837
        %1555 = vmatmul.mubr.f32.gmra.mxu0 %v836
        %v1556 = vpop.f32.mrf.mxu0
        %v1557 = vadd.f32 %v1332, %v1556
        %v1558 = vpop.f32.mrf.mxu0
        %1559 = vmatprep.mubr.f32.mxu0 %v846
        %1560 = vmatmul.mubr.f32.gmra.mxu0 %v845
        %v1561 = vpop.f32.mrf.mxu0
        %v1562 = vadd.f32 %v1337, %v1561
        %v1563 = vpop.f32.mrf.mxu0
        %1564 = vmatprep.mubr.f32.mxu0 %v855
        %1565 = vmatmul.mubr.f32.gmra.mxu0 %v854
        %v1566 = vpop.f32.mrf.mxu0
        %v1567 = vadd.f32 %v1342, %v1566
        %v1568 = vpop.f32.mrf.mxu0
        %1569 = vmatprep.mubr.f32.mxu0 %v864
        %1570 = vmatmul.mubr.f32.gmra.mxu0 %v863
        %v1571 = vpop.f32.mrf.mxu0
        %v1572 = vadd.f32 %v1347, %v1571
        %v1573 = vpop.f32.mrf.mxu0
        %1574 = vmatprep.mubr.f32.mxu0 %v873
        %1575 = vmatmul.mubr.f32.gmra.mxu0 %v872
        %v1576 = vpop.f32.mrf.mxu0
        %v1577 = vadd.f32 %v1352, %v1576
        %v1578 = vpop.f32.mrf.mxu0
        %1579 = vmatprep.mubr.f32.mxu0 %v882
        %1580 = vmatmul.mubr.f32.gmra.mxu0 %v881
        %v1581 = vpop.f32.mrf.mxu0
        %v1582 = vadd.f32 %v1357, %v1581
        %v1583 = vpop.f32.mrf.mxu0
        %1584 = vmatprep.mubr.f32.mxu0 %v891
        %1585 = vmatmul.mubr.f32.gmra.mxu0 %v890
        %v1586 = vpop.f32.mrf.mxu0
        %v1587 = vadd.f32 %v1362, %v1586
        %v1588 = vpop.f32.mrf.mxu0
        %1589 = vmatprep.mubr.f32.mxu0 %v900
        %1590 = vmatmul.mubr.f32.gmra.mxu0 %v899
        %v1591 = vpop.f32.mrf.mxu0
        %v1592 = vadd.f32 %v1367, %v1591
        %v1593 = vpop.f32.mrf.mxu0
        %1594 = vmatprep.mubr.f32.mxu0 %v909
        %1595 = vmatmul.mubr.f32.gmra.mxu0 %v908
        %v1596 = vpop.f32.mrf.mxu0
        %v1597 = vadd.f32 %v1372, %v1596
        %v1598 = vpop.f32.mrf.mxu0
        %1599 = vmatprep.mubr.f32.mxu0 %v918
        %1600 = vmatmul.mubr.f32.gmra.mxu0 %v917
        %v1601 = vpop.f32.mrf.mxu0
        %v1602 = vadd.f32 %v1377, %v1601
        %v1603 = vpop.f32.mrf.mxu0
        %1604 = vmatprep.mubr.f32.mxu0 %v927
        %1605 = vmatmul.mubr.f32.gmra.mxu0 %v926
        %v1606 = vpop.f32.mrf.mxu0
        %v1607 = vadd.f32 %v1382, %v1606
        %v1608 = vpop.f32.mrf.mxu0
        %1609 = vmatprep.mubr.f32.mxu0 %v936
        %1610 = vmatmul.mubr.f32.gmra.mxu0 %v935
        %v1611 = vpop.f32.mrf.mxu0
        %v1612 = vadd.f32 %v1387, %v1611
        %v1613 = vpop.f32.mrf.mxu0
        %1614 = vmatprep.mubr.f32.mxu0 %v945
        %1615 = vmatmul.mubr.f32.gmra.mxu0 %v944
        %v1616 = vpop.f32.mrf.mxu0
        %v1617 = vadd.f32 %v1392, %v1616
        %v1618 = vpop.f32.mrf.mxu0
        %1619 = vmatprep.mubr.f32.mxu0 %v954
        %1620 = vmatmul.mubr.f32.gmra.mxu0 %v953
        %v1621 = vpop.f32.mrf.mxu0
        %v1622 = vadd.f32 %v1397, %v1621
        %v1623 = vpop.f32.mrf.mxu0
        %1624 = vmatprep.mubr.f32.mxu0 %v963
        %1625 = vmatmul.mubr.f32.gmra.mxu0 %v962
        %v1626 = vpop.f32.mrf.mxu0
        %v1627 = vadd.f32 %v1402, %v1626
        %v1628 = vpop.f32.mrf.mxu0
        %1629 = vmatprep.mubr.f32.mxu0 %v972
        %1630 = vmatmul.mubr.f32.gmra.mxu0 %v971
        %v1631 = vpop.f32.mrf.mxu0
        %v1632 = vadd.f32 %v1407, %v1631
        %v1633 = vpop.f32.mrf.mxu0
        %1634 = vmatprep.mubr.f32.mxu0 %v981
        %1635 = vmatmul.mubr.f32.gmra.mxu0 %v980
        %v1636 = vpop.f32.mrf.mxu0
        %v1637 = vadd.f32 %v1412, %v1636
        %v1638 = vpop.f32.mrf.mxu0
        %1639 = vmatprep.mubr.f32.mxu0 %v990
        %1640 = vmatmul.mubr.f32.gmra.mxu0 %v989
        %v1641 = vpop.f32.mrf.mxu0
        %v1642 = vadd.f32 %v1417, %v1641
        %v1643 = vpop.f32.mrf.mxu0
        %1644 = vmatprep.mubr.f32.mxu0 %v999
        %1645 = vmatmul.mubr.f32.gmra.mxu0 %v998
        %v1646 = vpop.f32.mrf.mxu0
        %v1647 = vadd.f32 %v1422, %v1646
        %v1648 = vpop.f32.mrf.mxu0
        %1649 = vmatprep.mubr.f32.mxu0 %v1008
        %1650 = vmatmul.mubr.f32.gmra.mxu0 %v1007
        %v1651 = vpop.f32.mrf.mxu0
        %v1652 = vadd.f32 %v1427, %v1651
        %v1653 = vpop.f32.mrf.mxu0
        %1654 = vmatprep.mubr.f32.mxu0 %v1017
        %1655 = vmatmul.mubr.f32.gmra.mxu0 %v1016
        %v1656 = vpop.f32.mrf.mxu0
        %v1657 = vadd.f32 %v1432, %v1656
        %v1658 = vpop.f32.mrf.mxu0
        %1659 = vmatprep.mubr.f32.mxu0 %v1026
        %1660 = vmatmul.mubr.f32.gmra.mxu0 %v1025
        %v1661 = vpop.f32.mrf.mxu0
        %v1662 = vadd.f32 %v1437, %v1661
        %v1663 = vpop.f32.mrf.mxu0
        %1664 = vmatprep.mubr.f32.mxu0 %v1035
        %1665 = vmatmul.mubr.f32.gmra.mxu0 %v1034
        %v1666 = vpop.f32.mrf.mxu0
        %v1667 = vadd.f32 %v1442, %v1666
        %v1668 = vpop.f32.mrf.mxu0
        %1669 = vmatprep.mubr.f32.mxu0 %v1044
        %1670 = vmatmul.mubr.f32.gmra.mxu0 %v1043
        %v1671 = vpop.f32.mrf.mxu0
        %v1672 = vadd.f32 %v1447, %v1671
        %v1673 = vpop.f32.mrf.mxu0
        %1674 = vmatprep.mubr.f32.mxu0 %v1053
        %1675 = vmatmul.mubr.f32.gmra.mxu0 %v1052
        %v1676 = vpop.f32.mrf.mxu0
        %v1677 = vadd.f32 %v1452, %v1676
        %v1678 = vpop.f32.mrf.mxu0
        %1679 = vmatprep.mubr.f32.mxu0 %v1062
        %1680 = vmatmul.mubr.f32.gmra.mxu0 %v1061
        %v1681 = vpop.f32.mrf.mxu0
        %v1682 = vadd.f32 %v1457, %v1681
        %v1683 = vpop.f32.mrf.mxu0
        %1684 = vmatprep.mubr.f32.mxu0 %v1071
        %1685 = vmatmul.mubr.f32.gmra.mxu0 %v1070
        %v1686 = vpop.f32.mrf.mxu0
        %v1687 = vadd.f32 %v1462, %v1686
        %v1688 = vpop.f32.mrf.mxu0
        %1689 = vmatprep.mubr.f32.mxu0 %v1080
        %1690 = vmatmul.mubr.f32.gmra.mxu0 %v1079
        %v1691 = vpop.f32.mrf.mxu0
        %v1692 = vadd.f32 %v1467, %v1691
        %v1693 = vpop.f32.mrf.mxu0
        %1694 = vmatprep.mubr.f32.mxu0 %v1089
        %1695 = vmatmul.mubr.f32.gmra.mxu0 %v1088
        %v1696 = vpop.f32.mrf.mxu0
        %v1697 = vadd.f32 %v1472, %v1696
        %v1698 = vpop.f32.mrf.mxu0
        %1699 = vmatprep.mubr.f32.mxu0 %v1098
        %1700 = vmatmul.mubr.f32.gmra.mxu0 %v1097
        %v1701 = vpop.f32.mrf.mxu0
        %v1702 = vadd.f32 %v1477, %v1701
        %v1703 = vpop.f32.mrf.mxu0
        %1704 = vdwg.mxu0
        %1705 = vmatprep.subr.mxu0 0.0
        %1706 = vmatpush1.msra.mxu0 %v1183
        %1707 = vmatprep.subr.mxu0 0.0
        %1708 = vmatpush1.msra.mxu0 %v1182
        %1709 = vmatprep.subr.mxu0 0.0
        %1710 = vmatpush1.msra.mxu0 %v1181
        %1711 = vmatprep.subr.mxu0 0.0
        %1712 = vmatpush1.msra.mxu0 %v1180
        %1713 = vmatprep.subr.mxu0 0.0
        %1714 = vmatpush1.msra.mxu0 %v1179
        %1715 = vmatprep.subr.mxu0 0.0
        %1716 = vmatpush1.msra.mxu0 %v1178
        %1717 = vmatprep.subr.mxu0 0.0
        %1718 = vmatpush1.msra.mxu0 %v1177
        %1719 = vmatprep.subr.mxu0 0.0
        %1720 = vmatpush1.msra.mxu0 %v1176
        %1721 = vmatprep.subr.mxu0 0.0
        %1722 = vmatpush1.msra.mxu0 %v1175
        %1723 = vmatprep.subr.mxu0 0.0
        %1724 = vmatpush1.msra.mxu0 %v1174
        %1725 = vmatprep.subr.mxu0 0.0
        %1726 = vmatpush1.msra.mxu0 %v1173
        %1727 = vmatprep.subr.mxu0 0.0
        %1728 = vmatpush1.msra.mxu0 %v1172
        %1729 = vmatprep.subr.mxu0 0.0
        %1730 = vmatpush1.msra.mxu0 %v1171
        %1731 = vmatprep.subr.mxu0 0.0
        %1732 = vmatpush1.msra.mxu0 %v1170
        %1733 = vmatprep.subr.mxu0 0.0
        %1734 = vmatpush1.msra.mxu0 %v1169
        %1735 = vmatprep.subr.mxu0 0.0
        %1736 = vmatpush1.msra.mxu0 %v1168
        %1737 = vmatprep.subr.mxu0 0.0
        %1738 = vmatpush2.msra.mxu0 %v1199
        %1739 = vmatprep.subr.mxu0 0.0
        %1740 = vmatpush2.msra.mxu0 %v1198
        %1741 = vmatprep.subr.mxu0 0.0
        %1742 = vmatpush2.msra.mxu0 %v1197
        %1743 = vmatprep.subr.mxu0 0.0
        %1744 = vmatpush2.msra.mxu0 %v1196
        %1745 = vmatprep.subr.mxu0 0.0
        %1746 = vmatpush2.msra.mxu0 %v1195
        %1747 = vmatprep.subr.mxu0 0.0
        %1748 = vmatpush2.msra.mxu0 %v1194
        %1749 = vmatprep.subr.mxu0 0.0
        %1750 = vmatpush2.msra.mxu0 %v1193
        %1751 = vmatprep.subr.mxu0 0.0
        %1752 = vmatpush2.msra.mxu0 %v1192
        %1753 = vmatprep.subr.mxu0 0.0
        %1754 = vmatpush2.msra.mxu0 %v1191
        %1755 = vmatprep.subr.mxu0 0.0
        %1756 = vmatpush2.msra.mxu0 %v1190
        %1757 = vmatprep.subr.mxu0 0.0
        %1758 = vmatpush2.msra.mxu0 %v1189
        %1759 = vmatprep.subr.mxu0 0.0
        %1760 = vmatpush2.msra.mxu0 %v1188
        %1761 = vmatprep.subr.mxu0 0.0
        %1762 = vmatpush2.msra.mxu0 %v1187
        %1763 = vmatprep.subr.mxu0 0.0
        %1764 = vmatpush2.msra.mxu0 %v1186
        %1765 = vmatprep.subr.mxu0 0.0
        %1766 = vmatpush2.msra.mxu0 %v1185
        %1767 = vmatprep.subr.mxu0 0.0
        %1768 = vmatpush2.msra.mxu0 %v1184
        %1769 = vmatprep.mubr.f32.mxu0 %v821
        %1770 = vmatmul.mubr.f32.gmra.mxu0 %v820
        %v1771 = vpop.f32.mrf.mxu0
        %v1772 = vadd.f32 %v1547, %v1771
        %v1773 = vpop.f32.mrf.mxu0
        %1774 = vmatprep.mubr.f32.mxu0 %v830
        %1775 = vmatmul.mubr.f32.gmra.mxu0 %v829
        %v1776 = vpop.f32.mrf.mxu0
        %v1777 = vadd.f32 %v1552, %v1776
        %v1778 = vpop.f32.mrf.mxu0
        %1779 = vmatprep.mubr.f32.mxu0 %v839
        %1780 = vmatmul.mubr.f32.gmra.mxu0 %v838
        %v1781 = vpop.f32.mrf.mxu0
        %v1782 = vadd.f32 %v1557, %v1781
        %v1783 = vpop.f32.mrf.mxu0
        %1784 = vmatprep.mubr.f32.mxu0 %v848
        %1785 = vmatmul.mubr.f32.gmra.mxu0 %v847
        %v1786 = vpop.f32.mrf.mxu0
        %v1787 = vadd.f32 %v1562, %v1786
        %v1788 = vpop.f32.mrf.mxu0
        %1789 = vmatprep.mubr.f32.mxu0 %v857
        %1790 = vmatmul.mubr.f32.gmra.mxu0 %v856
        %v1791 = vpop.f32.mrf.mxu0
        %v1792 = vadd.f32 %v1567, %v1791
        %v1793 = vpop.f32.mrf.mxu0
        %1794 = vmatprep.mubr.f32.mxu0 %v866
        %1795 = vmatmul.mubr.f32.gmra.mxu0 %v865
        %v1796 = vpop.f32.mrf.mxu0
        %v1797 = vadd.f32 %v1572, %v1796
        %v1798 = vpop.f32.mrf.mxu0
        %1799 = vmatprep.mubr.f32.mxu0 %v875
        %1800 = vmatmul.mubr.f32.gmra.mxu0 %v874
        %v1801 = vpop.f32.mrf.mxu0
        %v1802 = vadd.f32 %v1577, %v1801
        %v1803 = vpop.f32.mrf.mxu0
        %1804 = vmatprep.mubr.f32.mxu0 %v884
        %1805 = vmatmul.mubr.f32.gmra.mxu0 %v883
        %v1806 = vpop.f32.mrf.mxu0
        %v1807 = vadd.f32 %v1582, %v1806
        %v1808 = vpop.f32.mrf.mxu0
        %1809 = vmatprep.mubr.f32.mxu0 %v893
        %1810 = vmatmul.mubr.f32.gmra.mxu0 %v892
        %v1811 = vpop.f32.mrf.mxu0
        %v1812 = vadd.f32 %v1587, %v1811
        %v1813 = vpop.f32.mrf.mxu0
        %1814 = vmatprep.mubr.f32.mxu0 %v902
        %1815 = vmatmul.mubr.f32.gmra.mxu0 %v901
        %v1816 = vpop.f32.mrf.mxu0
        %v1817 = vadd.f32 %v1592, %v1816
        %v1818 = vpop.f32.mrf.mxu0
        %1819 = vmatprep.mubr.f32.mxu0 %v911
        %1820 = vmatmul.mubr.f32.gmra.mxu0 %v910
        %v1821 = vpop.f32.mrf.mxu0
        %v1822 = vadd.f32 %v1597, %v1821
        %v1823 = vpop.f32.mrf.mxu0
        %1824 = vmatprep.mubr.f32.mxu0 %v920
        %1825 = vmatmul.mubr.f32.gmra.mxu0 %v919
        %v1826 = vpop.f32.mrf.mxu0
        %v1827 = vadd.f32 %v1602, %v1826
        %v1828 = vpop.f32.mrf.mxu0
        %1829 = vmatprep.mubr.f32.mxu0 %v929
        %1830 = vmatmul.mubr.f32.gmra.mxu0 %v928
        %v1831 = vpop.f32.mrf.mxu0
        %v1832 = vadd.f32 %v1607, %v1831
        %v1833 = vpop.f32.mrf.mxu0
        %1834 = vmatprep.mubr.f32.mxu0 %v938
        %1835 = vmatmul.mubr.f32.gmra.mxu0 %v937
        %v1836 = vpop.f32.mrf.mxu0
        %v1837 = vadd.f32 %v1612, %v1836
        %v1838 = vpop.f32.mrf.mxu0
        %1839 = vmatprep.mubr.f32.mxu0 %v947
        %1840 = vmatmul.mubr.f32.gmra.mxu0 %v946
        %v1841 = vpop.f32.mrf.mxu0
        %v1842 = vadd.f32 %v1617, %v1841
        %v1843 = vpop.f32.mrf.mxu0
        %1844 = vmatprep.mubr.f32.mxu0 %v956
        %1845 = vmatmul.mubr.f32.gmra.mxu0 %v955
        %v1846 = vpop.f32.mrf.mxu0
        %v1847 = vadd.f32 %v1622, %v1846
        %v1848 = vpop.f32.mrf.mxu0
        %1849 = vmatprep.mubr.f32.mxu0 %v965
        %1850 = vmatmul.mubr.f32.gmra.mxu0 %v964
        %v1851 = vpop.f32.mrf.mxu0
        %v1852 = vadd.f32 %v1627, %v1851
        %v1853 = vpop.f32.mrf.mxu0
        %1854 = vmatprep.mubr.f32.mxu0 %v974
        %1855 = vmatmul.mubr.f32.gmra.mxu0 %v973
        %v1856 = vpop.f32.mrf.mxu0
        %v1857 = vadd.f32 %v1632, %v1856
        %v1858 = vpop.f32.mrf.mxu0
        %1859 = vmatprep.mubr.f32.mxu0 %v983
        %1860 = vmatmul.mubr.f32.gmra.mxu0 %v982
        %v1861 = vpop.f32.mrf.mxu0
        %v1862 = vadd.f32 %v1637, %v1861
        %v1863 = vpop.f32.mrf.mxu0
        %1864 = vmatprep.mubr.f32.mxu0 %v992
        %1865 = vmatmul.mubr.f32.gmra.mxu0 %v991
        %v1866 = vpop.f32.mrf.mxu0
        %v1867 = vadd.f32 %v1642, %v1866
        %v1868 = vpop.f32.mrf.mxu0
        %1869 = vmatprep.mubr.f32.mxu0 %v1001
        %1870 = vmatmul.mubr.f32.gmra.mxu0 %v1000
        %v1871 = vpop.f32.mrf.mxu0
        %v1872 = vadd.f32 %v1647, %v1871
        %v1873 = vpop.f32.mrf.mxu0
        %1874 = vmatprep.mubr.f32.mxu0 %v1010
        %1875 = vmatmul.mubr.f32.gmra.mxu0 %v1009
        %v1876 = vpop.f32.mrf.mxu0
        %v1877 = vadd.f32 %v1652, %v1876
        %v1878 = vpop.f32.mrf.mxu0
        %1879 = vmatprep.mubr.f32.mxu0 %v1019
        %1880 = vmatmul.mubr.f32.gmra.mxu0 %v1018
        %v1881 = vpop.f32.mrf.mxu0
        %v1882 = vadd.f32 %v1657, %v1881
        %v1883 = vpop.f32.mrf.mxu0
        %1884 = vmatprep.mubr.f32.mxu0 %v1028
        %1885 = vmatmul.mubr.f32.gmra.mxu0 %v1027
        %v1886 = vpop.f32.mrf.mxu0
        %v1887 = vadd.f32 %v1662, %v1886
        %v1888 = vpop.f32.mrf.mxu0
        %1889 = vmatprep.mubr.f32.mxu0 %v1037
        %1890 = vmatmul.mubr.f32.gmra.mxu0 %v1036
        %v1891 = vpop.f32.mrf.mxu0
        %v1892 = vadd.f32 %v1667, %v1891
        %v1893 = vpop.f32.mrf.mxu0
        %1894 = vmatprep.mubr.f32.mxu0 %v1046
        %1895 = vmatmul.mubr.f32.gmra.mxu0 %v1045
        %v1896 = vpop.f32.mrf.mxu0
        %v1897 = vadd.f32 %v1672, %v1896
        %v1898 = vpop.f32.mrf.mxu0
        %1899 = vmatprep.mubr.f32.mxu0 %v1055
        %1900 = vmatmul.mubr.f32.gmra.mxu0 %v1054
        %v1901 = vpop.f32.mrf.mxu0
        %v1902 = vadd.f32 %v1677, %v1901
        %v1903 = vpop.f32.mrf.mxu0
        %1904 = vmatprep.mubr.f32.mxu0 %v1064
        %1905 = vmatmul.mubr.f32.gmra.mxu0 %v1063
        %v1906 = vpop.f32.mrf.mxu0
        %v1907 = vadd.f32 %v1682, %v1906
        %v1908 = vpop.f32.mrf.mxu0
        %1909 = vmatprep.mubr.f32.mxu0 %v1073
        %1910 = vmatmul.mubr.f32.gmra.mxu0 %v1072
        %v1911 = vpop.f32.mrf.mxu0
        %v1912 = vadd.f32 %v1687, %v1911
        %v1913 = vpop.f32.mrf.mxu0
        %1914 = vmatprep.mubr.f32.mxu0 %v1082
        %1915 = vmatmul.mubr.f32.gmra.mxu0 %v1081
        %v1916 = vpop.f32.mrf.mxu0
        %v1917 = vadd.f32 %v1692, %v1916
        %v1918 = vpop.f32.mrf.mxu0
        %1919 = vmatprep.mubr.f32.mxu0 %v1091
        %1920 = vmatmul.mubr.f32.gmra.mxu0 %v1090
        %v1921 = vpop.f32.mrf.mxu0
        %v1922 = vadd.f32 %v1697, %v1921
        %v1923 = vpop.f32.mrf.mxu0
        %1924 = vmatprep.mubr.f32.mxu0 %v1100
        %1925 = vmatmul.mubr.f32.gmra.mxu0 %v1099
        %v1926 = vpop.f32.mrf.mxu0
        %v1927 = vadd.f32 %v1702, %v1926
        %v1928 = vpop.f32.mrf.mxu0
        %1929 = vdwg.mxu0
        %1930 = vmatprep.subr.mxu0 0.0
        %1931 = vmatpush1.msra.mxu0 %v1215
        %1932 = vmatprep.subr.mxu0 0.0
        %1933 = vmatpush1.msra.mxu0 %v1214
        %1934 = vmatprep.subr.mxu0 0.0
        %1935 = vmatpush1.msra.mxu0 %v1213
        %1936 = vmatprep.subr.mxu0 0.0
        %1937 = vmatpush1.msra.mxu0 %v1212
        %1938 = vmatprep.subr.mxu0 0.0
        %1939 = vmatpush1.msra.mxu0 %v1211
        %1940 = vmatprep.subr.mxu0 0.0
        %1941 = vmatpush1.msra.mxu0 %v1210
        %1942 = vmatprep.subr.mxu0 0.0
        %1943 = vmatpush1.msra.mxu0 %v1209
        %1944 = vmatprep.subr.mxu0 0.0
        %1945 = vmatpush1.msra.mxu0 %v1208
        %1946 = vmatprep.subr.mxu0 0.0
        %1947 = vmatpush1.msra.mxu0 %v1207
        %1948 = vmatprep.subr.mxu0 0.0
        %1949 = vmatpush1.msra.mxu0 %v1206
        %1950 = vmatprep.subr.mxu0 0.0
        %1951 = vmatpush1.msra.mxu0 %v1205
        %1952 = vmatprep.subr.mxu0 0.0
        %1953 = vmatpush1.msra.mxu0 %v1204
        %1954 = vmatprep.subr.mxu0 0.0
        %1955 = vmatpush1.msra.mxu0 %v1203
        %1956 = vmatprep.subr.mxu0 0.0
        %1957 = vmatpush1.msra.mxu0 %v1202
        %1958 = vmatprep.subr.mxu0 0.0
        %1959 = vmatpush1.msra.mxu0 %v1201
        %1960 = vmatprep.subr.mxu0 0.0
        %1961 = vmatpush1.msra.mxu0 %v1200
        %1962 = vmatprep.subr.mxu0 0.0
        %1963 = vmatpush2.msra.mxu0 %v1231
        %1964 = vmatprep.subr.mxu0 0.0
        %1965 = vmatpush2.msra.mxu0 %v1230
        %1966 = vmatprep.subr.mxu0 0.0
        %1967 = vmatpush2.msra.mxu0 %v1229
        %1968 = vmatprep.subr.mxu0 0.0
        %1969 = vmatpush2.msra.mxu0 %v1228
        %1970 = vmatprep.subr.mxu0 0.0
        %1971 = vmatpush2.msra.mxu0 %v1227
        %1972 = vmatprep.subr.mxu0 0.0
        %1973 = vmatpush2.msra.mxu0 %v1226
        %1974 = vmatprep.subr.mxu0 0.0
        %1975 = vmatpush2.msra.mxu0 %v1225
        %1976 = vmatprep.subr.mxu0 0.0
        %1977 = vmatpush2.msra.mxu0 %v1224
        %1978 = vmatprep.subr.mxu0 0.0
        %1979 = vmatpush2.msra.mxu0 %v1223
        %1980 = vmatprep.subr.mxu0 0.0
        %1981 = vmatpush2.msra.mxu0 %v1222
        %1982 = vmatprep.subr.mxu0 0.0
        %1983 = vmatpush2.msra.mxu0 %v1221
        %1984 = vmatprep.subr.mxu0 0.0
        %1985 = vmatpush2.msra.mxu0 %v1220
        %1986 = vmatprep.subr.mxu0 0.0
        %1987 = vmatpush2.msra.mxu0 %v1219
        %1988 = vmatprep.subr.mxu0 0.0
        %1989 = vmatpush2.msra.mxu0 %v1218
        %1990 = vmatprep.subr.mxu0 0.0
        %1991 = vmatpush2.msra.mxu0 %v1217
        %1992 = vmatprep.subr.mxu0 0.0
        %1993 = vmatpush2.msra.mxu0 %v1216
        %1994 = vmatprep.mubr.f32.mxu0 %v823
        %1995 = vmatmul.mubr.f32.gmra.mxu0 %v822
        %v1996 = vpop.f32.mrf.mxu0
        %v1997 = vadd.f32 %v1772, %v1996
        %v1998 = vpop.f32.mrf.mxu0
        %1999 = vmatprep.mubr.f32.mxu0 %v832
        %2000 = vmatmul.mubr.f32.gmra.mxu0 %v831
        %v2001 = vpop.f32.mrf.mxu0
        %v2002 = vadd.f32 %v1777, %v2001
        %v2003 = vpop.f32.mrf.mxu0
        %2004 = vmatprep.mubr.f32.mxu0 %v841
        %2005 = vmatmul.mubr.f32.gmra.mxu0 %v840
        %v2006 = vpop.f32.mrf.mxu0
        %v2007 = vadd.f32 %v1782, %v2006
        %v2008 = vpop.f32.mrf.mxu0
        %2009 = vmatprep.mubr.f32.mxu0 %v850
        %2010 = vmatmul.mubr.f32.gmra.mxu0 %v849
        %v2011 = vpop.f32.mrf.mxu0
        %v2012 = vadd.f32 %v1787, %v2011
        %v2013 = vpop.f32.mrf.mxu0
        %2014 = vmatprep.mubr.f32.mxu0 %v859
        %2015 = vmatmul.mubr.f32.gmra.mxu0 %v858
        %v2016 = vpop.f32.mrf.mxu0
        %v2017 = vadd.f32 %v1792, %v2016
        %v2018 = vpop.f32.mrf.mxu0
        %2019 = vmatprep.mubr.f32.mxu0 %v868
        %2020 = vmatmul.mubr.f32.gmra.mxu0 %v867
        %v2021 = vpop.f32.mrf.mxu0
        %v2022 = vadd.f32 %v1797, %v2021
        %v2023 = vpop.f32.mrf.mxu0
        %2024 = vmatprep.mubr.f32.mxu0 %v877
        %2025 = vmatmul.mubr.f32.gmra.mxu0 %v876
        %v2026 = vpop.f32.mrf.mxu0
        %v2027 = vadd.f32 %v1802, %v2026
        %v2028 = vpop.f32.mrf.mxu0
        %2029 = vmatprep.mubr.f32.mxu0 %v886
        %2030 = vmatmul.mubr.f32.gmra.mxu0 %v885
        %v2031 = vpop.f32.mrf.mxu0
        %v2032 = vadd.f32 %v1807, %v2031
        %v2033 = vpop.f32.mrf.mxu0
        %2034 = vmatprep.mubr.f32.mxu0 %v895
        %2035 = vmatmul.mubr.f32.gmra.mxu0 %v894
        %v2036 = vpop.f32.mrf.mxu0
        %v2037 = vadd.f32 %v1812, %v2036
        %v2038 = vpop.f32.mrf.mxu0
        %2039 = vmatprep.mubr.f32.mxu0 %v904
        %2040 = vmatmul.mubr.f32.gmra.mxu0 %v903
        %v2041 = vpop.f32.mrf.mxu0
        %v2042 = vadd.f32 %v1817, %v2041
        %v2043 = vpop.f32.mrf.mxu0
        %2044 = vmatprep.mubr.f32.mxu0 %v913
        %2045 = vmatmul.mubr.f32.gmra.mxu0 %v912
        %v2046 = vpop.f32.mrf.mxu0
        %v2047 = vadd.f32 %v1822, %v2046
        %v2048 = vpop.f32.mrf.mxu0
        %2049 = vmatprep.mubr.f32.mxu0 %v922
        %2050 = vmatmul.mubr.f32.gmra.mxu0 %v921
        %v2051 = vpop.f32.mrf.mxu0
        %v2052 = vadd.f32 %v1827, %v2051
        %v2053 = vpop.f32.mrf.mxu0
        %2054 = vmatprep.mubr.f32.mxu0 %v931
        %2055 = vmatmul.mubr.f32.gmra.mxu0 %v930
        %v2056 = vpop.f32.mrf.mxu0
        %v2057 = vadd.f32 %v1832, %v2056
        %v2058 = vpop.f32.mrf.mxu0
        %2059 = vmatprep.mubr.f32.mxu0 %v940
        %2060 = vmatmul.mubr.f32.gmra.mxu0 %v939
        %v2061 = vpop.f32.mrf.mxu0
        %v2062 = vadd.f32 %v1837, %v2061
        %v2063 = vpop.f32.mrf.mxu0
        %2064 = vmatprep.mubr.f32.mxu0 %v949
        %2065 = vmatmul.mubr.f32.gmra.mxu0 %v948
        %v2066 = vpop.f32.mrf.mxu0
        %v2067 = vadd.f32 %v1842, %v2066
        %v2068 = vpop.f32.mrf.mxu0
        %2069 = vmatprep.mubr.f32.mxu0 %v958
        %2070 = vmatmul.mubr.f32.gmra.mxu0 %v957
        %v2071 = vpop.f32.mrf.mxu0
        %v2072 = vadd.f32 %v1847, %v2071
        %v2073 = vpop.f32.mrf.mxu0
        %2074 = vmatprep.mubr.f32.mxu0 %v967
        %2075 = vmatmul.mubr.f32.gmra.mxu0 %v966
        %v2076 = vpop.f32.mrf.mxu0
        %v2077 = vadd.f32 %v1852, %v2076
        %v2078 = vpop.f32.mrf.mxu0
        %2079 = vmatprep.mubr.f32.mxu0 %v976
        %2080 = vmatmul.mubr.f32.gmra.mxu0 %v975
        %v2081 = vpop.f32.mrf.mxu0
        %v2082 = vadd.f32 %v1857, %v2081
        %v2083 = vpop.f32.mrf.mxu0
        %2084 = vmatprep.mubr.f32.mxu0 %v985
        %2085 = vmatmul.mubr.f32.gmra.mxu0 %v984
        %v2086 = vpop.f32.mrf.mxu0
        %v2087 = vadd.f32 %v1862, %v2086
        %v2088 = vpop.f32.mrf.mxu0
        %2089 = vmatprep.mubr.f32.mxu0 %v994
        %2090 = vmatmul.mubr.f32.gmra.mxu0 %v993
        %v2091 = vpop.f32.mrf.mxu0
        %v2092 = vadd.f32 %v1867, %v2091
        %v2093 = vpop.f32.mrf.mxu0
        %2094 = vmatprep.mubr.f32.mxu0 %v1003
        %2095 = vmatmul.mubr.f32.gmra.mxu0 %v1002
        %v2096 = vpop.f32.mrf.mxu0
        %v2097 = vadd.f32 %v1872, %v2096
        %v2098 = vpop.f32.mrf.mxu0
        %2099 = vmatprep.mubr.f32.mxu0 %v1012
        %2100 = vmatmul.mubr.f32.gmra.mxu0 %v1011
        %v2101 = vpop.f32.mrf.mxu0
        %v2102 = vadd.f32 %v1877, %v2101
        %v2103 = vpop.f32.mrf.mxu0
        %2104 = vmatprep.mubr.f32.mxu0 %v1021
        %2105 = vmatmul.mubr.f32.gmra.mxu0 %v1020
        %v2106 = vpop.f32.mrf.mxu0
        %v2107 = vadd.f32 %v1882, %v2106
        %v2108 = vpop.f32.mrf.mxu0
        %2109 = vmatprep.mubr.f32.mxu0 %v1030
        %2110 = vmatmul.mubr.f32.gmra.mxu0 %v1029
        %v2111 = vpop.f32.mrf.mxu0
        %v2112 = vadd.f32 %v1887, %v2111
        %v2113 = vpop.f32.mrf.mxu0
        %2114 = vmatprep.mubr.f32.mxu0 %v1039
        %2115 = vmatmul.mubr.f32.gmra.mxu0 %v1038
        %v2116 = vpop.f32.mrf.mxu0
        %v2117 = vadd.f32 %v1892, %v2116
        %v2118 = vpop.f32.mrf.mxu0
        %2119 = vmatprep.mubr.f32.mxu0 %v1048
        %2120 = vmatmul.mubr.f32.gmra.mxu0 %v1047
        %v2121 = vpop.f32.mrf.mxu0
        %v2122 = vadd.f32 %v1897, %v2121
        %v2123 = vpop.f32.mrf.mxu0
        %2124 = vmatprep.mubr.f32.mxu0 %v1057
        %2125 = vmatmul.mubr.f32.gmra.mxu0 %v1056
        %v2126 = vpop.f32.mrf.mxu0
        %v2127 = vadd.f32 %v1902, %v2126
        %v2128 = vpop.f32.mrf.mxu0
        %2129 = vmatprep.mubr.f32.mxu0 %v1066
        %2130 = vmatmul.mubr.f32.gmra.mxu0 %v1065
        %v2131 = vpop.f32.mrf.mxu0
        %v2132 = vadd.f32 %v1907, %v2131
        %v2133 = vpop.f32.mrf.mxu0
        %2134 = vmatprep.mubr.f32.mxu0 %v1075
        %2135 = vmatmul.mubr.f32.gmra.mxu0 %v1074
        %v2136 = vpop.f32.mrf.mxu0
        %v2137 = vadd.f32 %v1912, %v2136
        %v2138 = vpop.f32.mrf.mxu0
        %2139 = vmatprep.mubr.f32.mxu0 %v1084
        %2140 = vmatmul.mubr.f32.gmra.mxu0 %v1083
        %v2141 = vpop.f32.mrf.mxu0
        %v2142 = vadd.f32 %v1917, %v2141
        %v2143 = vpop.f32.mrf.mxu0
        %2144 = vmatprep.mubr.f32.mxu0 %v1093
        %2145 = vmatmul.mubr.f32.gmra.mxu0 %v1092
        %v2146 = vpop.f32.mrf.mxu0
        %v2147 = vadd.f32 %v1922, %v2146
        %v2148 = vpop.f32.mrf.mxu0
        %2149 = vmatprep.mubr.f32.mxu0 %v1102
        %2150 = vmatmul.mubr.f32.gmra.mxu0 %v1101
        %v2151 = vpop.f32.mrf.mxu0
        %v2152 = vadd.f32 %v1927, %v2151
        %v2153 = vpop.f32.mrf.mxu0
        %2154 = vdwg.mxu0
        %2155 = vmatprep.subr.mxu0 0.0
        %2156 = vmatpush1.msra.mxu0 %v1247
        %2157 = vmatprep.subr.mxu0 0.0
        %2158 = vmatpush1.msra.mxu0 %v1246
        %2159 = vmatprep.subr.mxu0 0.0
        %2160 = vmatpush1.msra.mxu0 %v1245
        %2161 = vmatprep.subr.mxu0 0.0
        %2162 = vmatpush1.msra.mxu0 %v1244
        %2163 = vmatprep.subr.mxu0 0.0
        %2164 = vmatpush1.msra.mxu0 %v1243
        %2165 = vmatprep.subr.mxu0 0.0
        %2166 = vmatpush1.msra.mxu0 %v1242
        %2167 = vmatprep.subr.mxu0 0.0
        %2168 = vmatpush1.msra.mxu0 %v1241
        %2169 = vmatprep.subr.mxu0 0.0
        %2170 = vmatpush1.msra.mxu0 %v1240
        %2171 = vmatprep.subr.mxu0 0.0
        %2172 = vmatpush1.msra.mxu0 %v1239
        %2173 = vmatprep.subr.mxu0 0.0
        %2174 = vmatpush1.msra.mxu0 %v1238
        %2175 = vmatprep.subr.mxu0 0.0
        %2176 = vmatpush1.msra.mxu0 %v1237
        %2177 = vmatprep.subr.mxu0 0.0
        %2178 = vmatpush1.msra.mxu0 %v1236
        %2179 = vmatprep.subr.mxu0 0.0
        %2180 = vmatpush1.msra.mxu0 %v1235
        %2181 = vmatprep.subr.mxu0 0.0
        %2182 = vmatpush1.msra.mxu0 %v1234
        %2183 = vmatprep.subr.mxu0 0.0
        %2184 = vmatpush1.msra.mxu0 %v1233
        %2185 = vmatprep.subr.mxu0 0.0
        %2186 = vmatpush1.msra.mxu0 %v1232
        %2187 = vmatprep.subr.mxu0 0.0
        %2188 = vmatpush2.msra.mxu0 0.0
        %2189 = vmatprep.subr.mxu0 0.0
        %2190 = vmatpush2.msra.mxu0 0.0
        %2191 = vmatprep.subr.mxu0 0.0
        %2192 = vmatpush2.msra.mxu0 0.0
        %2193 = vmatprep.subr.mxu0 0.0
        %2194 = vmatpush2.msra.mxu0 0.0
        %2195 = vmatprep.subr.mxu0 0.0
        %2196 = vmatpush2.msra.mxu0 0.0
        %2197 = vmatprep.subr.mxu0 0.0
        %2198 = vmatpush2.msra.mxu0 0.0
        %2199 = vmatprep.subr.mxu0 0.0
        %2200 = vmatpush2.msra.mxu0 0.0
        %2201 = vmatprep.subr.mxu0 0.0
        %2202 = vmatpush2.msra.mxu0 0.0
        %2203 = vmatprep.subr.mxu0 0.0
        %2204 = vmatpush2.msra.mxu0 0.0
        %2205 = vmatprep.subr.mxu0 0.0
        %2206 = vmatpush2.msra.mxu0 0.0
        %2207 = vmatprep.subr.mxu0 0.0
        %2208 = vmatpush2.msra.mxu0 0.0
        %2209 = vmatprep.subr.mxu0 0.0
        %2210 = vmatpush2.msra.mxu0 0.0
        %2211 = vmatprep.subr.mxu0 0.0
        %2212 = vmatpush2.msra.mxu0 0.0
        %2213 = vmatprep.subr.mxu0 0.0
        %2214 = vmatpush2.msra.mxu0 0.0
        %2215 = vmatprep.subr.mxu0 0.0
        %2216 = vmatpush2.msra.mxu0 0.0
        %2217 = vmatprep.subr.mxu0 0.0
        %2218 = vmatpush2.msra.mxu0 0.0
        %2219 = vmatprep.mubr.f32.mxu0 0.0
        %2220 = vmatmul.mubr.f32.gmra.mxu0 %v824
        %v2221 = vpop.f32.mrf.mxu0
        %v2222 = vadd.f32 %v1997, %v2221
        %v2223 = vpop.f32.mrf.mxu0
        %2224 = vmatprep.mubr.f32.mxu0 0.0
        %2225 = vmatmul.mubr.f32.gmra.mxu0 %v833
        %v2226 = vpop.f32.mrf.mxu0
        %v2227 = vadd.f32 %v2002, %v2226
        %v2228 = vpop.f32.mrf.mxu0
        %2229 = vmatprep.mubr.f32.mxu0 0.0
        %2230 = vmatmul.mubr.f32.gmra.mxu0 %v842
        %v2231 = vpop.f32.mrf.mxu0
        %v2232 = vadd.f32 %v2007, %v2231
        %v2233 = vpop.f32.mrf.mxu0
        %2234 = vmatprep.mubr.f32.mxu0 0.0
        %2235 = vmatmul.mubr.f32.gmra.mxu0 %v851
        %v2236 = vpop.f32.mrf.mxu0
        %v2237 = vadd.f32 %v2012, %v2236
        %v2238 = vpop.f32.mrf.mxu0
        %2239 = vmatprep.mubr.f32.mxu0 0.0
        %2240 = vmatmul.mubr.f32.gmra.mxu0 %v860
        %v2241 = vpop.f32.mrf.mxu0
        %v2242 = vadd.f32 %v2017, %v2241
        %v2243 = vpop.f32.mrf.mxu0
        %2244 = vmatprep.mubr.f32.mxu0 0.0
        %2245 = vmatmul.mubr.f32.gmra.mxu0 %v869
        %v2246 = vpop.f32.mrf.mxu0
        %v2247 = vadd.f32 %v2022, %v2246
        %v2248 = vpop.f32.mrf.mxu0
        %2249 = vmatprep.mubr.f32.mxu0 0.0
        %2250 = vmatmul.mubr.f32.gmra.mxu0 %v878
        %v2251 = vpop.f32.mrf.mxu0
        %v2252 = vadd.f32 %v2027, %v2251
        %v2253 = vpop.f32.mrf.mxu0
        %2254 = vmatprep.mubr.f32.mxu0 0.0
        %2255 = vmatmul.mubr.f32.gmra.mxu0 %v887
        %v2256 = vpop.f32.mrf.mxu0
        %v2257 = vadd.f32 %v2032, %v2256
        %v2258 = vpop.f32.mrf.mxu0
        %2259 = vmatprep.mubr.f32.mxu0 0.0
        %2260 = vmatmul.mubr.f32.gmra.mxu0 %v896
        %v2261 = vpop.f32.mrf.mxu0
        %v2262 = vadd.f32 %v2037, %v2261
        %v2263 = vpop.f32.mrf.mxu0
        %2264 = vmatprep.mubr.f32.mxu0 0.0
        %2265 = vmatmul.mubr.f32.gmra.mxu0 %v905
        %v2266 = vpop.f32.mrf.mxu0
        %v2267 = vadd.f32 %v2042, %v2266
        %v2268 = vpop.f32.mrf.mxu0
        %2269 = vmatprep.mubr.f32.mxu0 0.0
        %2270 = vmatmul.mubr.f32.gmra.mxu0 %v914
        %v2271 = vpop.f32.mrf.mxu0
        %v2272 = vadd.f32 %v2047, %v2271
        %v2273 = vpop.f32.mrf.mxu0
        %2274 = vmatprep.mubr.f32.mxu0 0.0
        %2275 = vmatmul.mubr.f32.gmra.mxu0 %v923
        %v2276 = vpop.f32.mrf.mxu0
        %v2277 = vadd.f32 %v2052, %v2276
        %v2278 = vpop.f32.mrf.mxu0
        %2279 = vmatprep.mubr.f32.mxu0 0.0
        %2280 = vmatmul.mubr.f32.gmra.mxu0 %v932
        %v2281 = vpop.f32.mrf.mxu0
        %v2282 = vadd.f32 %v2057, %v2281
        %v2283 = vpop.f32.mrf.mxu0
        %2284 = vmatprep.mubr.f32.mxu0 0.0
        %2285 = vmatmul.mubr.f32.gmra.mxu0 %v941
        %v2286 = vpop.f32.mrf.mxu0
        %v2287 = vadd.f32 %v2062, %v2286
        %v2288 = vpop.f32.mrf.mxu0
        %2289 = vmatprep.mubr.f32.mxu0 0.0
        %2290 = vmatmul.mubr.f32.gmra.mxu0 %v950
        %v2291 = vpop.f32.mrf.mxu0
        %v2292 = vadd.f32 %v2067, %v2291
        %v2293 = vpop.f32.mrf.mxu0
        %2294 = vmatprep.mubr.f32.mxu0 0.0
        %2295 = vmatmul.mubr.f32.gmra.mxu0 %v959
        %v2296 = vpop.f32.mrf.mxu0
        %v2297 = vadd.f32 %v2072, %v2296
        %v2298 = vpop.f32.mrf.mxu0
        %2299 = vmatprep.mubr.f32.mxu0 0.0
        %2300 = vmatmul.mubr.f32.gmra.mxu0 %v968
        %v2301 = vpop.f32.mrf.mxu0
        %v2302 = vadd.f32 %v2077, %v2301
        %v2303 = vpop.f32.mrf.mxu0
        %2304 = vmatprep.mubr.f32.mxu0 0.0
        %2305 = vmatmul.mubr.f32.gmra.mxu0 %v977
        %v2306 = vpop.f32.mrf.mxu0
        %v2307 = vadd.f32 %v2082, %v2306
        %v2308 = vpop.f32.mrf.mxu0
        %2309 = vmatprep.mubr.f32.mxu0 0.0
        %2310 = vmatmul.mubr.f32.gmra.mxu0 %v986
        %v2311 = vpop.f32.mrf.mxu0
        %v2312 = vadd.f32 %v2087, %v2311
        %v2313 = vpop.f32.mrf.mxu0
        %2314 = vmatprep.mubr.f32.mxu0 0.0
        %2315 = vmatmul.mubr.f32.gmra.mxu0 %v995
        %v2316 = vpop.f32.mrf.mxu0
        %v2317 = vadd.f32 %v2092, %v2316
        %v2318 = vpop.f32.mrf.mxu0
        %2319 = vmatprep.mubr.f32.mxu0 0.0
        %2320 = vmatmul.mubr.f32.gmra.mxu0 %v1004
        %v2321 = vpop.f32.mrf.mxu0
        %v2322 = vadd.f32 %v2097, %v2321
        %v2323 = vpop.f32.mrf.mxu0
        %2324 = vmatprep.mubr.f32.mxu0 0.0
        %2325 = vmatmul.mubr.f32.gmra.mxu0 %v1013
        %v2326 = vpop.f32.mrf.mxu0
        %v2327 = vadd.f32 %v2102, %v2326
        %v2328 = vpop.f32.mrf.mxu0
        %2329 = vmatprep.mubr.f32.mxu0 0.0
        %2330 = vmatmul.mubr.f32.gmra.mxu0 %v1022
        %v2331 = vpop.f32.mrf.mxu0
        %v2332 = vadd.f32 %v2107, %v2331
        %v2333 = vpop.f32.mrf.mxu0
        %2334 = vmatprep.mubr.f32.mxu0 0.0
        %2335 = vmatmul.mubr.f32.gmra.mxu0 %v1031
        %v2336 = vpop.f32.mrf.mxu0
        %v2337 = vadd.f32 %v2112, %v2336
        %v2338 = vpop.f32.mrf.mxu0
        %2339 = vmatprep.mubr.f32.mxu0 0.0
        %2340 = vmatmul.mubr.f32.gmra.mxu0 %v1040
        %v2341 = vpop.f32.mrf.mxu0
        %v2342 = vadd.f32 %v2117, %v2341
        %v2343 = vpop.f32.mrf.mxu0
        %2344 = vmatprep.mubr.f32.mxu0 0.0
        %2345 = vmatmul.mubr.f32.gmra.mxu0 %v1049
        %v2346 = vpop.f32.mrf.mxu0
        %v2347 = vadd.f32 %v2122, %v2346
        %v2348 = vpop.f32.mrf.mxu0
        %2349 = vmatprep.mubr.f32.mxu0 0.0
        %2350 = vmatmul.mubr.f32.gmra.mxu0 %v1058
        %v2351 = vpop.f32.mrf.mxu0
        %v2352 = vadd.f32 %v2127, %v2351
        %v2353 = vpop.f32.mrf.mxu0
        %2354 = vmatprep.mubr.f32.mxu0 0.0
        %2355 = vmatmul.mubr.f32.gmra.mxu0 %v1067
        %v2356 = vpop.f32.mrf.mxu0
        %v2357 = vadd.f32 %v2132, %v2356
        %v2358 = vpop.f32.mrf.mxu0
        %2359 = vmatprep.mubr.f32.mxu0 0.0
        %2360 = vmatmul.mubr.f32.gmra.mxu0 %v1076
        %v2361 = vpop.f32.mrf.mxu0
        %v2362 = vadd.f32 %v2137, %v2361
        %v2363 = vpop.f32.mrf.mxu0
        %2364 = vmatprep.mubr.f32.mxu0 0.0
        %2365 = vmatmul.mubr.f32.gmra.mxu0 %v1085
        %v2366 = vpop.f32.mrf.mxu0
        %v2367 = vadd.f32 %v2142, %v2366
        %v2368 = vpop.f32.mrf.mxu0
        %2369 = vmatprep.mubr.f32.mxu0 0.0
        %2370 = vmatmul.mubr.f32.gmra.mxu0 %v1094
        %v2371 = vpop.f32.mrf.mxu0
        %v2372 = vadd.f32 %v2147, %v2371
        %v2373 = vpop.f32.mrf.mxu0
        %2374 = vmatprep.mubr.f32.mxu0 0.0
        %2375 = vmatmul.mubr.f32.gmra.mxu0 %v1103
        %v2376 = vpop.f32.mrf.mxu0
        %v2377 = vadd.f32 %v2152, %v2376
        %v2378 = vpop.f32.mrf.mxu0
        %2379 = vdwg.mxu0
        %v2380 = vmax.f32 %v2222, 0.0
        %v2381 = vmax.f32 %v2227, 0.0
        %v2382 = vmax.f32 %v2232, 0.0
        %v2383 = vmax.f32 %v2237, 0.0
        %v2384 = vmax.f32 %v2242, 0.0
        %v2385 = vmax.f32 %v2247, 0.0
        %v2386 = vmax.f32 %v2252, 0.0
        %v2387 = vmax.f32 %v2257, 0.0
        %v2388 = vmax.f32 %v2262, 0.0
        %v2389 = vmax.f32 %v2267, 0.0
        %v2390 = vmax.f32 %v2272, 0.0
        %v2391 = vmax.f32 %v2277, 0.0
        %v2392 = vmax.f32 %v2282, 0.0
        %v2393 = vmax.f32 %v2287, 0.0
        %v2394 = vmax.f32 %v2292, 0.0
        %v2395 = vmax.f32 %v2297, 0.0
        %v2396 = vmax.f32 %v2302, 0.0
        %v2397 = vmax.f32 %v2307, 0.0
        %v2398 = vmax.f32 %v2312, 0.0
        %v2399 = vmax.f32 %v2317, 0.0
        %v2400 = vmax.f32 %v2322, 0.0
        %v2401 = vmax.f32 %v2327, 0.0
        %v2402 = vmax.f32 %v2332, 0.0
        %v2403 = vmax.f32 %v2337, 0.0
        %v2404 = vmax.f32 %v2342, 0.0
        %v2405 = vmax.f32 %v2347, 0.0
        %v2406 = vmax.f32 %v2352, 0.0
        %v2407 = vmax.f32 %v2357, 0.0
        %v2408 = vmax.f32 %v2362, 0.0
        %v2409 = vmax.f32 %v2367, 0.0
        %v2410 = vmax.f32 %v2372, 0.0
        %v2411 = vmax.f32 %v2377, 0.0
        %2412 = vst [vmem:[#allocation2] sm:$0xff] 0.0
        %2413 = vst [vmem:[#allocation2 + $0x8] sm:$0xff] 0.0
        %2414 = vst [vmem:[#allocation2 + $0x10] sm:$0x3] 0.0
        %2415 = vst [vmem:[#allocation2 + $0x18] sm:$0xff] 0.0
        %2416 = vst [vmem:[#allocation2 + $0x20] sm:$0xff] 0.0
        %2417 = vst [vmem:[#allocation2 + $0x28] sm:$0x3] 0.0
        %2418 = vst [vmem:[#allocation2 + $0x30] sm:$0xff] 0.0
        %2419 = vst [vmem:[#allocation2 + $0x38] sm:$0xff] 0.0
        %2420 = vst [vmem:[#allocation2 + $0x40] sm:$0x3] 0.0
        %2421 = vst [vmem:[#allocation2 + $0x48] sm:$0xff] 0.0
        %2422 = vst [vmem:[#allocation2 + $0x50] sm:$0xff] 0.0
        %2423 = vst [vmem:[#allocation2 + $0x58] sm:$0x3] 0.0
        %2424 = vst [vmem:[#allocation2 + $0x60] sm:$0xff] 0.0
        %2425 = vst [vmem:[#allocation2 + $0x68] sm:$0xff] 0.0
        %2426 = vst [vmem:[#allocation2 + $0x70] sm:$0x3] 0.0
        %2427 = vst [vmem:[#allocation2 + $0x78] sm:$0xff] 0.0
        %2428 = vst [vmem:[#allocation2 + $0x80] sm:$0xff] 0.0
        %2429 = vst [vmem:[#allocation2 + $0x88] sm:$0x3] 0.0
        %2430 = vst [vmem:[#allocation2 + $0x90] sm:$0xff] 0.0
        %2431 = vst [vmem:[#allocation2 + $0x98] sm:$0xff] 0.0
        %2432 = vst [vmem:[#allocation2 + $0xa0] sm:$0x3] 0.0
        %2433 = vst [vmem:[#allocation2 + $0xa8] sm:$0xff] 0.0
        %2434 = vst [vmem:[#allocation2 + $0xb0] sm:$0xff] 0.0
        %2435 = vst [vmem:[#allocation2 + $0xb8] sm:$0x3] 0.0
        %2436 = vst [vmem:[#allocation2 + $0xc0] sm:$0xff] 0.0
        %2437 = vst [vmem:[#allocation2 + $0xc8] sm:$0xff] 0.0
        %2438 = vst [vmem:[#allocation2 + $0xd0] sm:$0x3] 0.0
        %2439 = vst [vmem:[#allocation2 + $0xd8] sm:$0xff] 0.0
        %2440 = vst [vmem:[#allocation2 + $0xe0] sm:$0xff] 0.0
        %2441 = vst [vmem:[#allocation2 + $0xe8] sm:$0x3] 0.0
        %2442 = vst [vmem:[#allocation2 + $0xf0] sm:$0xff] 0.0
        %2443 = vst [vmem:[#allocation2 + $0xf8] sm:$0xff] 0.0
        %2444 = vst [vmem:[#allocation2 + $0x100] sm:$0x3] 0.0
        %2445 = vst [vmem:[#allocation2 + $0x108] sm:$0xff] 0.0
        %2446 = vst [vmem:[#allocation2 + $0x110] sm:$0xff] 0.0
        %2447 = vst [vmem:[#allocation2 + $0x118] sm:$0x3] 0.0
        %2448 = vst [vmem:[#allocation2 + $0x120] sm:$0xff] 0.0
        %2449 = vst [vmem:[#allocation2 + $0x128] sm:$0xff] 0.0
        %2450 = vst [vmem:[#allocation2 + $0x130] sm:$0x3] 0.0
        %2451 = vst [vmem:[#allocation2 + $0x138] sm:$0xff] 0.0
        %2452 = vst [vmem:[#allocation2 + $0x140] sm:$0xff] 0.0
        %2453 = vst [vmem:[#allocation2 + $0x148] sm:$0x3] 0.0
        %2454 = vst [vmem:[#allocation2 + $0x150] sm:$0xff] 0.0
        %2455 = vst [vmem:[#allocation2 + $0x158] sm:$0xff] 0.0
        %2456 = vst [vmem:[#allocation2 + $0x160] sm:$0x3] 0.0
        %2457 = vst [vmem:[#allocation2 + $0x168] sm:$0xff] 0.0
        %2458 = vst [vmem:[#allocation2 + $0x170] sm:$0xff] 0.0
        %2459 = vst [vmem:[#allocation2 + $0x178] sm:$0x3] 0.0
        %2460 = vst [vmem:[#allocation2 + $0x180] sm:$0xff] 0.0
        %2461 = vst [vmem:[#allocation2 + $0x188] sm:$0xff] 0.0
        %2462 = vst [vmem:[#allocation2 + $0x190] sm:$0x3] 0.0
        %2463 = vst [vmem:[#allocation2 + $0x198] sm:$0xff] 0.0
        %2464 = vst [vmem:[#allocation2 + $0x1a0] sm:$0xff] 0.0
        %2465 = vst [vmem:[#allocation2 + $0x1a8] sm:$0x3] 0.0
        %s2466 = scalar_lea.vmem [#allocation2], 24
        %2467 = vst [vmem:[%s2466 + $0x1] sm:$0xff] %v2380
        %2468 = vst [vmem:[%s2466 + $0x9] sm:$0xff] %v2381
        %2469 = vst [vmem:[%s2466 + $0x19] sm:$0xff] %v2382
        %2470 = vst [vmem:[%s2466 + $0x21] sm:$0xff] %v2383
        %2471 = vst [vmem:[%s2466 + $0x31] sm:$0xff] %v2384
        %2472 = vst [vmem:[%s2466 + $0x39] sm:$0xff] %v2385
        %2473 = vst [vmem:[%s2466 + $0x49] sm:$0xff] %v2386
        %2474 = vst [vmem:[%s2466 + $0x51] sm:$0xff] %v2387
        %2475 = vst [vmem:[%s2466 + $0x61] sm:$0xff] %v2388
        %2476 = vst [vmem:[%s2466 + $0x69] sm:$0xff] %v2389
        %2477 = vst [vmem:[%s2466 + $0x79] sm:$0xff] %v2390
        %2478 = vst [vmem:[%s2466 + $0x81] sm:$0xff] %v2391
        %2479 = vst [vmem:[%s2466 + $0x91] sm:$0xff] %v2392
        %2480 = vst [vmem:[%s2466 + $0x99] sm:$0xff] %v2393
        %2481 = vst [vmem:[%s2466 + $0xa9] sm:$0xff] %v2394
        %2482 = vst [vmem:[%s2466 + $0xb1] sm:$0xff] %v2395
        %2483 = vst [vmem:[%s2466 + $0xc1] sm:$0xff] %v2396
        %2484 = vst [vmem:[%s2466 + $0xc9] sm:$0xff] %v2397
        %2485 = vst [vmem:[%s2466 + $0xd9] sm:$0xff] %v2398
        %2486 = vst [vmem:[%s2466 + $0xe1] sm:$0xff] %v2399
        %2487 = vst [vmem:[%s2466 + $0xf1] sm:$0xff] %v2400
        %2488 = vst [vmem:[%s2466 + $0xf9] sm:$0xff] %v2401
        %2489 = vst [vmem:[%s2466 + $0x109] sm:$0xff] %v2402
        %2490 = vst [vmem:[%s2466 + $0x111] sm:$0xff] %v2403
        %2491 = vst [vmem:[%s2466 + $0x121] sm:$0xff] %v2404
        %2492 = vst [vmem:[%s2466 + $0x129] sm:$0xff] %v2405
        %2493 = vst [vmem:[%s2466 + $0x139] sm:$0xff] %v2406
        %2494 = vst [vmem:[%s2466 + $0x141] sm:$0xff] %v2407
        %2495 = vst [vmem:[%s2466 + $0x151] sm:$0xff] %v2408
        %2496 = vst [vmem:[%s2466 + $0x159] sm:$0xff] %v2409
        %2497 = vst [vmem:[%s2466 + $0x169] sm:$0xff] %v2410
        %2498 = vst [vmem:[%s2466 + $0x171] sm:$0xff] %v2411
        %v2499 = vld [vmem:[#allocation2] sm:$0xff]
        %v2500 = vld [vmem:[#allocation2 + $0x8] sm:$0xff]
        %v2501 = vld [vmem:[#allocation2 + $0x18] sm:$0xff]
        %v2502 = vld [vmem:[#allocation2 + $0x20] sm:$0xff]
        %v2503 = vld [vmem:[#allocation2 + $0x30] sm:$0xff]
        %v2504 = vld [vmem:[#allocation2 + $0x38] sm:$0xff]
        %v2505 = vld [vmem:[#allocation2 + $0x48] sm:$0xff]
        %v2506 = vld [vmem:[#allocation2 + $0x50] sm:$0xff]
        %v2507 = vld [vmem:[#allocation2 + $0x60] sm:$0xff]
        %v2508 = vld [vmem:[#allocation2 + $0x68] sm:$0xff]
        %v2509 = vld [vmem:[#allocation2 + $0x78] sm:$0xff]
        %v2510 = vld [vmem:[#allocation2 + $0x80] sm:$0xff]
        %v2511 = vld [vmem:[#allocation2 + $0x90] sm:$0xff]
        %v2512 = vld [vmem:[#allocation2 + $0x98] sm:$0xff]
        %v2513 = vld [vmem:[#allocation2 + $0xa8] sm:$0xff]
        %v2514 = vld [vmem:[#allocation2 + $0xb0] sm:$0xff]
        %v2515 = vld [vmem:[#allocation2 + $0xc0] sm:$0xff]
        %v2516 = vld [vmem:[#allocation2 + $0xc8] sm:$0xff]
        %v2517 = vld [vmem:[#allocation2 + $0xd8] sm:$0xff]
        %v2518 = vld [vmem:[#allocation2 + $0xe0] sm:$0xff]
        %v2519 = vld [vmem:[#allocation2 + $0xf0] sm:$0xff]
        %v2520 = vld [vmem:[#allocation2 + $0xf8] sm:$0xff]
        %v2521 = vld [vmem:[#allocation2 + $0x108] sm:$0xff]
        %v2522 = vld [vmem:[#allocation2 + $0x110] sm:$0xff]
        %v2523 = vld [vmem:[#allocation2 + $0x120] sm:$0xff]
        %v2524 = vld [vmem:[#allocation2 + $0x128] sm:$0xff]
        %v2525 = vld [vmem:[#allocation2 + $0x138] sm:$0xff]
        %v2526 = vld [vmem:[#allocation2 + $0x140] sm:$0xff]
        %v2527 = vld [vmem:[#allocation2 + $0x150] sm:$0xff]
        %v2528 = vld [vmem:[#allocation2 + $0x158] sm:$0xff]
        %v2529 = vld [vmem:[#allocation2 + $0x168] sm:$0xff]
        %v2530 = vld [vmem:[#allocation2 + $0x170] sm:$0xff]
        %2531 = vst [vmem:[#allocation3] sm:$0xff] %v2499
        %2532 = vst [vmem:[#allocation3 + $0x48] sm:$0xff] %v2500
        %2533 = vst [vmem:[#allocation3 + $0x90] sm:$0xff] %v2501
        %2534 = vst [vmem:[#allocation3 + $0xd8] sm:$0xff] %v2502
        %2535 = vst [vmem:[#allocation3 + $0x120] sm:$0xff] %v2503
        %2536 = vst [vmem:[#allocation3 + $0x168] sm:$0xff] %v2504
        %2537 = vst [vmem:[#allocation3 + $0x1b0] sm:$0xff] %v2505
        %2538 = vst [vmem:[#allocation3 + $0x1f8] sm:$0xff] %v2506
        %2539 = vst [vmem:[#allocation3 + $0x240] sm:$0xff] %v2507
        %2540 = vst [vmem:[#allocation3 + $0x288] sm:$0xff] %v2508
        %2541 = vst [vmem:[#allocation3 + $0x2d0] sm:$0xff] %v2509
        %2542 = vst [vmem:[#allocation3 + $0x318] sm:$0xff] %v2510
        %2543 = vst [vmem:[#allocation3 + $0x360] sm:$0xff] %v2511
        %2544 = vst [vmem:[#allocation3 + $0x3a8] sm:$0xff] %v2512
        %2545 = vst [vmem:[#allocation3 + $0x3f0] sm:$0xff] %v2513
        %2546 = vst [vmem:[#allocation3 + $0x438] sm:$0xff] %v2514
        %2547 = vst [vmem:[#allocation3 + $0x480] sm:$0xff] %v2515
        %2548 = vst [vmem:[#allocation3 + $0x4c8] sm:$0xff] %v2516
        %2549 = vst [vmem:[#allocation3 + $0x510] sm:$0xff] %v2517
        %2550 = vst [vmem:[#allocation3 + $0x558] sm:$0xff] %v2518
        %2551 = vst [vmem:[#allocation3 + $0x5a0] sm:$0xff] %v2519
        %2552 = vst [vmem:[#allocation3 + $0x5e8] sm:$0xff] %v2520
        %2553 = vst [vmem:[#allocation3 + $0x630] sm:$0xff] %v2521
        %2554 = vst [vmem:[#allocation3 + $0x678] sm:$0xff] %v2522
        %2555 = vst [vmem:[#allocation3 + $0x6c0] sm:$0xff] %v2523
        %2556 = vst [vmem:[#allocation3 + $0x708] sm:$0xff] %v2524
        %2557 = vst [vmem:[#allocation3 + $0x750] sm:$0xff] %v2525
        %2558 = vst [vmem:[#allocation3 + $0x798] sm:$0xff] %v2526
        %2559 = vst [vmem:[#allocation3 + $0x7e0] sm:$0xff] %v2527
        %2560 = vst [vmem:[#allocation3 + $0x828] sm:$0xff] %v2528
        %2561 = vst [vmem:[#allocation3 + $0x870] sm:$0xff] %v2529
        %2562 = vst [vmem:[#allocation3 + $0x8b8] sm:$0xff] %v2530
        %v2563 = vld [vmem:[#allocation2 + $0x1] sm:$0xff]
        %v2564 = vld [vmem:[#allocation2 + $0x9] sm:$0xff]
        %v2565 = vld [vmem:[#allocation2 + $0x19] sm:$0xff]
        %v2566 = vld [vmem:[#allocation2 + $0x21] sm:$0xff]
        %v2567 = vld [vmem:[#allocation2 + $0x31] sm:$0xff]
        %v2568 = vld [vmem:[#allocation2 + $0x39] sm:$0xff]
        %v2569 = vld [vmem:[#allocation2 + $0x49] sm:$0xff]
        %v2570 = vld [vmem:[#allocation2 + $0x51] sm:$0xff]
        %v2571 = vld [vmem:[#allocation2 + $0x61] sm:$0xff]
        %v2572 = vld [vmem:[#allocation2 + $0x69] sm:$0xff]
        %v2573 = vld [vmem:[#allocation2 + $0x79] sm:$0xff]
        %v2574 = vld [vmem:[#allocation2 + $0x81] sm:$0xff]
        %v2575 = vld [vmem:[#allocation2 + $0x91] sm:$0xff]
        %v2576 = vld [vmem:[#allocation2 + $0x99] sm:$0xff]
        %v2577 = vld [vmem:[#allocation2 + $0xa9] sm:$0xff]
        %v2578 = vld [vmem:[#allocation2 + $0xb1] sm:$0xff]
        %v2579 = vld [vmem:[#allocation2 + $0xc1] sm:$0xff]
        %v2580 = vld [vmem:[#allocation2 + $0xc9] sm:$0xff]
        %v2581 = vld [vmem:[#allocation2 + $0xd9] sm:$0xff]
        %v2582 = vld [vmem:[#allocation2 + $0xe1] sm:$0xff]
        %v2583 = vld [vmem:[#allocation2 + $0xf1] sm:$0xff]
        %v2584 = vld [vmem:[#allocation2 + $0xf9] sm:$0xff]
        %v2585 = vld [vmem:[#allocation2 + $0x109] sm:$0xff]
        %v2586 = vld [vmem:[#allocation2 + $0x111] sm:$0xff]
        %v2587 = vld [vmem:[#allocation2 + $0x121] sm:$0xff]
        %v2588 = vld [vmem:[#allocation2 + $0x129] sm:$0xff]
        %v2589 = vld [vmem:[#allocation2 + $0x139] sm:$0xff]
        %v2590 = vld [vmem:[#allocation2 + $0x141] sm:$0xff]
        %v2591 = vld [vmem:[#allocation2 + $0x151] sm:$0xff]
        %v2592 = vld [vmem:[#allocation2 + $0x159] sm:$0xff]
        %v2593 = vld [vmem:[#allocation2 + $0x169] sm:$0xff]
        %v2594 = vld [vmem:[#allocation2 + $0x171] sm:$0xff]
        %2595 = vst [vmem:[#allocation3 + $0x8] sm:$0xff] %v2563
        %2596 = vst [vmem:[#allocation3 + $0x50] sm:$0xff] %v2564
        %2597 = vst [vmem:[#allocation3 + $0x98] sm:$0xff] %v2565
        %2598 = vst [vmem:[#allocation3 + $0xe0] sm:$0xff] %v2566
        %2599 = vst [vmem:[#allocation3 + $0x128] sm:$0xff] %v2567
        %2600 = vst [vmem:[#allocation3 + $0x170] sm:$0xff] %v2568
        %2601 = vst [vmem:[#allocation3 + $0x1b8] sm:$0xff] %v2569
        %2602 = vst [vmem:[#allocation3 + $0x200] sm:$0xff] %v2570
        %2603 = vst [vmem:[#allocation3 + $0x248] sm:$0xff] %v2571
        %2604 = vst [vmem:[#allocation3 + $0x290] sm:$0xff] %v2572
        %2605 = vst [vmem:[#allocation3 + $0x2d8] sm:$0xff] %v2573
        %2606 = vst [vmem:[#allocation3 + $0x320] sm:$0xff] %v2574
        %2607 = vst [vmem:[#allocation3 + $0x368] sm:$0xff] %v2575
        %2608 = vst [vmem:[#allocation3 + $0x3b0] sm:$0xff] %v2576
        %2609 = vst [vmem:[#allocation3 + $0x3f8] sm:$0xff] %v2577
        %2610 = vst [vmem:[#allocation3 + $0x440] sm:$0xff] %v2578
        %2611 = vst [vmem:[#allocation3 + $0x488] sm:$0xff] %v2579
        %2612 = vst [vmem:[#allocation3 + $0x4d0] sm:$0xff] %v2580
        %2613 = vst [vmem:[#allocation3 + $0x518] sm:$0xff] %v2581
        %2614 = vst [vmem:[#allocation3 + $0x560] sm:$0xff] %v2582
        %2615 = vst [vmem:[#allocation3 + $0x5a8] sm:$0xff] %v2583
        %2616 = vst [vmem:[#allocation3 + $0x5f0] sm:$0xff] %v2584
        %2617 = vst [vmem:[#allocation3 + $0x638] sm:$0xff] %v2585
        %2618 = vst [vmem:[#allocation3 + $0x680] sm:$0xff] %v2586
        %2619 = vst [vmem:[#allocation3 + $0x6c8] sm:$0xff] %v2587
        %2620 = vst [vmem:[#allocation3 + $0x710] sm:$0xff] %v2588
        %2621 = vst [vmem:[#allocation3 + $0x758] sm:$0xff] %v2589
        %2622 = vst [vmem:[#allocation3 + $0x7a0] sm:$0xff] %v2590
        %2623 = vst [vmem:[#allocation3 + $0x7e8] sm:$0xff] %v2591
        %2624 = vst [vmem:[#allocation3 + $0x830] sm:$0xff] %v2592
        %2625 = vst [vmem:[#allocation3 + $0x878] sm:$0xff] %v2593
        %2626 = vst [vmem:[#allocation3 + $0x8c0] sm:$0xff] %v2594
        %v2627 = vld [vmem:[#allocation2 + $0x2] sm:$0xff]
        %v2628 = vld [vmem:[#allocation2 + $0xa] sm:$0xff]
        %v2629 = vld [vmem:[#allocation2 + $0x1a] sm:$0xff]
        %v2630 = vld [vmem:[#allocation2 + $0x22] sm:$0xff]
        %v2631 = vld [vmem:[#allocation2 + $0x32] sm:$0xff]
        %v2632 = vld [vmem:[#allocation2 + $0x3a] sm:$0xff]
        %v2633 = vld [vmem:[#allocation2 + $0x4a] sm:$0xff]
        %v2634 = vld [vmem:[#allocation2 + $0x52] sm:$0xff]
        %v2635 = vld [vmem:[#allocation2 + $0x62] sm:$0xff]
        %v2636 = vld [vmem:[#allocation2 + $0x6a] sm:$0xff]
        %v2637 = vld [vmem:[#allocation2 + $0x7a] sm:$0xff]
        %v2638 = vld [vmem:[#allocation2 + $0x82] sm:$0xff]
        %v2639 = vld [vmem:[#allocation2 + $0x92] sm:$0xff]
        %v2640 = vld [vmem:[#allocation2 + $0x9a] sm:$0xff]
        %v2641 = vld [vmem:[#allocation2 + $0xaa] sm:$0xff]
        %v2642 = vld [vmem:[#allocation2 + $0xb2] sm:$0xff]
        %v2643 = vld [vmem:[#allocation2 + $0xc2] sm:$0xff]
        %v2644 = vld [vmem:[#allocation2 + $0xca] sm:$0xff]
        %v2645 = vld [vmem:[#allocation2 + $0xda] sm:$0xff]
        %v2646 = vld [vmem:[#allocation2 + $0xe2] sm:$0xff]
        %v2647 = vld [vmem:[#allocation2 + $0xf2] sm:$0xff]
        %v2648 = vld [vmem:[#allocation2 + $0xfa] sm:$0xff]
        %v2649 = vld [vmem:[#allocation2 + $0x10a] sm:$0xff]
        %v2650 = vld [vmem:[#allocation2 + $0x112] sm:$0xff]
        %v2651 = vld [vmem:[#allocation2 + $0x122] sm:$0xff]
        %v2652 = vld [vmem:[#allocation2 + $0x12a] sm:$0xff]
        %v2653 = vld [vmem:[#allocation2 + $0x13a] sm:$0xff]
        %v2654 = vld [vmem:[#allocation2 + $0x142] sm:$0xff]
        %v2655 = vld [vmem:[#allocation2 + $0x152] sm:$0xff]
        %v2656 = vld [vmem:[#allocation2 + $0x15a] sm:$0xff]
        %v2657 = vld [vmem:[#allocation2 + $0x16a] sm:$0xff]
        %v2658 = vld [vmem:[#allocation2 + $0x172] sm:$0xff]
        %2659 = vst [vmem:[#allocation3 + $0x10] sm:$0xff] %v2627
        %2660 = vst [vmem:[#allocation3 + $0x58] sm:$0xff] %v2628
        %2661 = vst [vmem:[#allocation3 + $0xa0] sm:$0xff] %v2629
        %2662 = vst [vmem:[#allocation3 + $0xe8] sm:$0xff] %v2630
        %2663 = vst [vmem:[#allocation3 + $0x130] sm:$0xff] %v2631
        %2664 = vst [vmem:[#allocation3 + $0x178] sm:$0xff] %v2632
        %2665 = vst [vmem:[#allocation3 + $0x1c0] sm:$0xff] %v2633
        %2666 = vst [vmem:[#allocation3 + $0x208] sm:$0xff] %v2634
        %2667 = vst [vmem:[#allocation3 + $0x250] sm:$0xff] %v2635
        %2668 = vst [vmem:[#allocation3 + $0x298] sm:$0xff] %v2636
        %2669 = vst [vmem:[#allocation3 + $0x2e0] sm:$0xff] %v2637
        %2670 = vst [vmem:[#allocation3 + $0x328] sm:$0xff] %v2638
        %2671 = vst [vmem:[#allocation3 + $0x370] sm:$0xff] %v2639
        %2672 = vst [vmem:[#allocation3 + $0x3b8] sm:$0xff] %v2640
        %2673 = vst [vmem:[#allocation3 + $0x400] sm:$0xff] %v2641
        %2674 = vst [vmem:[#allocation3 + $0x448] sm:$0xff] %v2642
        %2675 = vst [vmem:[#allocation3 + $0x490] sm:$0xff] %v2643
        %2676 = vst [vmem:[#allocation3 + $0x4d8] sm:$0xff] %v2644
        %2677 = vst [vmem:[#allocation3 + $0x520] sm:$0xff] %v2645
        %2678 = vst [vmem:[#allocation3 + $0x568] sm:$0xff] %v2646
        %2679 = vst [vmem:[#allocation3 + $0x5b0] sm:$0xff] %v2647
        %2680 = vst [vmem:[#allocation3 + $0x5f8] sm:$0xff] %v2648
        %2681 = vst [vmem:[#allocation3 + $0x640] sm:$0xff] %v2649
        %2682 = vst [vmem:[#allocation3 + $0x688] sm:$0xff] %v2650
        %2683 = vst [vmem:[#allocation3 + $0x6d0] sm:$0xff] %v2651
        %2684 = vst [vmem:[#allocation3 + $0x718] sm:$0xff] %v2652
        %2685 = vst [vmem:[#allocation3 + $0x760] sm:$0xff] %v2653
        %2686 = vst [vmem:[#allocation3 + $0x7a8] sm:$0xff] %v2654
        %2687 = vst [vmem:[#allocation3 + $0x7f0] sm:$0xff] %v2655
        %2688 = vst [vmem:[#allocation3 + $0x838] sm:$0xff] %v2656
        %2689 = vst [vmem:[#allocation3 + $0x880] sm:$0xff] %v2657
        %2690 = vst [vmem:[#allocation3 + $0x8c8] sm:$0xff] %v2658
        %v2691 = vld [vmem:[%s2466] sm:$0xff]
        %v2692 = vld [vmem:[%s2466 + $0x8] sm:$0xff]
        %v2693 = vld [vmem:[%s2466 + $0x18] sm:$0xff]
        %v2694 = vld [vmem:[%s2466 + $0x20] sm:$0xff]
        %v2695 = vld [vmem:[%s2466 + $0x30] sm:$0xff]
        %v2696 = vld [vmem:[%s2466 + $0x38] sm:$0xff]
        %v2697 = vld [vmem:[%s2466 + $0x48] sm:$0xff]
        %v2698 = vld [vmem:[%s2466 + $0x50] sm:$0xff]
        %v2699 = vld [vmem:[%s2466 + $0x60] sm:$0xff]
        %v2700 = vld [vmem:[%s2466 + $0x68] sm:$0xff]
        %v2701 = vld [vmem:[%s2466 + $0x78] sm:$0xff]
        %v2702 = vld [vmem:[%s2466 + $0x80] sm:$0xff]
        %v2703 = vld [vmem:[%s2466 + $0x90] sm:$0xff]
        %v2704 = vld [vmem:[%s2466 + $0x98] sm:$0xff]
        %v2705 = vld [vmem:[%s2466 + $0xa8] sm:$0xff]
        %v2706 = vld [vmem:[%s2466 + $0xb0] sm:$0xff]
        %v2707 = vld [vmem:[%s2466 + $0xc0] sm:$0xff]
        %v2708 = vld [vmem:[%s2466 + $0xc8] sm:$0xff]
        %v2709 = vld [vmem:[%s2466 + $0xd8] sm:$0xff]
        %v2710 = vld [vmem:[%s2466 + $0xe0] sm:$0xff]
        %v2711 = vld [vmem:[%s2466 + $0xf0] sm:$0xff]
        %v2712 = vld [vmem:[%s2466 + $0xf8] sm:$0xff]
        %v2713 = vld [vmem:[%s2466 + $0x108] sm:$0xff]
        %v2714 = vld [vmem:[%s2466 + $0x110] sm:$0xff]
        %v2715 = vld [vmem:[%s2466 + $0x120] sm:$0xff]
        %v2716 = vld [vmem:[%s2466 + $0x128] sm:$0xff]
        %v2717 = vld [vmem:[%s2466 + $0x138] sm:$0xff]
        %v2718 = vld [vmem:[%s2466 + $0x140] sm:$0xff]
        %v2719 = vld [vmem:[%s2466 + $0x150] sm:$0xff]
        %v2720 = vld [vmem:[%s2466 + $0x158] sm:$0xff]
        %v2721 = vld [vmem:[%s2466 + $0x168] sm:$0xff]
        %v2722 = vld [vmem:[%s2466 + $0x170] sm:$0xff]
        %2723 = vst [vmem:[#allocation3 + $0x18] sm:$0xff] %v2691
        %2724 = vst [vmem:[#allocation3 + $0x60] sm:$0xff] %v2692
        %2725 = vst [vmem:[#allocation3 + $0xa8] sm:$0xff] %v2693
        %2726 = vst [vmem:[#allocation3 + $0xf0] sm:$0xff] %v2694
        %2727 = vst [vmem:[#allocation3 + $0x138] sm:$0xff] %v2695
        %2728 = vst [vmem:[#allocation3 + $0x180] sm:$0xff] %v2696
        %2729 = vst [vmem:[#allocation3 + $0x1c8] sm:$0xff] %v2697
        %2730 = vst [vmem:[#allocation3 + $0x210] sm:$0xff] %v2698
        %2731 = vst [vmem:[#allocation3 + $0x258] sm:$0xff] %v2699
        %2732 = vst [vmem:[#allocation3 + $0x2a0] sm:$0xff] %v2700
        %2733 = vst [vmem:[#allocation3 + $0x2e8] sm:$0xff] %v2701
        %2734 = vst [vmem:[#allocation3 + $0x330] sm:$0xff] %v2702
        %2735 = vst [vmem:[#allocation3 + $0x378] sm:$0xff] %v2703
        %2736 = vst [vmem:[#allocation3 + $0x3c0] sm:$0xff] %v2704
        %2737 = vst [vmem:[#allocation3 + $0x408] sm:$0xff] %v2705
        %2738 = vst [vmem:[#allocation3 + $0x450] sm:$0xff] %v2706
        %2739 = vst [vmem:[#allocation3 + $0x498] sm:$0xff] %v2707
        %2740 = vst [vmem:[#allocation3 + $0x4e0] sm:$0xff] %v2708
        %2741 = vst [vmem:[#allocation3 + $0x528] sm:$0xff] %v2709
        %2742 = vst [vmem:[#allocation3 + $0x570] sm:$0xff] %v2710
        %2743 = vst [vmem:[#allocation3 + $0x5b8] sm:$0xff] %v2711
        %2744 = vst [vmem:[#allocation3 + $0x600] sm:$0xff] %v2712
        %2745 = vst [vmem:[#allocation3 + $0x648] sm:$0xff] %v2713
        %2746 = vst [vmem:[#allocation3 + $0x690] sm:$0xff] %v2714
        %2747 = vst [vmem:[#allocation3 + $0x6d8] sm:$0xff] %v2715
        %2748 = vst [vmem:[#allocation3 + $0x720] sm:$0xff] %v2716
        %2749 = vst [vmem:[#allocation3 + $0x768] sm:$0xff] %v2717
        %2750 = vst [vmem:[#allocation3 + $0x7b0] sm:$0xff] %v2718
        %2751 = vst [vmem:[#allocation3 + $0x7f8] sm:$0xff] %v2719
        %2752 = vst [vmem:[#allocation3 + $0x840] sm:$0xff] %v2720
        %2753 = vst [vmem:[#allocation3 + $0x888] sm:$0xff] %v2721
        %2754 = vst [vmem:[#allocation3 + $0x8d0] sm:$0xff] %v2722
        %v2755 = vld [vmem:[%s2466 + $0x1] sm:$0xff]
        %v2756 = vld [vmem:[%s2466 + $0x9] sm:$0xff]
        %v2757 = vld [vmem:[%s2466 + $0x19] sm:$0xff]
        %v2758 = vld [vmem:[%s2466 + $0x21] sm:$0xff]
        %v2759 = vld [vmem:[%s2466 + $0x31] sm:$0xff]
        %v2760 = vld [vmem:[%s2466 + $0x39] sm:$0xff]
        %v2761 = vld [vmem:[%s2466 + $0x49] sm:$0xff]
        %v2762 = vld [vmem:[%s2466 + $0x51] sm:$0xff]
        %v2763 = vld [vmem:[%s2466 + $0x61] sm:$0xff]
        %v2764 = vld [vmem:[%s2466 + $0x69] sm:$0xff]
        %v2765 = vld [vmem:[%s2466 + $0x79] sm:$0xff]
        %v2766 = vld [vmem:[%s2466 + $0x81] sm:$0xff]
        %v2767 = vld [vmem:[%s2466 + $0x91] sm:$0xff]
        %v2768 = vld [vmem:[%s2466 + $0x99] sm:$0xff]
        %v2769 = vld [vmem:[%s2466 + $0xa9] sm:$0xff]
        %v2770 = vld [vmem:[%s2466 + $0xb1] sm:$0xff]
        %v2771 = vld [vmem:[%s2466 + $0xc1] sm:$0xff]
        %v2772 = vld [vmem:[%s2466 + $0xc9] sm:$0xff]
        %v2773 = vld [vmem:[%s2466 + $0xd9] sm:$0xff]
        %v2774 = vld [vmem:[%s2466 + $0xe1] sm:$0xff]
        %v2775 = vld [vmem:[%s2466 + $0xf1] sm:$0xff]
        %v2776 = vld [vmem:[%s2466 + $0xf9] sm:$0xff]
        %v2777 = vld [vmem:[%s2466 + $0x109] sm:$0xff]
        %v2778 = vld [vmem:[%s2466 + $0x111] sm:$0xff]
        %v2779 = vld [vmem:[%s2466 + $0x121] sm:$0xff]
        %v2780 = vld [vmem:[%s2466 + $0x129] sm:$0xff]
        %v2781 = vld [vmem:[%s2466 + $0x139] sm:$0xff]
        %v2782 = vld [vmem:[%s2466 + $0x141] sm:$0xff]
        %v2783 = vld [vmem:[%s2466 + $0x151] sm:$0xff]
        %v2784 = vld [vmem:[%s2466 + $0x159] sm:$0xff]
        %v2785 = vld [vmem:[%s2466 + $0x169] sm:$0xff]
        %v2786 = vld [vmem:[%s2466 + $0x171] sm:$0xff]
        %2787 = vst [vmem:[#allocation3 + $0x20] sm:$0xff] %v2755
        %2788 = vst [vmem:[#allocation3 + $0x68] sm:$0xff] %v2756
        %2789 = vst [vmem:[#allocation3 + $0xb0] sm:$0xff] %v2757
        %2790 = vst [vmem:[#allocation3 + $0xf8] sm:$0xff] %v2758
        %2791 = vst [vmem:[#allocation3 + $0x140] sm:$0xff] %v2759
        %2792 = vst [vmem:[#allocation3 + $0x188] sm:$0xff] %v2760
        %2793 = vst [vmem:[#allocation3 + $0x1d0] sm:$0xff] %v2761
        %2794 = vst [vmem:[#allocation3 + $0x218] sm:$0xff] %v2762
        %2795 = vst [vmem:[#allocation3 + $0x260] sm:$0xff] %v2763
        %2796 = vst [vmem:[#allocation3 + $0x2a8] sm:$0xff] %v2764
        %2797 = vst [vmem:[#allocation3 + $0x2f0] sm:$0xff] %v2765
        %2798 = vst [vmem:[#allocation3 + $0x338] sm:$0xff] %v2766
        %2799 = vst [vmem:[#allocation3 + $0x380] sm:$0xff] %v2767
        %2800 = vst [vmem:[#allocation3 + $0x3c8] sm:$0xff] %v2768
        %2801 = vst [vmem:[#allocation3 + $0x410] sm:$0xff] %v2769
        %2802 = vst [vmem:[#allocation3 + $0x458] sm:$0xff] %v2770
        %2803 = vst [vmem:[#allocation3 + $0x4a0] sm:$0xff] %v2771
        %2804 = vst [vmem:[#allocation3 + $0x4e8] sm:$0xff] %v2772
        %2805 = vst [vmem:[#allocation3 + $0x530] sm:$0xff] %v2773
        %2806 = vst [vmem:[#allocation3 + $0x578] sm:$0xff] %v2774
        %2807 = vst [vmem:[#allocation3 + $0x5c0] sm:$0xff] %v2775
        %2808 = vst [vmem:[#allocation3 + $0x608] sm:$0xff] %v2776
        %2809 = vst [vmem:[#allocation3 + $0x650] sm:$0xff] %v2777
        %2810 = vst [vmem:[#allocation3 + $0x698] sm:$0xff] %v2778
        %2811 = vst [vmem:[#allocation3 + $0x6e0] sm:$0xff] %v2779
        %2812 = vst [vmem:[#allocation3 + $0x728] sm:$0xff] %v2780
        %2813 = vst [vmem:[#allocation3 + $0x770] sm:$0xff] %v2781
        %2814 = vst [vmem:[#allocation3 + $0x7b8] sm:$0xff] %v2782
        %2815 = vst [vmem:[#allocation3 + $0x800] sm:$0xff] %v2783
        %2816 = vst [vmem:[#allocation3 + $0x848] sm:$0xff] %v2784
        %2817 = vst [vmem:[#allocation3 + $0x890] sm:$0xff] %v2785
        %2818 = vst [vmem:[#allocation3 + $0x8d8] sm:$0xff] %v2786
        %v2819 = vld [vmem:[%s2466 + $0x2] sm:$0xff]
        %v2820 = vld [vmem:[%s2466 + $0xa] sm:$0xff]
        %v2821 = vld [vmem:[%s2466 + $0x1a] sm:$0xff]
        %v2822 = vld [vmem:[%s2466 + $0x22] sm:$0xff]
        %v2823 = vld [vmem:[%s2466 + $0x32] sm:$0xff]
        %v2824 = vld [vmem:[%s2466 + $0x3a] sm:$0xff]
        %v2825 = vld [vmem:[%s2466 + $0x4a] sm:$0xff]
        %v2826 = vld [vmem:[%s2466 + $0x52] sm:$0xff]
        %v2827 = vld [vmem:[%s2466 + $0x62] sm:$0xff]
        %v2828 = vld [vmem:[%s2466 + $0x6a] sm:$0xff]
        %v2829 = vld [vmem:[%s2466 + $0x7a] sm:$0xff]
        %v2830 = vld [vmem:[%s2466 + $0x82] sm:$0xff]
        %v2831 = vld [vmem:[%s2466 + $0x92] sm:$0xff]
        %v2832 = vld [vmem:[%s2466 + $0x9a] sm:$0xff]
        %v2833 = vld [vmem:[%s2466 + $0xaa] sm:$0xff]
        %v2834 = vld [vmem:[%s2466 + $0xb2] sm:$0xff]
        %v2835 = vld [vmem:[%s2466 + $0xc2] sm:$0xff]
        %v2836 = vld [vmem:[%s2466 + $0xca] sm:$0xff]
        %v2837 = vld [vmem:[%s2466 + $0xda] sm:$0xff]
        %v2838 = vld [vmem:[%s2466 + $0xe2] sm:$0xff]
        %v2839 = vld [vmem:[%s2466 + $0xf2] sm:$0xff]
        %v2840 = vld [vmem:[%s2466 + $0xfa] sm:$0xff]
        %v2841 = vld [vmem:[%s2466 + $0x10a] sm:$0xff]
        %v2842 = vld [vmem:[%s2466 + $0x112] sm:$0xff]
        %v2843 = vld [vmem:[%s2466 + $0x122] sm:$0xff]
        %v2844 = vld [vmem:[%s2466 + $0x12a] sm:$0xff]
        %v2845 = vld [vmem:[%s2466 + $0x13a] sm:$0xff]
        %v2846 = vld [vmem:[%s2466 + $0x142] sm:$0xff]
        %v2847 = vld [vmem:[%s2466 + $0x152] sm:$0xff]
        %v2848 = vld [vmem:[%s2466 + $0x15a] sm:$0xff]
        %v2849 = vld [vmem:[%s2466 + $0x16a] sm:$0xff]
        %v2850 = vld [vmem:[%s2466 + $0x172] sm:$0xff]
        %2851 = vst [vmem:[#allocation3 + $0x28] sm:$0xff] %v2819
        %2852 = vst [vmem:[#allocation3 + $0x70] sm:$0xff] %v2820
        %2853 = vst [vmem:[#allocation3 + $0xb8] sm:$0xff] %v2821
        %2854 = vst [vmem:[#allocation3 + $0x100] sm:$0xff] %v2822
        %2855 = vst [vmem:[#allocation3 + $0x148] sm:$0xff] %v2823
        %2856 = vst [vmem:[#allocation3 + $0x190] sm:$0xff] %v2824
        %2857 = vst [vmem:[#allocation3 + $0x1d8] sm:$0xff] %v2825
        %2858 = vst [vmem:[#allocation3 + $0x220] sm:$0xff] %v2826
        %2859 = vst [vmem:[#allocation3 + $0x268] sm:$0xff] %v2827
        %2860 = vst [vmem:[#allocation3 + $0x2b0] sm:$0xff] %v2828
        %2861 = vst [vmem:[#allocation3 + $0x2f8] sm:$0xff] %v2829
        %2862 = vst [vmem:[#allocation3 + $0x340] sm:$0xff] %v2830
        %2863 = vst [vmem:[#allocation3 + $0x388] sm:$0xff] %v2831
        %2864 = vst [vmem:[#allocation3 + $0x3d0] sm:$0xff] %v2832
        %2865 = vst [vmem:[#allocation3 + $0x418] sm:$0xff] %v2833
        %2866 = vst [vmem:[#allocation3 + $0x460] sm:$0xff] %v2834
        %2867 = vst [vmem:[#allocation3 + $0x4a8] sm:$0xff] %v2835
        %2868 = vst [vmem:[#allocation3 + $0x4f0] sm:$0xff] %v2836
        %2869 = vst [vmem:[#allocation3 + $0x538] sm:$0xff] %v2837
        %2870 = vst [vmem:[#allocation3 + $0x580] sm:$0xff] %v2838
        %2871 = vst [vmem:[#allocation3 + $0x5c8] sm:$0xff] %v2839
        %2872 = vst [vmem:[#allocation3 + $0x610] sm:$0xff] %v2840
        %2873 = vst [vmem:[#allocation3 + $0x658] sm:$0xff] %v2841
        %2874 = vst [vmem:[#allocation3 + $0x6a0] sm:$0xff] %v2842
        %2875 = vst [vmem:[#allocation3 + $0x6e8] sm:$0xff] %v2843
        %2876 = vst [vmem:[#allocation3 + $0x730] sm:$0xff] %v2844
        %2877 = vst [vmem:[#allocation3 + $0x778] sm:$0xff] %v2845
        %2878 = vst [vmem:[#allocation3 + $0x7c0] sm:$0xff] %v2846
        %2879 = vst [vmem:[#allocation3 + $0x808] sm:$0xff] %v2847
        %2880 = vst [vmem:[#allocation3 + $0x850] sm:$0xff] %v2848
        %2881 = vst [vmem:[#allocation3 + $0x898] sm:$0xff] %v2849
        %2882 = vst [vmem:[#allocation3 + $0x8e0] sm:$0xff] %v2850
        %s2883 = scalar_lea.vmem [#allocation2], 48
        %v2884 = vld [vmem:[%s2883] sm:$0xff]
        %v2885 = vld [vmem:[%s2883 + $0x8] sm:$0xff]
        %v2886 = vld [vmem:[%s2883 + $0x18] sm:$0xff]
        %v2887 = vld [vmem:[%s2883 + $0x20] sm:$0xff]
        %v2888 = vld [vmem:[%s2883 + $0x30] sm:$0xff]
        %v2889 = vld [vmem:[%s2883 + $0x38] sm:$0xff]
        %v2890 = vld [vmem:[%s2883 + $0x48] sm:$0xff]
        %v2891 = vld [vmem:[%s2883 + $0x50] sm:$0xff]
        %v2892 = vld [vmem:[%s2883 + $0x60] sm:$0xff]
        %v2893 = vld [vmem:[%s2883 + $0x68] sm:$0xff]
        %v2894 = vld [vmem:[%s2883 + $0x78] sm:$0xff]
        %v2895 = vld [vmem:[%s2883 + $0x80] sm:$0xff]
        %v2896 = vld [vmem:[%s2883 + $0x90] sm:$0xff]
        %v2897 = vld [vmem:[%s2883 + $0x98] sm:$0xff]
        %v2898 = vld [vmem:[%s2883 + $0xa8] sm:$0xff]
        %v2899 = vld [vmem:[%s2883 + $0xb0] sm:$0xff]
        %v2900 = vld [vmem:[%s2883 + $0xc0] sm:$0xff]
        %v2901 = vld [vmem:[%s2883 + $0xc8] sm:$0xff]
        %v2902 = vld [vmem:[%s2883 + $0xd8] sm:$0xff]
        %v2903 = vld [vmem:[%s2883 + $0xe0] sm:$0xff]
        %v2904 = vld [vmem:[%s2883 + $0xf0] sm:$0xff]
        %v2905 = vld [vmem:[%s2883 + $0xf8] sm:$0xff]
        %v2906 = vld [vmem:[%s2883 + $0x108] sm:$0xff]
        %v2907 = vld [vmem:[%s2883 + $0x110] sm:$0xff]
        %v2908 = vld [vmem:[%s2883 + $0x120] sm:$0xff]
        %v2909 = vld [vmem:[%s2883 + $0x128] sm:$0xff]
        %v2910 = vld [vmem:[%s2883 + $0x138] sm:$0xff]
        %v2911 = vld [vmem:[%s2883 + $0x140] sm:$0xff]
        %v2912 = vld [vmem:[%s2883 + $0x150] sm:$0xff]
        %v2913 = vld [vmem:[%s2883 + $0x158] sm:$0xff]
        %v2914 = vld [vmem:[%s2883 + $0x168] sm:$0xff]
        %v2915 = vld [vmem:[%s2883 + $0x170] sm:$0xff]
        %2916 = vst [vmem:[#allocation3 + $0x30] sm:$0xff] %v2884
        %2917 = vst [vmem:[#allocation3 + $0x78] sm:$0xff] %v2885
        %2918 = vst [vmem:[#allocation3 + $0xc0] sm:$0xff] %v2886
        %2919 = vst [vmem:[#allocation3 + $0x108] sm:$0xff] %v2887
        %2920 = vst [vmem:[#allocation3 + $0x150] sm:$0xff] %v2888
        %2921 = vst [vmem:[#allocation3 + $0x198] sm:$0xff] %v2889
        %2922 = vst [vmem:[#allocation3 + $0x1e0] sm:$0xff] %v2890
        %2923 = vst [vmem:[#allocation3 + $0x228] sm:$0xff] %v2891
        %2924 = vst [vmem:[#allocation3 + $0x270] sm:$0xff] %v2892
        %2925 = vst [vmem:[#allocation3 + $0x2b8] sm:$0xff] %v2893
        %2926 = vst [vmem:[#allocation3 + $0x300] sm:$0xff] %v2894
        %2927 = vst [vmem:[#allocation3 + $0x348] sm:$0xff] %v2895
        %2928 = vst [vmem:[#allocation3 + $0x390] sm:$0xff] %v2896
        %2929 = vst [vmem:[#allocation3 + $0x3d8] sm:$0xff] %v2897
        %2930 = vst [vmem:[#allocation3 + $0x420] sm:$0xff] %v2898
        %2931 = vst [vmem:[#allocation3 + $0x468] sm:$0xff] %v2899
        %2932 = vst [vmem:[#allocation3 + $0x4b0] sm:$0xff] %v2900
        %2933 = vst [vmem:[#allocation3 + $0x4f8] sm:$0xff] %v2901
        %2934 = vst [vmem:[#allocation3 + $0x540] sm:$0xff] %v2902
        %2935 = vst [vmem:[#allocation3 + $0x588] sm:$0xff] %v2903
        %2936 = vst [vmem:[#allocation3 + $0x5d0] sm:$0xff] %v2904
        %2937 = vst [vmem:[#allocation3 + $0x618] sm:$0xff] %v2905
        %2938 = vst [vmem:[#allocation3 + $0x660] sm:$0xff] %v2906
        %2939 = vst [vmem:[#allocation3 + $0x6a8] sm:$0xff] %v2907
        %2940 = vst [vmem:[#allocation3 + $0x6f0] sm:$0xff] %v2908
        %2941 = vst [vmem:[#allocation3 + $0x738] sm:$0xff] %v2909
        %2942 = vst [vmem:[#allocation3 + $0x780] sm:$0xff] %v2910
        %2943 = vst [vmem:[#allocation3 + $0x7c8] sm:$0xff] %v2911
        %2944 = vst [vmem:[#allocation3 + $0x810] sm:$0xff] %v2912
        %2945 = vst [vmem:[#allocation3 + $0x858] sm:$0xff] %v2913
        %2946 = vst [vmem:[#allocation3 + $0x8a0] sm:$0xff] %v2914
        %2947 = vst [vmem:[#allocation3 + $0x8e8] sm:$0xff] %v2915
        %v2948 = vld [vmem:[%s2883 + $0x1] sm:$0xff]
        %v2949 = vld [vmem:[%s2883 + $0x9] sm:$0xff]
        %v2950 = vld [vmem:[%s2883 + $0x19] sm:$0xff]
        %v2951 = vld [vmem:[%s2883 + $0x21] sm:$0xff]
        %v2952 = vld [vmem:[%s2883 + $0x31] sm:$0xff]
        %v2953 = vld [vmem:[%s2883 + $0x39] sm:$0xff]
        %v2954 = vld [vmem:[%s2883 + $0x49] sm:$0xff]
        %v2955 = vld [vmem:[%s2883 + $0x51] sm:$0xff]
        %v2956 = vld [vmem:[%s2883 + $0x61] sm:$0xff]
        %v2957 = vld [vmem:[%s2883 + $0x69] sm:$0xff]
        %v2958 = vld [vmem:[%s2883 + $0x79] sm:$0xff]
        %v2959 = vld [vmem:[%s2883 + $0x81] sm:$0xff]
        %v2960 = vld [vmem:[%s2883 + $0x91] sm:$0xff]
        %v2961 = vld [vmem:[%s2883 + $0x99] sm:$0xff]
        %v2962 = vld [vmem:[%s2883 + $0xa9] sm:$0xff]
        %v2963 = vld [vmem:[%s2883 + $0xb1] sm:$0xff]
        %v2964 = vld [vmem:[%s2883 + $0xc1] sm:$0xff]
        %v2965 = vld [vmem:[%s2883 + $0xc9] sm:$0xff]
        %v2966 = vld [vmem:[%s2883 + $0xd9] sm:$0xff]
        %v2967 = vld [vmem:[%s2883 + $0xe1] sm:$0xff]
        %v2968 = vld [vmem:[%s2883 + $0xf1] sm:$0xff]
        %v2969 = vld [vmem:[%s2883 + $0xf9] sm:$0xff]
        %v2970 = vld [vmem:[%s2883 + $0x109] sm:$0xff]
        %v2971 = vld [vmem:[%s2883 + $0x111] sm:$0xff]
        %v2972 = vld [vmem:[%s2883 + $0x121] sm:$0xff]
        %v2973 = vld [vmem:[%s2883 + $0x129] sm:$0xff]
        %v2974 = vld [vmem:[%s2883 + $0x139] sm:$0xff]
        %v2975 = vld [vmem:[%s2883 + $0x141] sm:$0xff]
        %v2976 = vld [vmem:[%s2883 + $0x151] sm:$0xff]
        %v2977 = vld [vmem:[%s2883 + $0x159] sm:$0xff]
        %v2978 = vld [vmem:[%s2883 + $0x169] sm:$0xff]
        %v2979 = vld [vmem:[%s2883 + $0x171] sm:$0xff]
        %2980 = vst [vmem:[#allocation3 + $0x38] sm:$0xff] %v2948
        %2981 = vst [vmem:[#allocation3 + $0x80] sm:$0xff] %v2949
        %2982 = vst [vmem:[#allocation3 + $0xc8] sm:$0xff] %v2950
        %2983 = vst [vmem:[#allocation3 + $0x110] sm:$0xff] %v2951
        %2984 = vst [vmem:[#allocation3 + $0x158] sm:$0xff] %v2952
        %2985 = vst [vmem:[#allocation3 + $0x1a0] sm:$0xff] %v2953
        %2986 = vst [vmem:[#allocation3 + $0x1e8] sm:$0xff] %v2954
        %2987 = vst [vmem:[#allocation3 + $0x230] sm:$0xff] %v2955
        %2988 = vst [vmem:[#allocation3 + $0x278] sm:$0xff] %v2956
        %2989 = vst [vmem:[#allocation3 + $0x2c0] sm:$0xff] %v2957
        %2990 = vst [vmem:[#allocation3 + $0x308] sm:$0xff] %v2958
        %2991 = vst [vmem:[#allocation3 + $0x350] sm:$0xff] %v2959
        %2992 = vst [vmem:[#allocation3 + $0x398] sm:$0xff] %v2960
        %2993 = vst [vmem:[#allocation3 + $0x3e0] sm:$0xff] %v2961
        %2994 = vst [vmem:[#allocation3 + $0x428] sm:$0xff] %v2962
        %2995 = vst [vmem:[#allocation3 + $0x470] sm:$0xff] %v2963
        %2996 = vst [vmem:[#allocation3 + $0x4b8] sm:$0xff] %v2964
        %2997 = vst [vmem:[#allocation3 + $0x500] sm:$0xff] %v2965
        %2998 = vst [vmem:[#allocation3 + $0x548] sm:$0xff] %v2966
        %2999 = vst [vmem:[#allocation3 + $0x590] sm:$0xff] %v2967
        %3000 = vst [vmem:[#allocation3 + $0x5d8] sm:$0xff] %v2968
        %3001 = vst [vmem:[#allocation3 + $0x620] sm:$0xff] %v2969
        %3002 = vst [vmem:[#allocation3 + $0x668] sm:$0xff] %v2970
        %3003 = vst [vmem:[#allocation3 + $0x6b0] sm:$0xff] %v2971
        %3004 = vst [vmem:[#allocation3 + $0x6f8] sm:$0xff] %v2972
        %3005 = vst [vmem:[#allocation3 + $0x740] sm:$0xff] %v2973
        %3006 = vst [vmem:[#allocation3 + $0x788] sm:$0xff] %v2974
        %3007 = vst [vmem:[#allocation3 + $0x7d0] sm:$0xff] %v2975
        %3008 = vst [vmem:[#allocation3 + $0x818] sm:$0xff] %v2976
        %3009 = vst [vmem:[#allocation3 + $0x860] sm:$0xff] %v2977
        %3010 = vst [vmem:[#allocation3 + $0x8a8] sm:$0xff] %v2978
        %3011 = vst [vmem:[#allocation3 + $0x8f0] sm:$0xff] %v2979
        %v3012 = vld [vmem:[%s2883 + $0x2] sm:$0xff]
        %v3013 = vld [vmem:[%s2883 + $0xa] sm:$0xff]
        %v3014 = vld [vmem:[%s2883 + $0x1a] sm:$0xff]
        %v3015 = vld [vmem:[%s2883 + $0x22] sm:$0xff]
        %v3016 = vld [vmem:[%s2883 + $0x32] sm:$0xff]
        %v3017 = vld [vmem:[%s2883 + $0x3a] sm:$0xff]
        %v3018 = vld [vmem:[%s2883 + $0x4a] sm:$0xff]
        %v3019 = vld [vmem:[%s2883 + $0x52] sm:$0xff]
        %v3020 = vld [vmem:[%s2883 + $0x62] sm:$0xff]
        %v3021 = vld [vmem:[%s2883 + $0x6a] sm:$0xff]
        %v3022 = vld [vmem:[%s2883 + $0x7a] sm:$0xff]
        %v3023 = vld [vmem:[%s2883 + $0x82] sm:$0xff]
        %v3024 = vld [vmem:[%s2883 + $0x92] sm:$0xff]
        %v3025 = vld [vmem:[%s2883 + $0x9a] sm:$0xff]
        %v3026 = vld [vmem:[%s2883 + $0xaa] sm:$0xff]
        %v3027 = vld [vmem:[%s2883 + $0xb2] sm:$0xff]
        %v3028 = vld [vmem:[%s2883 + $0xc2] sm:$0xff]
        %v3029 = vld [vmem:[%s2883 + $0xca] sm:$0xff]
        %v3030 = vld [vmem:[%s2883 + $0xda] sm:$0xff]
        %v3031 = vld [vmem:[%s2883 + $0xe2] sm:$0xff]
        %v3032 = vld [vmem:[%s2883 + $0xf2] sm:$0xff]
        %v3033 = vld [vmem:[%s2883 + $0xfa] sm:$0xff]
        %v3034 = vld [vmem:[%s2883 + $0x10a] sm:$0xff]
        %v3035 = vld [vmem:[%s2883 + $0x112] sm:$0xff]
        %v3036 = vld [vmem:[%s2883 + $0x122] sm:$0xff]
        %v3037 = vld [vmem:[%s2883 + $0x12a] sm:$0xff]
        %v3038 = vld [vmem:[%s2883 + $0x13a] sm:$0xff]
        %v3039 = vld [vmem:[%s2883 + $0x142] sm:$0xff]
        %v3040 = vld [vmem:[%s2883 + $0x152] sm:$0xff]
        %v3041 = vld [vmem:[%s2883 + $0x15a] sm:$0xff]
        %v3042 = vld [vmem:[%s2883 + $0x16a] sm:$0xff]
        %v3043 = vld [vmem:[%s2883 + $0x172] sm:$0xff]
        %3044 = vst [vmem:[#allocation3 + $0x40] sm:$0xff] %v3012
        %3045 = vst [vmem:[#allocation3 + $0x88] sm:$0xff] %v3013
        %3046 = vst [vmem:[#allocation3 + $0xd0] sm:$0xff] %v3014
        %3047 = vst [vmem:[#allocation3 + $0x118] sm:$0xff] %v3015
        %3048 = vst [vmem:[#allocation3 + $0x160] sm:$0xff] %v3016
        %3049 = vst [vmem:[#allocation3 + $0x1a8] sm:$0xff] %v3017
        %3050 = vst [vmem:[#allocation3 + $0x1f0] sm:$0xff] %v3018
        %3051 = vst [vmem:[#allocation3 + $0x238] sm:$0xff] %v3019
        %3052 = vst [vmem:[#allocation3 + $0x280] sm:$0xff] %v3020
        %3053 = vst [vmem:[#allocation3 + $0x2c8] sm:$0xff] %v3021
        %3054 = vst [vmem:[#allocation3 + $0x310] sm:$0xff] %v3022
        %3055 = vst [vmem:[#allocation3 + $0x358] sm:$0xff] %v3023
        %3056 = vst [vmem:[#allocation3 + $0x3a0] sm:$0xff] %v3024
        %3057 = vst [vmem:[#allocation3 + $0x3e8] sm:$0xff] %v3025
        %3058 = vst [vmem:[#allocation3 + $0x430] sm:$0xff] %v3026
        %3059 = vst [vmem:[#allocation3 + $0x478] sm:$0xff] %v3027
        %3060 = vst [vmem:[#allocation3 + $0x4c0] sm:$0xff] %v3028
        %3061 = vst [vmem:[#allocation3 + $0x508] sm:$0xff] %v3029
        %3062 = vst [vmem:[#allocation3 + $0x550] sm:$0xff] %v3030
        %3063 = vst [vmem:[#allocation3 + $0x598] sm:$0xff] %v3031
        %3064 = vst [vmem:[#allocation3 + $0x5e0] sm:$0xff] %v3032
        %3065 = vst [vmem:[#allocation3 + $0x628] sm:$0xff] %v3033
        %3066 = vst [vmem:[#allocation3 + $0x670] sm:$0xff] %v3034
        %3067 = vst [vmem:[#allocation3 + $0x6b8] sm:$0xff] %v3035
        %3068 = vst [vmem:[#allocation3 + $0x700] sm:$0xff] %v3036
        %3069 = vst [vmem:[#allocation3 + $0x748] sm:$0xff] %v3037
        %3070 = vst [vmem:[#allocation3 + $0x790] sm:$0xff] %v3038
        %3071 = vst [vmem:[#allocation3 + $0x7d8] sm:$0xff] %v3039
        %3072 = vst [vmem:[#allocation3 + $0x820] sm:$0xff] %v3040
        %3073 = vst [vmem:[#allocation3 + $0x868] sm:$0xff] %v3041
        %3074 = vst [vmem:[#allocation3 + $0x8b0] sm:$0xff] %v3042
        %3075 = vst [vmem:[#allocation3 + $0x8f8] sm:$0xff] %v3043
        %v3076 = vld [vmem:[#allocation3] sm:$0xff]
        %v3077 = vld [vmem:[#allocation3 + $0x8] sm:$0xff]
        %v3078 = vld [vmem:[#allocation3 + $0x10] sm:$0xff]
        %v3079 = vld [vmem:[#allocation3 + $0x18] sm:$0xff]
        %v3080 = vld [vmem:[#allocation3 + $0x20] sm:$0xff]
        %v3081 = vld [vmem:[#allocation3 + $0x28] sm:$0xff]
        %v3082 = vld [vmem:[#allocation3 + $0x30] sm:$0xff]
        %v3083 = vld [vmem:[#allocation3 + $0x38] sm:$0xff]
        %v3084 = vld [vmem:[#allocation3 + $0x40] sm:$0xff]
        %v3085 = vld [vmem:[#allocation3 + $0x48] sm:$0xff]
        %v3086 = vld [vmem:[#allocation3 + $0x50] sm:$0xff]
        %v3087 = vld [vmem:[#allocation3 + $0x58] sm:$0xff]
        %v3088 = vld [vmem:[#allocation3 + $0x60] sm:$0xff]
        %v3089 = vld [vmem:[#allocation3 + $0x68] sm:$0xff]
        %v3090 = vld [vmem:[#allocation3 + $0x70] sm:$0xff]
        %v3091 = vld [vmem:[#allocation3 + $0x78] sm:$0xff]
        %v3092 = vld [vmem:[#allocation3 + $0x80] sm:$0xff]
        %v3093 = vld [vmem:[#allocation3 + $0x88] sm:$0xff]
        %v3094 = vld [vmem:[#allocation3 + $0x90] sm:$0xff]
        %v3095 = vld [vmem:[#allocation3 + $0x98] sm:$0xff]
        %v3096 = vld [vmem:[#allocation3 + $0xa0] sm:$0xff]
        %v3097 = vld [vmem:[#allocation3 + $0xa8] sm:$0xff]
        %v3098 = vld [vmem:[#allocation3 + $0xb0] sm:$0xff]
        %v3099 = vld [vmem:[#allocation3 + $0xb8] sm:$0xff]
        %v3100 = vld [vmem:[#allocation3 + $0xc0] sm:$0xff]
        %v3101 = vld [vmem:[#allocation3 + $0xc8] sm:$0xff]
        %v3102 = vld [vmem:[#allocation3 + $0xd0] sm:$0xff]
        %v3103 = vld [vmem:[#allocation3 + $0xd8] sm:$0xff]
        %v3104 = vld [vmem:[#allocation3 + $0xe0] sm:$0xff]
        %v3105 = vld [vmem:[#allocation3 + $0xe8] sm:$0xff]
        %v3106 = vld [vmem:[#allocation3 + $0xf0] sm:$0xff]
        %v3107 = vld [vmem:[#allocation3 + $0xf8] sm:$0xff]
        %v3108 = vld [vmem:[#allocation3 + $0x100] sm:$0xff]
        %v3109 = vld [vmem:[#allocation3 + $0x108] sm:$0xff]
        %v3110 = vld [vmem:[#allocation3 + $0x110] sm:$0xff]
        %v3111 = vld [vmem:[#allocation3 + $0x118] sm:$0xff]
        %v3112 = vld [vmem:[#allocation3 + $0x120] sm:$0xff]
        %v3113 = vld [vmem:[#allocation3 + $0x128] sm:$0xff]
        %v3114 = vld [vmem:[#allocation3 + $0x130] sm:$0xff]
        %v3115 = vld [vmem:[#allocation3 + $0x138] sm:$0xff]
        %v3116 = vld [vmem:[#allocation3 + $0x140] sm:$0xff]
        %v3117 = vld [vmem:[#allocation3 + $0x148] sm:$0xff]
        %v3118 = vld [vmem:[#allocation3 + $0x150] sm:$0xff]
        %v3119 = vld [vmem:[#allocation3 + $0x158] sm:$0xff]
        %v3120 = vld [vmem:[#allocation3 + $0x160] sm:$0xff]
        %v3121 = vld [vmem:[#allocation3 + $0x168] sm:$0xff]
        %v3122 = vld [vmem:[#allocation3 + $0x170] sm:$0xff]
        %v3123 = vld [vmem:[#allocation3 + $0x178] sm:$0xff]
        %v3124 = vld [vmem:[#allocation3 + $0x180] sm:$0xff]
        %v3125 = vld [vmem:[#allocation3 + $0x188] sm:$0xff]
        %v3126 = vld [vmem:[#allocation3 + $0x190] sm:$0xff]
        %v3127 = vld [vmem:[#allocation3 + $0x198] sm:$0xff]
        %v3128 = vld [vmem:[#allocation3 + $0x1a0] sm:$0xff]
        %v3129 = vld [vmem:[#allocation3 + $0x1a8] sm:$0xff]
        %v3130 = vld [vmem:[#allocation3 + $0x1b0] sm:$0xff]
        %v3131 = vld [vmem:[#allocation3 + $0x1b8] sm:$0xff]
        %v3132 = vld [vmem:[#allocation3 + $0x1c0] sm:$0xff]
        %v3133 = vld [vmem:[#allocation3 + $0x1c8] sm:$0xff]
        %v3134 = vld [vmem:[#allocation3 + $0x1d0] sm:$0xff]
        %v3135 = vld [vmem:[#allocation3 + $0x1d8] sm:$0xff]
        %v3136 = vld [vmem:[#allocation3 + $0x1e0] sm:$0xff]
        %v3137 = vld [vmem:[#allocation3 + $0x1e8] sm:$0xff]
        %v3138 = vld [vmem:[#allocation3 + $0x1f0] sm:$0xff]
        %v3139 = vld [vmem:[#allocation3 + $0x1f8] sm:$0xff]
        %v3140 = vld [vmem:[#allocation3 + $0x200] sm:$0xff]
        %v3141 = vld [vmem:[#allocation3 + $0x208] sm:$0xff]
        %v3142 = vld [vmem:[#allocation3 + $0x210] sm:$0xff]
        %v3143 = vld [vmem:[#allocation3 + $0x218] sm:$0xff]
        %v3144 = vld [vmem:[#allocation3 + $0x220] sm:$0xff]
        %v3145 = vld [vmem:[#allocation3 + $0x228] sm:$0xff]
        %v3146 = vld [vmem:[#allocation3 + $0x230] sm:$0xff]
        %v3147 = vld [vmem:[#allocation3 + $0x238] sm:$0xff]
        %v3148 = vld [vmem:[#allocation3 + $0x240] sm:$0xff]
        %v3149 = vld [vmem:[#allocation3 + $0x248] sm:$0xff]
        %v3150 = vld [vmem:[#allocation3 + $0x250] sm:$0xff]
        %v3151 = vld [vmem:[#allocation3 + $0x258] sm:$0xff]
        %v3152 = vld [vmem:[#allocation3 + $0x260] sm:$0xff]
        %v3153 = vld [vmem:[#allocation3 + $0x268] sm:$0xff]
        %v3154 = vld [vmem:[#allocation3 + $0x270] sm:$0xff]
        %v3155 = vld [vmem:[#allocation3 + $0x278] sm:$0xff]
        %v3156 = vld [vmem:[#allocation3 + $0x280] sm:$0xff]
        %v3157 = vld [vmem:[#allocation3 + $0x288] sm:$0xff]
        %v3158 = vld [vmem:[#allocation3 + $0x290] sm:$0xff]
        %v3159 = vld [vmem:[#allocation3 + $0x298] sm:$0xff]
        %v3160 = vld [vmem:[#allocation3 + $0x2a0] sm:$0xff]
        %v3161 = vld [vmem:[#allocation3 + $0x2a8] sm:$0xff]
        %v3162 = vld [vmem:[#allocation3 + $0x2b0] sm:$0xff]
        %v3163 = vld [vmem:[#allocation3 + $0x2b8] sm:$0xff]
        %v3164 = vld [vmem:[#allocation3 + $0x2c0] sm:$0xff]
        %v3165 = vld [vmem:[#allocation3 + $0x2c8] sm:$0xff]
        %v3166 = vld [vmem:[#allocation3 + $0x2d0] sm:$0xff]
        %v3167 = vld [vmem:[#allocation3 + $0x2d8] sm:$0xff]
        %v3168 = vld [vmem:[#allocation3 + $0x2e0] sm:$0xff]
        %v3169 = vld [vmem:[#allocation3 + $0x2e8] sm:$0xff]
        %v3170 = vld [vmem:[#allocation3 + $0x2f0] sm:$0xff]
        %v3171 = vld [vmem:[#allocation3 + $0x2f8] sm:$0xff]
        %v3172 = vld [vmem:[#allocation3 + $0x300] sm:$0xff]
        %v3173 = vld [vmem:[#allocation3 + $0x308] sm:$0xff]
        %v3174 = vld [vmem:[#allocation3 + $0x310] sm:$0xff]
        %v3175 = vld [vmem:[#allocation3 + $0x318] sm:$0xff]
        %v3176 = vld [vmem:[#allocation3 + $0x320] sm:$0xff]
        %v3177 = vld [vmem:[#allocation3 + $0x328] sm:$0xff]
        %v3178 = vld [vmem:[#allocation3 + $0x330] sm:$0xff]
        %v3179 = vld [vmem:[#allocation3 + $0x338] sm:$0xff]
        %v3180 = vld [vmem:[#allocation3 + $0x340] sm:$0xff]
        %v3181 = vld [vmem:[#allocation3 + $0x348] sm:$0xff]
        %v3182 = vld [vmem:[#allocation3 + $0x350] sm:$0xff]
        %v3183 = vld [vmem:[#allocation3 + $0x358] sm:$0xff]
        %v3184 = vld [vmem:[#allocation3 + $0x360] sm:$0xff]
        %v3185 = vld [vmem:[#allocation3 + $0x368] sm:$0xff]
        %v3186 = vld [vmem:[#allocation3 + $0x370] sm:$0xff]
        %v3187 = vld [vmem:[#allocation3 + $0x378] sm:$0xff]
        %v3188 = vld [vmem:[#allocation3 + $0x380] sm:$0xff]
        %v3189 = vld [vmem:[#allocation3 + $0x388] sm:$0xff]
        %v3190 = vld [vmem:[#allocation3 + $0x390] sm:$0xff]
        %v3191 = vld [vmem:[#allocation3 + $0x398] sm:$0xff]
        %v3192 = vld [vmem:[#allocation3 + $0x3a0] sm:$0xff]
        %v3193 = vld [vmem:[#allocation3 + $0x3a8] sm:$0xff]
        %v3194 = vld [vmem:[#allocation3 + $0x3b0] sm:$0xff]
        %v3195 = vld [vmem:[#allocation3 + $0x3b8] sm:$0xff]
        %v3196 = vld [vmem:[#allocation3 + $0x3c0] sm:$0xff]
        %v3197 = vld [vmem:[#allocation3 + $0x3c8] sm:$0xff]
        %v3198 = vld [vmem:[#allocation3 + $0x3d0] sm:$0xff]
        %v3199 = vld [vmem:[#allocation3 + $0x3d8] sm:$0xff]
        %v3200 = vld [vmem:[#allocation3 + $0x3e0] sm:$0xff]
        %v3201 = vld [vmem:[#allocation3 + $0x3e8] sm:$0xff]
        %v3202 = vld [vmem:[#allocation3 + $0x3f0] sm:$0xff]
        %v3203 = vld [vmem:[#allocation3 + $0x3f8] sm:$0xff]
        %v3204 = vld [vmem:[#allocation3 + $0x400] sm:$0xff]
        %v3205 = vld [vmem:[#allocation3 + $0x408] sm:$0xff]
        %v3206 = vld [vmem:[#allocation3 + $0x410] sm:$0xff]
        %v3207 = vld [vmem:[#allocation3 + $0x418] sm:$0xff]
        %v3208 = vld [vmem:[#allocation3 + $0x420] sm:$0xff]
        %v3209 = vld [vmem:[#allocation3 + $0x428] sm:$0xff]
        %v3210 = vld [vmem:[#allocation3 + $0x430] sm:$0xff]
        %v3211 = vld [vmem:[#allocation3 + $0x438] sm:$0xff]
        %v3212 = vld [vmem:[#allocation3 + $0x440] sm:$0xff]
        %v3213 = vld [vmem:[#allocation3 + $0x448] sm:$0xff]
        %v3214 = vld [vmem:[#allocation3 + $0x450] sm:$0xff]
        %v3215 = vld [vmem:[#allocation3 + $0x458] sm:$0xff]
        %v3216 = vld [vmem:[#allocation3 + $0x460] sm:$0xff]
        %v3217 = vld [vmem:[#allocation3 + $0x468] sm:$0xff]
        %v3218 = vld [vmem:[#allocation3 + $0x470] sm:$0xff]
        %v3219 = vld [vmem:[#allocation3 + $0x478] sm:$0xff]
        %v3220 = vld [vmem:[#allocation3 + $0x480] sm:$0xff]
        %v3221 = vld [vmem:[#allocation3 + $0x488] sm:$0xff]
        %v3222 = vld [vmem:[#allocation3 + $0x490] sm:$0xff]
        %v3223 = vld [vmem:[#allocation3 + $0x498] sm:$0xff]
        %v3224 = vld [vmem:[#allocation3 + $0x4a0] sm:$0xff]
        %v3225 = vld [vmem:[#allocation3 + $0x4a8] sm:$0xff]
        %v3226 = vld [vmem:[#allocation3 + $0x4b0] sm:$0xff]
        %v3227 = vld [vmem:[#allocation3 + $0x4b8] sm:$0xff]
        %v3228 = vld [vmem:[#allocation3 + $0x4c0] sm:$0xff]
        %v3229 = vld [vmem:[#allocation3 + $0x4c8] sm:$0xff]
        %v3230 = vld [vmem:[#allocation3 + $0x4d0] sm:$0xff]
        %v3231 = vld [vmem:[#allocation3 + $0x4d8] sm:$0xff]
        %v3232 = vld [vmem:[#allocation3 + $0x4e0] sm:$0xff]
        %v3233 = vld [vmem:[#allocation3 + $0x4e8] sm:$0xff]
        %v3234 = vld [vmem:[#allocation3 + $0x4f0] sm:$0xff]
        %v3235 = vld [vmem:[#allocation3 + $0x4f8] sm:$0xff]
        %v3236 = vld [vmem:[#allocation3 + $0x500] sm:$0xff]
        %v3237 = vld [vmem:[#allocation3 + $0x508] sm:$0xff]
        %v3238 = vld [vmem:[#allocation3 + $0x510] sm:$0xff]
        %v3239 = vld [vmem:[#allocation3 + $0x518] sm:$0xff]
        %v3240 = vld [vmem:[#allocation3 + $0x520] sm:$0xff]
        %v3241 = vld [vmem:[#allocation3 + $0x528] sm:$0xff]
        %v3242 = vld [vmem:[#allocation3 + $0x530] sm:$0xff]
        %v3243 = vld [vmem:[#allocation3 + $0x538] sm:$0xff]
        %v3244 = vld [vmem:[#allocation3 + $0x540] sm:$0xff]
        %v3245 = vld [vmem:[#allocation3 + $0x548] sm:$0xff]
        %v3246 = vld [vmem:[#allocation3 + $0x550] sm:$0xff]
        %v3247 = vld [vmem:[#allocation3 + $0x558] sm:$0xff]
        %v3248 = vld [vmem:[#allocation3 + $0x560] sm:$0xff]
        %v3249 = vld [vmem:[#allocation3 + $0x568] sm:$0xff]
        %v3250 = vld [vmem:[#allocation3 + $0x570] sm:$0xff]
        %v3251 = vld [vmem:[#allocation3 + $0x578] sm:$0xff]
        %v3252 = vld [vmem:[#allocation3 + $0x580] sm:$0xff]
        %v3253 = vld [vmem:[#allocation3 + $0x588] sm:$0xff]
        %v3254 = vld [vmem:[#allocation3 + $0x590] sm:$0xff]
        %v3255 = vld [vmem:[#allocation3 + $0x598] sm:$0xff]
        %v3256 = vld [vmem:[#allocation3 + $0x5a0] sm:$0xff]
        %v3257 = vld [vmem:[#allocation3 + $0x5a8] sm:$0xff]
        %v3258 = vld [vmem:[#allocation3 + $0x5b0] sm:$0xff]
        %v3259 = vld [vmem:[#allocation3 + $0x5b8] sm:$0xff]
        %v3260 = vld [vmem:[#allocation3 + $0x5c0] sm:$0xff]
        %v3261 = vld [vmem:[#allocation3 + $0x5c8] sm:$0xff]
        %v3262 = vld [vmem:[#allocation3 + $0x5d0] sm:$0xff]
        %v3263 = vld [vmem:[#allocation3 + $0x5d8] sm:$0xff]
        %v3264 = vld [vmem:[#allocation3 + $0x5e0] sm:$0xff]
        %v3265 = vld [vmem:[#allocation3 + $0x5e8] sm:$0xff]
        %v3266 = vld [vmem:[#allocation3 + $0x5f0] sm:$0xff]
        %v3267 = vld [vmem:[#allocation3 + $0x5f8] sm:$0xff]
        %v3268 = vld [vmem:[#allocation3 + $0x600] sm:$0xff]
        %v3269 = vld [vmem:[#allocation3 + $0x608] sm:$0xff]
        %v3270 = vld [vmem:[#allocation3 + $0x610] sm:$0xff]
        %v3271 = vld [vmem:[#allocation3 + $0x618] sm:$0xff]
        %v3272 = vld [vmem:[#allocation3 + $0x620] sm:$0xff]
        %v3273 = vld [vmem:[#allocation3 + $0x628] sm:$0xff]
        %v3274 = vld [vmem:[#allocation3 + $0x630] sm:$0xff]
        %v3275 = vld [vmem:[#allocation3 + $0x638] sm:$0xff]
        %v3276 = vld [vmem:[#allocation3 + $0x640] sm:$0xff]
        %v3277 = vld [vmem:[#allocation3 + $0x648] sm:$0xff]
        %v3278 = vld [vmem:[#allocation3 + $0x650] sm:$0xff]
        %v3279 = vld [vmem:[#allocation3 + $0x658] sm:$0xff]
        %v3280 = vld [vmem:[#allocation3 + $0x660] sm:$0xff]
        %v3281 = vld [vmem:[#allocation3 + $0x668] sm:$0xff]
        %v3282 = vld [vmem:[#allocation3 + $0x670] sm:$0xff]
        %v3283 = vld [vmem:[#allocation3 + $0x678] sm:$0xff]
        %v3284 = vld [vmem:[#allocation3 + $0x680] sm:$0xff]
        %v3285 = vld [vmem:[#allocation3 + $0x688] sm:$0xff]
        %v3286 = vld [vmem:[#allocation3 + $0x690] sm:$0xff]
        %v3287 = vld [vmem:[#allocation3 + $0x698] sm:$0xff]
        %v3288 = vld [vmem:[#allocation3 + $0x6a0] sm:$0xff]
        %v3289 = vld [vmem:[#allocation3 + $0x6a8] sm:$0xff]
        %v3290 = vld [vmem:[#allocation3 + $0x6b0] sm:$0xff]
        %v3291 = vld [vmem:[#allocation3 + $0x6b8] sm:$0xff]
        %v3292 = vld [vmem:[#allocation3 + $0x6c0] sm:$0xff]
        %v3293 = vld [vmem:[#allocation3 + $0x6c8] sm:$0xff]
        %v3294 = vld [vmem:[#allocation3 + $0x6d0] sm:$0xff]
        %v3295 = vld [vmem:[#allocation3 + $0x6d8] sm:$0xff]
        %v3296 = vld [vmem:[#allocation3 + $0x6e0] sm:$0xff]
        %v3297 = vld [vmem:[#allocation3 + $0x6e8] sm:$0xff]
        %v3298 = vld [vmem:[#allocation3 + $0x6f0] sm:$0xff]
        %v3299 = vld [vmem:[#allocation3 + $0x6f8] sm:$0xff]
        %v3300 = vld [vmem:[#allocation3 + $0x700] sm:$0xff]
        %v3301 = vld [vmem:[#allocation3 + $0x708] sm:$0xff]
        %v3302 = vld [vmem:[#allocation3 + $0x710] sm:$0xff]
        %v3303 = vld [vmem:[#allocation3 + $0x718] sm:$0xff]
        %v3304 = vld [vmem:[#allocation3 + $0x720] sm:$0xff]
        %v3305 = vld [vmem:[#allocation3 + $0x728] sm:$0xff]
        %v3306 = vld [vmem:[#allocation3 + $0x730] sm:$0xff]
        %v3307 = vld [vmem:[#allocation3 + $0x738] sm:$0xff]
        %v3308 = vld [vmem:[#allocation3 + $0x740] sm:$0xff]
        %v3309 = vld [vmem:[#allocation3 + $0x748] sm:$0xff]
        %v3310 = vld [vmem:[#allocation3 + $0x750] sm:$0xff]
        %v3311 = vld [vmem:[#allocation3 + $0x758] sm:$0xff]
        %v3312 = vld [vmem:[#allocation3 + $0x760] sm:$0xff]
        %v3313 = vld [vmem:[#allocation3 + $0x768] sm:$0xff]
        %v3314 = vld [vmem:[#allocation3 + $0x770] sm:$0xff]
        %v3315 = vld [vmem:[#allocation3 + $0x778] sm:$0xff]
        %v3316 = vld [vmem:[#allocation3 + $0x780] sm:$0xff]
        %v3317 = vld [vmem:[#allocation3 + $0x788] sm:$0xff]
        %v3318 = vld [vmem:[#allocation3 + $0x790] sm:$0xff]
        %v3319 = vld [vmem:[#allocation3 + $0x798] sm:$0xff]
        %v3320 = vld [vmem:[#allocation3 + $0x7a0] sm:$0xff]
        %v3321 = vld [vmem:[#allocation3 + $0x7a8] sm:$0xff]
        %v3322 = vld [vmem:[#allocation3 + $0x7b0] sm:$0xff]
        %v3323 = vld [vmem:[#allocation3 + $0x7b8] sm:$0xff]
        %v3324 = vld [vmem:[#allocation3 + $0x7c0] sm:$0xff]
        %v3325 = vld [vmem:[#allocation3 + $0x7c8] sm:$0xff]
        %v3326 = vld [vmem:[#allocation3 + $0x7d0] sm:$0xff]
        %v3327 = vld [vmem:[#allocation3 + $0x7d8] sm:$0xff]
        %v3328 = vld [vmem:[#allocation3 + $0x7e0] sm:$0xff]
        %v3329 = vld [vmem:[#allocation3 + $0x7e8] sm:$0xff]
        %v3330 = vld [vmem:[#allocation3 + $0x7f0] sm:$0xff]
        %v3331 = vld [vmem:[#allocation3 + $0x7f8] sm:$0xff]
        %v3332 = vld [vmem:[#allocation3 + $0x800] sm:$0xff]
        %v3333 = vld [vmem:[#allocation3 + $0x808] sm:$0xff]
        %v3334 = vld [vmem:[#allocation3 + $0x810] sm:$0xff]
        %v3335 = vld [vmem:[#allocation3 + $0x818] sm:$0xff]
        %v3336 = vld [vmem:[#allocation3 + $0x820] sm:$0xff]
        %v3337 = vld [vmem:[#allocation3 + $0x828] sm:$0xff]
        %v3338 = vld [vmem:[#allocation3 + $0x830] sm:$0xff]
        %v3339 = vld [vmem:[#allocation3 + $0x838] sm:$0xff]
        %v3340 = vld [vmem:[#allocation3 + $0x840] sm:$0xff]
        %v3341 = vld [vmem:[#allocation3 + $0x848] sm:$0xff]
        %v3342 = vld [vmem:[#allocation3 + $0x850] sm:$0xff]
        %v3343 = vld [vmem:[#allocation3 + $0x858] sm:$0xff]
        %v3344 = vld [vmem:[#allocation3 + $0x860] sm:$0xff]
        %v3345 = vld [vmem:[#allocation3 + $0x868] sm:$0xff]
        %v3346 = vld [vmem:[#allocation3 + $0x870] sm:$0xff]
        %v3347 = vld [vmem:[#allocation3 + $0x878] sm:$0xff]
        %v3348 = vld [vmem:[#allocation3 + $0x880] sm:$0xff]
        %v3349 = vld [vmem:[#allocation3 + $0x888] sm:$0xff]
        %v3350 = vld [vmem:[#allocation3 + $0x890] sm:$0xff]
        %v3351 = vld [vmem:[#allocation3 + $0x898] sm:$0xff]
        %v3352 = vld [vmem:[#allocation3 + $0x8a0] sm:$0xff]
        %v3353 = vld [vmem:[#allocation3 + $0x8a8] sm:$0xff]
        %v3354 = vld [vmem:[#allocation3 + $0x8b0] sm:$0xff]
        %v3355 = vld [vmem:[#allocation3 + $0x8b8] sm:$0xff]
        %v3356 = vld [vmem:[#allocation3 + $0x8c0] sm:$0xff]
        %v3357 = vld [vmem:[#allocation3 + $0x8c8] sm:$0xff]
        %v3358 = vld [vmem:[#allocation3 + $0x8d0] sm:$0xff]
        %v3359 = vld [vmem:[#allocation3 + $0x8d8] sm:$0xff]
        %v3360 = vld [vmem:[#allocation3 + $0x8e0] sm:$0xff]
        %v3361 = vld [vmem:[#allocation3 + $0x8e8] sm:$0xff]
        %v3362 = vld [vmem:[#allocation3 + $0x8f0] sm:$0xff]
        %v3363 = vld [vmem:[#allocation3 + $0x8f8] sm:$0xff]
        %v3364 = vld [vmem:[#allocation4] sm:$0xff]
        %v3365 = vld [vmem:[#allocation4 + $0x8] sm:$0xff]
        %v3366 = vld [vmem:[#allocation4 + $0x10] sm:$0xff]
        %v3367 = vld [vmem:[#allocation4 + $0x18] sm:$0xff]
        %v3368 = vld [vmem:[#allocation4 + $0x20] sm:$0xff]
        %v3369 = vld [vmem:[#allocation4 + $0x28] sm:$0xff]
        %v3370 = vld [vmem:[#allocation4 + $0x30] sm:$0xff]
        %v3371 = vld [vmem:[#allocation4 + $0x38] sm:$0xff]
        %v3372 = vld [vmem:[#allocation4 + $0x40] sm:$0xff]
        %v3373 = vld [vmem:[#allocation4 + $0x48] sm:$0xff]
        %v3374 = vld [vmem:[#allocation4 + $0x50] sm:$0xff]
        %v3375 = vld [vmem:[#allocation4 + $0x58] sm:$0xff]
        %v3376 = vld [vmem:[#allocation4 + $0x60] sm:$0xff]
        %v3377 = vld [vmem:[#allocation4 + $0x68] sm:$0xff]
        %v3378 = vld [vmem:[#allocation4 + $0x70] sm:$0xff]
        %v3379 = vld [vmem:[#allocation4 + $0x78] sm:$0xff]
        %v3380 = vld [vmem:[#allocation4 + $0x80] sm:$0xff]
        %v3381 = vld [vmem:[#allocation4 + $0x88] sm:$0xff]
        %v3382 = vld [vmem:[#allocation4 + $0x90] sm:$0xff]
        %v3383 = vld [vmem:[#allocation4 + $0x98] sm:$0xff]
        %v3384 = vld [vmem:[#allocation4 + $0xa0] sm:$0xff]
        %v3385 = vld [vmem:[#allocation4 + $0xa8] sm:$0xff]
        %v3386 = vld [vmem:[#allocation4 + $0xb0] sm:$0xff]
        %v3387 = vld [vmem:[#allocation4 + $0xb8] sm:$0xff]
        %v3388 = vld [vmem:[#allocation4 + $0xc0] sm:$0xff]
        %v3389 = vld [vmem:[#allocation4 + $0xc8] sm:$0xff]
        %v3390 = vld [vmem:[#allocation4 + $0xd0] sm:$0xff]
        %v3391 = vld [vmem:[#allocation4 + $0xd8] sm:$0xff]
        %v3392 = vld [vmem:[#allocation4 + $0xe0] sm:$0xff]
        %v3393 = vld [vmem:[#allocation4 + $0xe8] sm:$0xff]
        %v3394 = vld [vmem:[#allocation4 + $0xf0] sm:$0xff]
        %v3395 = vld [vmem:[#allocation4 + $0xf8] sm:$0xff]
        %v3396 = vld [vmem:[#allocation4 + $0x100] sm:$0xff]
        %v3397 = vld [vmem:[#allocation4 + $0x108] sm:$0xff]
        %v3398 = vld [vmem:[#allocation4 + $0x110] sm:$0xff]
        %v3399 = vld [vmem:[#allocation4 + $0x118] sm:$0xff]
        %v3400 = vld [vmem:[#allocation4 + $0x120] sm:$0xff]
        %v3401 = vld [vmem:[#allocation4 + $0x128] sm:$0xff]
        %v3402 = vld [vmem:[#allocation4 + $0x130] sm:$0xff]
        %v3403 = vld [vmem:[#allocation4 + $0x138] sm:$0xff]
        %v3404 = vld [vmem:[#allocation4 + $0x140] sm:$0xff]
        %v3405 = vld [vmem:[#allocation4 + $0x148] sm:$0xff]
        %v3406 = vld [vmem:[#allocation4 + $0x150] sm:$0xff]
        %v3407 = vld [vmem:[#allocation4 + $0x158] sm:$0xff]
        %v3408 = vld [vmem:[#allocation4 + $0x160] sm:$0xff]
        %v3409 = vld [vmem:[#allocation4 + $0x168] sm:$0xff]
        %v3410 = vld [vmem:[#allocation4 + $0x170] sm:$0xff]
        %v3411 = vld [vmem:[#allocation4 + $0x178] sm:$0xff]
        %v3412 = vld [vmem:[#allocation4 + $0x180] sm:$0xff]
        %v3413 = vld [vmem:[#allocation4 + $0x188] sm:$0xff]
        %v3414 = vld [vmem:[#allocation4 + $0x190] sm:$0xff]
        %v3415 = vld [vmem:[#allocation4 + $0x198] sm:$0xff]
        %v3416 = vld [vmem:[#allocation4 + $0x1a0] sm:$0xff]
        %v3417 = vld [vmem:[#allocation4 + $0x1a8] sm:$0xff]
        %v3418 = vld [vmem:[#allocation4 + $0x1b0] sm:$0xff]
        %v3419 = vld [vmem:[#allocation4 + $0x1b8] sm:$0xff]
        %v3420 = vld [vmem:[#allocation4 + $0x1c0] sm:$0xff]
        %v3421 = vld [vmem:[#allocation4 + $0x1c8] sm:$0xff]
        %v3422 = vld [vmem:[#allocation4 + $0x1d0] sm:$0xff]
        %v3423 = vld [vmem:[#allocation4 + $0x1d8] sm:$0xff]
        %v3424 = vld [vmem:[#allocation4 + $0x1e0] sm:$0xff]
        %v3425 = vld [vmem:[#allocation4 + $0x1e8] sm:$0xff]
        %v3426 = vld [vmem:[#allocation4 + $0x1f0] sm:$0xff]
        %v3427 = vld [vmem:[#allocation4 + $0x1f8] sm:$0xff]
        %v3428 = vld [vmem:[#allocation4 + $0x200] sm:$0xff]
        %v3429 = vld [vmem:[#allocation4 + $0x208] sm:$0xff]
        %v3430 = vld [vmem:[#allocation4 + $0x210] sm:$0xff]
        %v3431 = vld [vmem:[#allocation4 + $0x218] sm:$0xff]
        %v3432 = vld [vmem:[#allocation4 + $0x220] sm:$0xff]
        %v3433 = vld [vmem:[#allocation4 + $0x228] sm:$0xff]
        %v3434 = vld [vmem:[#allocation4 + $0x230] sm:$0xff]
        %v3435 = vld [vmem:[#allocation4 + $0x238] sm:$0xff]
        %v3436 = vld [vmem:[#allocation4 + $0x240] sm:$0xff]
        %v3437 = vld [vmem:[#allocation4 + $0x248] sm:$0xff]
        %v3438 = vld [vmem:[#allocation4 + $0x250] sm:$0xff]
        %v3439 = vld [vmem:[#allocation4 + $0x258] sm:$0xff]
        %v3440 = vld [vmem:[#allocation4 + $0x260] sm:$0xff]
        %v3441 = vld [vmem:[#allocation4 + $0x268] sm:$0xff]
        %v3442 = vld [vmem:[#allocation4 + $0x270] sm:$0xff]
        %v3443 = vld [vmem:[#allocation4 + $0x278] sm:$0xff]
        %v3444 = vld [vmem:[#allocation4 + $0x280] sm:$0xff]
        %v3445 = vld [vmem:[#allocation4 + $0x288] sm:$0xff]
        %v3446 = vld [vmem:[#allocation4 + $0x290] sm:$0xff]
        %v3447 = vld [vmem:[#allocation4 + $0x298] sm:$0xff]
        %v3448 = vld [vmem:[#allocation4 + $0x2a0] sm:$0xff]
        %v3449 = vld [vmem:[#allocation4 + $0x2a8] sm:$0xff]
        %v3450 = vld [vmem:[#allocation4 + $0x2b0] sm:$0xff]
        %v3451 = vld [vmem:[#allocation4 + $0x2b8] sm:$0xff]
        %v3452 = vld [vmem:[#allocation4 + $0x2c0] sm:$0xff]
        %v3453 = vld [vmem:[#allocation4 + $0x2c8] sm:$0xff]
        %v3454 = vld [vmem:[#allocation4 + $0x2d0] sm:$0xff]
        %v3455 = vld [vmem:[#allocation4 + $0x2d8] sm:$0xff]
        %v3456 = vld [vmem:[#allocation4 + $0x2e0] sm:$0xff]
        %v3457 = vld [vmem:[#allocation4 + $0x2e8] sm:$0xff]
        %v3458 = vld [vmem:[#allocation4 + $0x2f0] sm:$0xff]
        %v3459 = vld [vmem:[#allocation4 + $0x2f8] sm:$0xff]
        %v3460 = vld [vmem:[#allocation4 + $0x300] sm:$0xff]
        %v3461 = vld [vmem:[#allocation4 + $0x308] sm:$0xff]
        %v3462 = vld [vmem:[#allocation4 + $0x310] sm:$0xff]
        %v3463 = vld [vmem:[#allocation4 + $0x318] sm:$0xff]
        %v3464 = vld [vmem:[#allocation4 + $0x320] sm:$0xff]
        %v3465 = vld [vmem:[#allocation4 + $0x328] sm:$0xff]
        %v3466 = vld [vmem:[#allocation4 + $0x330] sm:$0xff]
        %v3467 = vld [vmem:[#allocation4 + $0x338] sm:$0xff]
        %v3468 = vld [vmem:[#allocation4 + $0x340] sm:$0xff]
        %v3469 = vld [vmem:[#allocation4 + $0x348] sm:$0xff]
        %v3470 = vld [vmem:[#allocation4 + $0x350] sm:$0xff]
        %v3471 = vld [vmem:[#allocation4 + $0x358] sm:$0xff]
        %v3472 = vld [vmem:[#allocation4 + $0x360] sm:$0xff]
        %v3473 = vld [vmem:[#allocation4 + $0x368] sm:$0xff]
        %v3474 = vld [vmem:[#allocation4 + $0x370] sm:$0xff]
        %v3475 = vld [vmem:[#allocation4 + $0x378] sm:$0xff]
        %v3476 = vld [vmem:[#allocation4 + $0x380] sm:$0xff]
        %v3477 = vld [vmem:[#allocation4 + $0x388] sm:$0xff]
        %v3478 = vld [vmem:[#allocation4 + $0x390] sm:$0xff]
        %v3479 = vld [vmem:[#allocation4 + $0x398] sm:$0xff]
        %v3480 = vld [vmem:[#allocation4 + $0x3a0] sm:$0xff]
        %v3481 = vld [vmem:[#allocation4 + $0x3a8] sm:$0xff]
        %v3482 = vld [vmem:[#allocation4 + $0x3b0] sm:$0xff]
        %v3483 = vld [vmem:[#allocation4 + $0x3b8] sm:$0xff]
        %v3484 = vld [vmem:[#allocation4 + $0x3c0] sm:$0xff]
        %v3485 = vld [vmem:[#allocation4 + $0x3c8] sm:$0xff]
        %v3486 = vld [vmem:[#allocation4 + $0x3d0] sm:$0xff]
        %v3487 = vld [vmem:[#allocation4 + $0x3d8] sm:$0xff]
        %v3488 = vld [vmem:[#allocation4 + $0x3e0] sm:$0xff]
        %v3489 = vld [vmem:[#allocation4 + $0x3e8] sm:$0xff]
        %v3490 = vld [vmem:[#allocation4 + $0x3f0] sm:$0xff]
        %v3491 = vld [vmem:[#allocation4 + $0x3f8] sm:$0xff]
        %v3492 = vld [vmem:[#allocation4 + $0x400] sm:$0xff]
        %v3493 = vld [vmem:[#allocation4 + $0x408] sm:$0xff]
        %v3494 = vld [vmem:[#allocation4 + $0x410] sm:$0xff]
        %v3495 = vld [vmem:[#allocation4 + $0x418] sm:$0xff]
        %v3496 = vld [vmem:[#allocation4 + $0x420] sm:$0xff]
        %v3497 = vld [vmem:[#allocation4 + $0x428] sm:$0xff]
        %v3498 = vld [vmem:[#allocation4 + $0x430] sm:$0xff]
        %v3499 = vld [vmem:[#allocation4 + $0x438] sm:$0xff]
        %v3500 = vld [vmem:[#allocation4 + $0x440] sm:$0xff]
        %v3501 = vld [vmem:[#allocation4 + $0x448] sm:$0xff]
        %v3502 = vld [vmem:[#allocation4 + $0x450] sm:$0xff]
        %v3503 = vld [vmem:[#allocation4 + $0x458] sm:$0xff]
        %v3504 = vld [vmem:[#allocation4 + $0x460] sm:$0xff]
        %v3505 = vld [vmem:[#allocation4 + $0x468] sm:$0xff]
        %v3506 = vld [vmem:[#allocation4 + $0x470] sm:$0xff]
        %v3507 = vld [vmem:[#allocation4 + $0x478] sm:$0xff]
        %v3508 = vld [vmem:[%s4] sm:$0x1]
        %v3510 = vlaneseq
        %v3511 = vshrl.u32 %v3510, 7
        %v3512 = vsub.s32 0, %v3511
        %v3513 = vrot.slane %v3508, %v3512
        %3515 = vmatprep.subr.mxu0 0.0
        %3516 = vmatpush1.msra.mxu0 %v3379
        %3517 = vmatprep.subr.mxu0 0.0
        %3518 = vmatpush1.msra.mxu0 %v3378
        %3519 = vmatprep.subr.mxu0 0.0
        %3520 = vmatpush1.msra.mxu0 %v3377
        %3521 = vmatprep.subr.mxu0 0.0
        %3522 = vmatpush1.msra.mxu0 %v3376
        %3523 = vmatprep.subr.mxu0 0.0
        %3524 = vmatpush1.msra.mxu0 %v3375
        %3525 = vmatprep.subr.mxu0 0.0
        %3526 = vmatpush1.msra.mxu0 %v3374
        %3527 = vmatprep.subr.mxu0 0.0
        %3528 = vmatpush1.msra.mxu0 %v3373
        %3529 = vmatprep.subr.mxu0 0.0
        %3530 = vmatpush1.msra.mxu0 %v3372
        %3531 = vmatprep.subr.mxu0 0.0
        %3532 = vmatpush1.msra.mxu0 %v3371
        %3533 = vmatprep.subr.mxu0 0.0
        %3534 = vmatpush1.msra.mxu0 %v3370
        %3535 = vmatprep.subr.mxu0 0.0
        %3536 = vmatpush1.msra.mxu0 %v3369
        %3537 = vmatprep.subr.mxu0 0.0
        %3538 = vmatpush1.msra.mxu0 %v3368
        %3539 = vmatprep.subr.mxu0 0.0
        %3540 = vmatpush1.msra.mxu0 %v3367
        %3541 = vmatprep.subr.mxu0 0.0
        %3542 = vmatpush1.msra.mxu0 %v3366
        %3543 = vmatprep.subr.mxu0 0.0
        %3544 = vmatpush1.msra.mxu0 %v3365
        %3545 = vmatprep.subr.mxu0 0.0
        %3546 = vmatpush1.msra.mxu0 %v3364
        %3547 = vmatprep.subr.mxu0 0.0
        %3548 = vmatpush2.msra.mxu0 %v3395
        %3549 = vmatprep.subr.mxu0 0.0
        %3550 = vmatpush2.msra.mxu0 %v3394
        %3551 = vmatprep.subr.mxu0 0.0
        %3552 = vmatpush2.msra.mxu0 %v3393
        %3553 = vmatprep.subr.mxu0 0.0
        %3554 = vmatpush2.msra.mxu0 %v3392
        %3555 = vmatprep.subr.mxu0 0.0
        %3556 = vmatpush2.msra.mxu0 %v3391
        %3557 = vmatprep.subr.mxu0 0.0
        %3558 = vmatpush2.msra.mxu0 %v3390
        %3559 = vmatprep.subr.mxu0 0.0
        %3560 = vmatpush2.msra.mxu0 %v3389
        %3561 = vmatprep.subr.mxu0 0.0
        %3562 = vmatpush2.msra.mxu0 %v3388
        %3563 = vmatprep.subr.mxu0 0.0
        %3564 = vmatpush2.msra.mxu0 %v3387
        %3565 = vmatprep.subr.mxu0 0.0
        %3566 = vmatpush2.msra.mxu0 %v3386
        %3567 = vmatprep.subr.mxu0 0.0
        %3568 = vmatpush2.msra.mxu0 %v3385
        %3569 = vmatprep.subr.mxu0 0.0
        %3570 = vmatpush2.msra.mxu0 %v3384
        %3571 = vmatprep.subr.mxu0 0.0
        %3572 = vmatpush2.msra.mxu0 %v3383
        %3573 = vmatprep.subr.mxu0 0.0
        %3574 = vmatpush2.msra.mxu0 %v3382
        %3575 = vmatprep.subr.mxu0 0.0
        %3576 = vmatpush2.msra.mxu0 %v3381
        %3577 = vmatprep.subr.mxu0 0.0
        %3578 = vmatpush2.msra.mxu0 %v3380
        %3579 = vmatprep.mubr.f32.mxu0 %v3077
        %3580 = vmatmul.mubr.f32.gmra.mxu0 %v3076
        %v3581 = vpop.f32.mrf.mxu0
        %v3582 = vadd.f32 %v3513, %v3581
        %v3583 = vpop.f32.mrf.mxu0
        %3584 = vmatprep.mubr.f32.mxu0 %v3086
        %3585 = vmatmul.mubr.f32.gmra.mxu0 %v3085
        %v3586 = vpop.f32.mrf.mxu0
        %v3587 = vadd.f32 %v3513, %v3586
        %v3588 = vpop.f32.mrf.mxu0
        %3589 = vmatprep.mubr.f32.mxu0 %v3095
        %3590 = vmatmul.mubr.f32.gmra.mxu0 %v3094
        %v3591 = vpop.f32.mrf.mxu0
        %v3592 = vadd.f32 %v3513, %v3591
        %v3593 = vpop.f32.mrf.mxu0
        %3594 = vmatprep.mubr.f32.mxu0 %v3104
        %3595 = vmatmul.mubr.f32.gmra.mxu0 %v3103
        %v3596 = vpop.f32.mrf.mxu0
        %v3597 = vadd.f32 %v3513, %v3596
        %v3598 = vpop.f32.mrf.mxu0
        %3599 = vmatprep.mubr.f32.mxu0 %v3113
        %3600 = vmatmul.mubr.f32.gmra.mxu0 %v3112
        %v3601 = vpop.f32.mrf.mxu0
        %v3602 = vadd.f32 %v3513, %v3601
        %v3603 = vpop.f32.mrf.mxu0
        %3604 = vmatprep.mubr.f32.mxu0 %v3122
        %3605 = vmatmul.mubr.f32.gmra.mxu0 %v3121
        %v3606 = vpop.f32.mrf.mxu0
        %v3607 = vadd.f32 %v3513, %v3606
        %v3608 = vpop.f32.mrf.mxu0
        %3609 = vmatprep.mubr.f32.mxu0 %v3131
        %3610 = vmatmul.mubr.f32.gmra.mxu0 %v3130
        %v3611 = vpop.f32.mrf.mxu0
        %v3612 = vadd.f32 %v3513, %v3611
        %v3613 = vpop.f32.mrf.mxu0
        %3614 = vmatprep.mubr.f32.mxu0 %v3140
        %3615 = vmatmul.mubr.f32.gmra.mxu0 %v3139
        %v3616 = vpop.f32.mrf.mxu0
        %v3617 = vadd.f32 %v3513, %v3616
        %v3618 = vpop.f32.mrf.mxu0
        %3619 = vmatprep.mubr.f32.mxu0 %v3149
        %3620 = vmatmul.mubr.f32.gmra.mxu0 %v3148
        %v3621 = vpop.f32.mrf.mxu0
        %v3622 = vadd.f32 %v3513, %v3621
        %v3623 = vpop.f32.mrf.mxu0
        %3624 = vmatprep.mubr.f32.mxu0 %v3158
        %3625 = vmatmul.mubr.f32.gmra.mxu0 %v3157
        %v3626 = vpop.f32.mrf.mxu0
        %v3627 = vadd.f32 %v3513, %v3626
        %v3628 = vpop.f32.mrf.mxu0
        %3629 = vmatprep.mubr.f32.mxu0 %v3167
        %3630 = vmatmul.mubr.f32.gmra.mxu0 %v3166
        %v3631 = vpop.f32.mrf.mxu0
        %v3632 = vadd.f32 %v3513, %v3631
        %v3633 = vpop.f32.mrf.mxu0
        %3634 = vmatprep.mubr.f32.mxu0 %v3176
        %3635 = vmatmul.mubr.f32.gmra.mxu0 %v3175
        %v3636 = vpop.f32.mrf.mxu0
        %v3637 = vadd.f32 %v3513, %v3636
        %v3638 = vpop.f32.mrf.mxu0
        %3639 = vmatprep.mubr.f32.mxu0 %v3185
        %3640 = vmatmul.mubr.f32.gmra.mxu0 %v3184
        %v3641 = vpop.f32.mrf.mxu0
        %v3642 = vadd.f32 %v3513, %v3641
        %v3643 = vpop.f32.mrf.mxu0
        %3644 = vmatprep.mubr.f32.mxu0 %v3194
        %3645 = vmatmul.mubr.f32.gmra.mxu0 %v3193
        %v3646 = vpop.f32.mrf.mxu0
        %v3647 = vadd.f32 %v3513, %v3646
        %v3648 = vpop.f32.mrf.mxu0
        %3649 = vmatprep.mubr.f32.mxu0 %v3203
        %3650 = vmatmul.mubr.f32.gmra.mxu0 %v3202
        %v3651 = vpop.f32.mrf.mxu0
        %v3652 = vadd.f32 %v3513, %v3651
        %v3653 = vpop.f32.mrf.mxu0
        %3654 = vmatprep.mubr.f32.mxu0 %v3212
        %3655 = vmatmul.mubr.f32.gmra.mxu0 %v3211
        %v3656 = vpop.f32.mrf.mxu0
        %v3657 = vadd.f32 %v3513, %v3656
        %v3658 = vpop.f32.mrf.mxu0
        %3659 = vmatprep.mubr.f32.mxu0 %v3221
        %3660 = vmatmul.mubr.f32.gmra.mxu0 %v3220
        %v3661 = vpop.f32.mrf.mxu0
        %v3662 = vadd.f32 %v3513, %v3661
        %v3663 = vpop.f32.mrf.mxu0
        %3664 = vmatprep.mubr.f32.mxu0 %v3230
        %3665 = vmatmul.mubr.f32.gmra.mxu0 %v3229
        %v3666 = vpop.f32.mrf.mxu0
        %v3667 = vadd.f32 %v3513, %v3666
        %v3668 = vpop.f32.mrf.mxu0
        %3669 = vmatprep.mubr.f32.mxu0 %v3239
        %3670 = vmatmul.mubr.f32.gmra.mxu0 %v3238
        %v3671 = vpop.f32.mrf.mxu0
        %v3672 = vadd.f32 %v3513, %v3671
        %v3673 = vpop.f32.mrf.mxu0
        %3674 = vmatprep.mubr.f32.mxu0 %v3248
        %3675 = vmatmul.mubr.f32.gmra.mxu0 %v3247
        %v3676 = vpop.f32.mrf.mxu0
        %v3677 = vadd.f32 %v3513, %v3676
        %v3678 = vpop.f32.mrf.mxu0
        %3679 = vmatprep.mubr.f32.mxu0 %v3257
        %3680 = vmatmul.mubr.f32.gmra.mxu0 %v3256
        %v3681 = vpop.f32.mrf.mxu0
        %v3682 = vadd.f32 %v3513, %v3681
        %v3683 = vpop.f32.mrf.mxu0
        %3684 = vmatprep.mubr.f32.mxu0 %v3266
        %3685 = vmatmul.mubr.f32.gmra.mxu0 %v3265
        %v3686 = vpop.f32.mrf.mxu0
        %v3687 = vadd.f32 %v3513, %v3686
        %v3688 = vpop.f32.mrf.mxu0
        %3689 = vmatprep.mubr.f32.mxu0 %v3275
        %3690 = vmatmul.mubr.f32.gmra.mxu0 %v3274
        %v3691 = vpop.f32.mrf.mxu0
        %v3692 = vadd.f32 %v3513, %v3691
        %v3693 = vpop.f32.mrf.mxu0
        %3694 = vmatprep.mubr.f32.mxu0 %v3284
        %3695 = vmatmul.mubr.f32.gmra.mxu0 %v3283
        %v3696 = vpop.f32.mrf.mxu0
        %v3697 = vadd.f32 %v3513, %v3696
        %v3698 = vpop.f32.mrf.mxu0
        %3699 = vmatprep.mubr.f32.mxu0 %v3293
        %3700 = vmatmul.mubr.f32.gmra.mxu0 %v3292
        %v3701 = vpop.f32.mrf.mxu0
        %v3702 = vadd.f32 %v3513, %v3701
        %v3703 = vpop.f32.mrf.mxu0
        %3704 = vmatprep.mubr.f32.mxu0 %v3302
        %3705 = vmatmul.mubr.f32.gmra.mxu0 %v3301
        %v3706 = vpop.f32.mrf.mxu0
        %v3707 = vadd.f32 %v3513, %v3706
        %v3708 = vpop.f32.mrf.mxu0
        %3709 = vmatprep.mubr.f32.mxu0 %v3311
        %3710 = vmatmul.mubr.f32.gmra.mxu0 %v3310
        %v3711 = vpop.f32.mrf.mxu0
        %v3712 = vadd.f32 %v3513, %v3711
        %v3713 = vpop.f32.mrf.mxu0
        %3714 = vmatprep.mubr.f32.mxu0 %v3320
        %3715 = vmatmul.mubr.f32.gmra.mxu0 %v3319
        %v3716 = vpop.f32.mrf.mxu0
        %v3717 = vadd.f32 %v3513, %v3716
        %v3718 = vpop.f32.mrf.mxu0
        %3719 = vmatprep.mubr.f32.mxu0 %v3329
        %3720 = vmatmul.mubr.f32.gmra.mxu0 %v3328
        %v3721 = vpop.f32.mrf.mxu0
        %v3722 = vadd.f32 %v3513, %v3721
        %v3723 = vpop.f32.mrf.mxu0
        %3724 = vmatprep.mubr.f32.mxu0 %v3338
        %3725 = vmatmul.mubr.f32.gmra.mxu0 %v3337
        %v3726 = vpop.f32.mrf.mxu0
        %v3727 = vadd.f32 %v3513, %v3726
        %v3728 = vpop.f32.mrf.mxu0
        %3729 = vmatprep.mubr.f32.mxu0 %v3347
        %3730 = vmatmul.mubr.f32.gmra.mxu0 %v3346
        %v3731 = vpop.f32.mrf.mxu0
        %v3732 = vadd.f32 %v3513, %v3731
        %v3733 = vpop.f32.mrf.mxu0
        %3734 = vmatprep.mubr.f32.mxu0 %v3356
        %3735 = vmatmul.mubr.f32.gmra.mxu0 %v3355
        %v3736 = vpop.f32.mrf.mxu0
        %v3737 = vadd.f32 %v3513, %v3736
        %v3738 = vpop.f32.mrf.mxu0
        %3739 = vdwg.mxu0
        %3740 = vmatprep.subr.mxu0 0.0
        %3741 = vmatpush1.msra.mxu0 %v3411
        %3742 = vmatprep.subr.mxu0 0.0
        %3743 = vmatpush1.msra.mxu0 %v3410
        %3744 = vmatprep.subr.mxu0 0.0
        %3745 = vmatpush1.msra.mxu0 %v3409
        %3746 = vmatprep.subr.mxu0 0.0
        %3747 = vmatpush1.msra.mxu0 %v3408
        %3748 = vmatprep.subr.mxu0 0.0
        %3749 = vmatpush1.msra.mxu0 %v3407
        %3750 = vmatprep.subr.mxu0 0.0
        %3751 = vmatpush1.msra.mxu0 %v3406
        %3752 = vmatprep.subr.mxu0 0.0
        %3753 = vmatpush1.msra.mxu0 %v3405
        %3754 = vmatprep.subr.mxu0 0.0
        %3755 = vmatpush1.msra.mxu0 %v3404
        %3756 = vmatprep.subr.mxu0 0.0
        %3757 = vmatpush1.msra.mxu0 %v3403
        %3758 = vmatprep.subr.mxu0 0.0
        %3759 = vmatpush1.msra.mxu0 %v3402
        %3760 = vmatprep.subr.mxu0 0.0
        %3761 = vmatpush1.msra.mxu0 %v3401
        %3762 = vmatprep.subr.mxu0 0.0
        %3763 = vmatpush1.msra.mxu0 %v3400
        %3764 = vmatprep.subr.mxu0 0.0
        %3765 = vmatpush1.msra.mxu0 %v3399
        %3766 = vmatprep.subr.mxu0 0.0
        %3767 = vmatpush1.msra.mxu0 %v3398
        %3768 = vmatprep.subr.mxu0 0.0
        %3769 = vmatpush1.msra.mxu0 %v3397
        %3770 = vmatprep.subr.mxu0 0.0
        %3771 = vmatpush1.msra.mxu0 %v3396
        %3772 = vmatprep.subr.mxu0 0.0
        %3773 = vmatpush2.msra.mxu0 %v3427
        %3774 = vmatprep.subr.mxu0 0.0
        %3775 = vmatpush2.msra.mxu0 %v3426
        %3776 = vmatprep.subr.mxu0 0.0
        %3777 = vmatpush2.msra.mxu0 %v3425
        %3778 = vmatprep.subr.mxu0 0.0
        %3779 = vmatpush2.msra.mxu0 %v3424
        %3780 = vmatprep.subr.mxu0 0.0
        %3781 = vmatpush2.msra.mxu0 %v3423
        %3782 = vmatprep.subr.mxu0 0.0
        %3783 = vmatpush2.msra.mxu0 %v3422
        %3784 = vmatprep.subr.mxu0 0.0
        %3785 = vmatpush2.msra.mxu0 %v3421
        %3786 = vmatprep.subr.mxu0 0.0
        %3787 = vmatpush2.msra.mxu0 %v3420
        %3788 = vmatprep.subr.mxu0 0.0
        %3789 = vmatpush2.msra.mxu0 %v3419
        %3790 = vmatprep.subr.mxu0 0.0
        %3791 = vmatpush2.msra.mxu0 %v3418
        %3792 = vmatprep.subr.mxu0 0.0
        %3793 = vmatpush2.msra.mxu0 %v3417
        %3794 = vmatprep.subr.mxu0 0.0
        %3795 = vmatpush2.msra.mxu0 %v3416
        %3796 = vmatprep.subr.mxu0 0.0
        %3797 = vmatpush2.msra.mxu0 %v3415
        %3798 = vmatprep.subr.mxu0 0.0
        %3799 = vmatpush2.msra.mxu0 %v3414
        %3800 = vmatprep.subr.mxu0 0.0
        %3801 = vmatpush2.msra.mxu0 %v3413
        %3802 = vmatprep.subr.mxu0 0.0
        %3803 = vmatpush2.msra.mxu0 %v3412
        %3804 = vmatprep.mubr.f32.mxu0 %v3079
        %3805 = vmatmul.mubr.f32.gmra.mxu0 %v3078
        %v3806 = vpop.f32.mrf.mxu0
        %v3807 = vadd.f32 %v3582, %v3806
        %v3808 = vpop.f32.mrf.mxu0
        %3809 = vmatprep.mubr.f32.mxu0 %v3088
        %3810 = vmatmul.mubr.f32.gmra.mxu0 %v3087
        %v3811 = vpop.f32.mrf.mxu0
        %v3812 = vadd.f32 %v3587, %v3811
        %v3813 = vpop.f32.mrf.mxu0
        %3814 = vmatprep.mubr.f32.mxu0 %v3097
        %3815 = vmatmul.mubr.f32.gmra.mxu0 %v3096
        %v3816 = vpop.f32.mrf.mxu0
        %v3817 = vadd.f32 %v3592, %v3816
        %v3818 = vpop.f32.mrf.mxu0
        %3819 = vmatprep.mubr.f32.mxu0 %v3106
        %3820 = vmatmul.mubr.f32.gmra.mxu0 %v3105
        %v3821 = vpop.f32.mrf.mxu0
        %v3822 = vadd.f32 %v3597, %v3821
        %v3823 = vpop.f32.mrf.mxu0
        %3824 = vmatprep.mubr.f32.mxu0 %v3115
        %3825 = vmatmul.mubr.f32.gmra.mxu0 %v3114
        %v3826 = vpop.f32.mrf.mxu0
        %v3827 = vadd.f32 %v3602, %v3826
        %v3828 = vpop.f32.mrf.mxu0
        %3829 = vmatprep.mubr.f32.mxu0 %v3124
        %3830 = vmatmul.mubr.f32.gmra.mxu0 %v3123
        %v3831 = vpop.f32.mrf.mxu0
        %v3832 = vadd.f32 %v3607, %v3831
        %v3833 = vpop.f32.mrf.mxu0
        %3834 = vmatprep.mubr.f32.mxu0 %v3133
        %3835 = vmatmul.mubr.f32.gmra.mxu0 %v3132
        %v3836 = vpop.f32.mrf.mxu0
        %v3837 = vadd.f32 %v3612, %v3836
        %v3838 = vpop.f32.mrf.mxu0
        %3839 = vmatprep.mubr.f32.mxu0 %v3142
        %3840 = vmatmul.mubr.f32.gmra.mxu0 %v3141
        %v3841 = vpop.f32.mrf.mxu0
        %v3842 = vadd.f32 %v3617, %v3841
        %v3843 = vpop.f32.mrf.mxu0
        %3844 = vmatprep.mubr.f32.mxu0 %v3151
        %3845 = vmatmul.mubr.f32.gmra.mxu0 %v3150
        %v3846 = vpop.f32.mrf.mxu0
        %v3847 = vadd.f32 %v3622, %v3846
        %v3848 = vpop.f32.mrf.mxu0
        %3849 = vmatprep.mubr.f32.mxu0 %v3160
        %3850 = vmatmul.mubr.f32.gmra.mxu0 %v3159
        %v3851 = vpop.f32.mrf.mxu0
        %v3852 = vadd.f32 %v3627, %v3851
        %v3853 = vpop.f32.mrf.mxu0
        %3854 = vmatprep.mubr.f32.mxu0 %v3169
        %3855 = vmatmul.mubr.f32.gmra.mxu0 %v3168
        %v3856 = vpop.f32.mrf.mxu0
        %v3857 = vadd.f32 %v3632, %v3856
        %v3858 = vpop.f32.mrf.mxu0
        %3859 = vmatprep.mubr.f32.mxu0 %v3178
        %3860 = vmatmul.mubr.f32.gmra.mxu0 %v3177
        %v3861 = vpop.f32.mrf.mxu0
        %v3862 = vadd.f32 %v3637, %v3861
        %v3863 = vpop.f32.mrf.mxu0
        %3864 = vmatprep.mubr.f32.mxu0 %v3187
        %3865 = vmatmul.mubr.f32.gmra.mxu0 %v3186
        %v3866 = vpop.f32.mrf.mxu0
        %v3867 = vadd.f32 %v3642, %v3866
        %v3868 = vpop.f32.mrf.mxu0
        %3869 = vmatprep.mubr.f32.mxu0 %v3196
        %3870 = vmatmul.mubr.f32.gmra.mxu0 %v3195
        %v3871 = vpop.f32.mrf.mxu0
        %v3872 = vadd.f32 %v3647, %v3871
        %v3873 = vpop.f32.mrf.mxu0
        %3874 = vmatprep.mubr.f32.mxu0 %v3205
        %3875 = vmatmul.mubr.f32.gmra.mxu0 %v3204
        %v3876 = vpop.f32.mrf.mxu0
        %v3877 = vadd.f32 %v3652, %v3876
        %v3878 = vpop.f32.mrf.mxu0
        %3879 = vmatprep.mubr.f32.mxu0 %v3214
        %3880 = vmatmul.mubr.f32.gmra.mxu0 %v3213
        %v3881 = vpop.f32.mrf.mxu0
        %v3882 = vadd.f32 %v3657, %v3881
        %v3883 = vpop.f32.mrf.mxu0
        %3884 = vmatprep.mubr.f32.mxu0 %v3223
        %3885 = vmatmul.mubr.f32.gmra.mxu0 %v3222
        %v3886 = vpop.f32.mrf.mxu0
        %v3887 = vadd.f32 %v3662, %v3886
        %v3888 = vpop.f32.mrf.mxu0
        %3889 = vmatprep.mubr.f32.mxu0 %v3232
        %3890 = vmatmul.mubr.f32.gmra.mxu0 %v3231
        %v3891 = vpop.f32.mrf.mxu0
        %v3892 = vadd.f32 %v3667, %v3891
        %v3893 = vpop.f32.mrf.mxu0
        %3894 = vmatprep.mubr.f32.mxu0 %v3241
        %3895 = vmatmul.mubr.f32.gmra.mxu0 %v3240
        %v3896 = vpop.f32.mrf.mxu0
        %v3897 = vadd.f32 %v3672, %v3896
        %v3898 = vpop.f32.mrf.mxu0
        %3899 = vmatprep.mubr.f32.mxu0 %v3250
        %3900 = vmatmul.mubr.f32.gmra.mxu0 %v3249
        %v3901 = vpop.f32.mrf.mxu0
        %v3902 = vadd.f32 %v3677, %v3901
        %v3903 = vpop.f32.mrf.mxu0
        %3904 = vmatprep.mubr.f32.mxu0 %v3259
        %3905 = vmatmul.mubr.f32.gmra.mxu0 %v3258
        %v3906 = vpop.f32.mrf.mxu0
        %v3907 = vadd.f32 %v3682, %v3906
        %v3908 = vpop.f32.mrf.mxu0
        %3909 = vmatprep.mubr.f32.mxu0 %v3268
        %3910 = vmatmul.mubr.f32.gmra.mxu0 %v3267
        %v3911 = vpop.f32.mrf.mxu0
        %v3912 = vadd.f32 %v3687, %v3911
        %v3913 = vpop.f32.mrf.mxu0
        %3914 = vmatprep.mubr.f32.mxu0 %v3277
        %3915 = vmatmul.mubr.f32.gmra.mxu0 %v3276
        %v3916 = vpop.f32.mrf.mxu0
        %v3917 = vadd.f32 %v3692, %v3916
        %v3918 = vpop.f32.mrf.mxu0
        %3919 = vmatprep.mubr.f32.mxu0 %v3286
        %3920 = vmatmul.mubr.f32.gmra.mxu0 %v3285
        %v3921 = vpop.f32.mrf.mxu0
        %v3922 = vadd.f32 %v3697, %v3921
        %v3923 = vpop.f32.mrf.mxu0
        %3924 = vmatprep.mubr.f32.mxu0 %v3295
        %3925 = vmatmul.mubr.f32.gmra.mxu0 %v3294
        %v3926 = vpop.f32.mrf.mxu0
        %v3927 = vadd.f32 %v3702, %v3926
        %v3928 = vpop.f32.mrf.mxu0
        %3929 = vmatprep.mubr.f32.mxu0 %v3304
        %3930 = vmatmul.mubr.f32.gmra.mxu0 %v3303
        %v3931 = vpop.f32.mrf.mxu0
        %v3932 = vadd.f32 %v3707, %v3931
        %v3933 = vpop.f32.mrf.mxu0
        %3934 = vmatprep.mubr.f32.mxu0 %v3313
        %3935 = vmatmul.mubr.f32.gmra.mxu0 %v3312
        %v3936 = vpop.f32.mrf.mxu0
        %v3937 = vadd.f32 %v3712, %v3936
        %v3938 = vpop.f32.mrf.mxu0
        %3939 = vmatprep.mubr.f32.mxu0 %v3322
        %3940 = vmatmul.mubr.f32.gmra.mxu0 %v3321
        %v3941 = vpop.f32.mrf.mxu0
        %v3942 = vadd.f32 %v3717, %v3941
        %v3943 = vpop.f32.mrf.mxu0
        %3944 = vmatprep.mubr.f32.mxu0 %v3331
        %3945 = vmatmul.mubr.f32.gmra.mxu0 %v3330
        %v3946 = vpop.f32.mrf.mxu0
        %v3947 = vadd.f32 %v3722, %v3946
        %v3948 = vpop.f32.mrf.mxu0
        %3949 = vmatprep.mubr.f32.mxu0 %v3340
        %3950 = vmatmul.mubr.f32.gmra.mxu0 %v3339
        %v3951 = vpop.f32.mrf.mxu0
        %v3952 = vadd.f32 %v3727, %v3951
        %v3953 = vpop.f32.mrf.mxu0
        %3954 = vmatprep.mubr.f32.mxu0 %v3349
        %3955 = vmatmul.mubr.f32.gmra.mxu0 %v3348
        %v3956 = vpop.f32.mrf.mxu0
        %v3957 = vadd.f32 %v3732, %v3956
        %v3958 = vpop.f32.mrf.mxu0
        %3959 = vmatprep.mubr.f32.mxu0 %v3358
        %3960 = vmatmul.mubr.f32.gmra.mxu0 %v3357
        %v3961 = vpop.f32.mrf.mxu0
        %v3962 = vadd.f32 %v3737, %v3961
        %v3963 = vpop.f32.mrf.mxu0
        %3964 = vdwg.mxu0
        %3965 = vmatprep.subr.mxu0 0.0
        %3966 = vmatpush1.msra.mxu0 %v3443
        %3967 = vmatprep.subr.mxu0 0.0
        %3968 = vmatpush1.msra.mxu0 %v3442
        %3969 = vmatprep.subr.mxu0 0.0
        %3970 = vmatpush1.msra.mxu0 %v3441
        %3971 = vmatprep.subr.mxu0 0.0
        %3972 = vmatpush1.msra.mxu0 %v3440
        %3973 = vmatprep.subr.mxu0 0.0
        %3974 = vmatpush1.msra.mxu0 %v3439
        %3975 = vmatprep.subr.mxu0 0.0
        %3976 = vmatpush1.msra.mxu0 %v3438
        %3977 = vmatprep.subr.mxu0 0.0
        %3978 = vmatpush1.msra.mxu0 %v3437
        %3979 = vmatprep.subr.mxu0 0.0
        %3980 = vmatpush1.msra.mxu0 %v3436
        %3981 = vmatprep.subr.mxu0 0.0
        %3982 = vmatpush1.msra.mxu0 %v3435
        %3983 = vmatprep.subr.mxu0 0.0
        %3984 = vmatpush1.msra.mxu0 %v3434
        %3985 = vmatprep.subr.mxu0 0.0
        %3986 = vmatpush1.msra.mxu0 %v3433
        %3987 = vmatprep.subr.mxu0 0.0
        %3988 = vmatpush1.msra.mxu0 %v3432
        %3989 = vmatprep.subr.mxu0 0.0
        %3990 = vmatpush1.msra.mxu0 %v3431
        %3991 = vmatprep.subr.mxu0 0.0
        %3992 = vmatpush1.msra.mxu0 %v3430
        %3993 = vmatprep.subr.mxu0 0.0
        %3994 = vmatpush1.msra.mxu0 %v3429
        %3995 = vmatprep.subr.mxu0 0.0
        %3996 = vmatpush1.msra.mxu0 %v3428
        %3997 = vmatprep.subr.mxu0 0.0
        %3998 = vmatpush2.msra.mxu0 %v3459
        %3999 = vmatprep.subr.mxu0 0.0
        %4000 = vmatpush2.msra.mxu0 %v3458
        %4001 = vmatprep.subr.mxu0 0.0
        %4002 = vmatpush2.msra.mxu0 %v3457
        %4003 = vmatprep.subr.mxu0 0.0
        %4004 = vmatpush2.msra.mxu0 %v3456
        %4005 = vmatprep.subr.mxu0 0.0
        %4006 = vmatpush2.msra.mxu0 %v3455
        %4007 = vmatprep.subr.mxu0 0.0
        %4008 = vmatpush2.msra.mxu0 %v3454
        %4009 = vmatprep.subr.mxu0 0.0
        %4010 = vmatpush2.msra.mxu0 %v3453
        %4011 = vmatprep.subr.mxu0 0.0
        %4012 = vmatpush2.msra.mxu0 %v3452
        %4013 = vmatprep.subr.mxu0 0.0
        %4014 = vmatpush2.msra.mxu0 %v3451
        %4015 = vmatprep.subr.mxu0 0.0
        %4016 = vmatpush2.msra.mxu0 %v3450
        %4017 = vmatprep.subr.mxu0 0.0
        %4018 = vmatpush2.msra.mxu0 %v3449
        %4019 = vmatprep.subr.mxu0 0.0
        %4020 = vmatpush2.msra.mxu0 %v3448
        %4021 = vmatprep.subr.mxu0 0.0
        %4022 = vmatpush2.msra.mxu0 %v3447
        %4023 = vmatprep.subr.mxu0 0.0
        %4024 = vmatpush2.msra.mxu0 %v3446
        %4025 = vmatprep.subr.mxu0 0.0
        %4026 = vmatpush2.msra.mxu0 %v3445
        %4027 = vmatprep.subr.mxu0 0.0
        %4028 = vmatpush2.msra.mxu0 %v3444
        %4029 = vmatprep.mubr.f32.mxu0 %v3081
        %4030 = vmatmul.mubr.f32.gmra.mxu0 %v3080
        %v4031 = vpop.f32.mrf.mxu0
        %v4032 = vadd.f32 %v3807, %v4031
        %v4033 = vpop.f32.mrf.mxu0
        %4034 = vmatprep.mubr.f32.mxu0 %v3090
        %4035 = vmatmul.mubr.f32.gmra.mxu0 %v3089
        %v4036 = vpop.f32.mrf.mxu0
        %v4037 = vadd.f32 %v3812, %v4036
        %v4038 = vpop.f32.mrf.mxu0
        %4039 = vmatprep.mubr.f32.mxu0 %v3099
        %4040 = vmatmul.mubr.f32.gmra.mxu0 %v3098
        %v4041 = vpop.f32.mrf.mxu0
        %v4042 = vadd.f32 %v3817, %v4041
        %v4043 = vpop.f32.mrf.mxu0
        %4044 = vmatprep.mubr.f32.mxu0 %v3108
        %4045 = vmatmul.mubr.f32.gmra.mxu0 %v3107
        %v4046 = vpop.f32.mrf.mxu0
        %v4047 = vadd.f32 %v3822, %v4046
        %v4048 = vpop.f32.mrf.mxu0
        %4049 = vmatprep.mubr.f32.mxu0 %v3117
        %4050 = vmatmul.mubr.f32.gmra.mxu0 %v3116
        %v4051 = vpop.f32.mrf.mxu0
        %v4052 = vadd.f32 %v3827, %v4051
        %v4053 = vpop.f32.mrf.mxu0
        %4054 = vmatprep.mubr.f32.mxu0 %v3126
        %4055 = vmatmul.mubr.f32.gmra.mxu0 %v3125
        %v4056 = vpop.f32.mrf.mxu0
        %v4057 = vadd.f32 %v3832, %v4056
        %v4058 = vpop.f32.mrf.mxu0
        %4059 = vmatprep.mubr.f32.mxu0 %v3135
        %4060 = vmatmul.mubr.f32.gmra.mxu0 %v3134
        %v4061 = vpop.f32.mrf.mxu0
        %v4062 = vadd.f32 %v3837, %v4061
        %v4063 = vpop.f32.mrf.mxu0
        %4064 = vmatprep.mubr.f32.mxu0 %v3144
        %4065 = vmatmul.mubr.f32.gmra.mxu0 %v3143
        %v4066 = vpop.f32.mrf.mxu0
        %v4067 = vadd.f32 %v3842, %v4066
        %v4068 = vpop.f32.mrf.mxu0
        %4069 = vmatprep.mubr.f32.mxu0 %v3153
        %4070 = vmatmul.mubr.f32.gmra.mxu0 %v3152
        %v4071 = vpop.f32.mrf.mxu0
        %v4072 = vadd.f32 %v3847, %v4071
        %v4073 = vpop.f32.mrf.mxu0
        %4074 = vmatprep.mubr.f32.mxu0 %v3162
        %4075 = vmatmul.mubr.f32.gmra.mxu0 %v3161
        %v4076 = vpop.f32.mrf.mxu0
        %v4077 = vadd.f32 %v3852, %v4076
        %v4078 = vpop.f32.mrf.mxu0
        %4079 = vmatprep.mubr.f32.mxu0 %v3171
        %4080 = vmatmul.mubr.f32.gmra.mxu0 %v3170
        %v4081 = vpop.f32.mrf.mxu0
        %v4082 = vadd.f32 %v3857, %v4081
        %v4083 = vpop.f32.mrf.mxu0
        %4084 = vmatprep.mubr.f32.mxu0 %v3180
        %4085 = vmatmul.mubr.f32.gmra.mxu0 %v3179
        %v4086 = vpop.f32.mrf.mxu0
        %v4087 = vadd.f32 %v3862, %v4086
        %v4088 = vpop.f32.mrf.mxu0
        %4089 = vmatprep.mubr.f32.mxu0 %v3189
        %4090 = vmatmul.mubr.f32.gmra.mxu0 %v3188
        %v4091 = vpop.f32.mrf.mxu0
        %v4092 = vadd.f32 %v3867, %v4091
        %v4093 = vpop.f32.mrf.mxu0
        %4094 = vmatprep.mubr.f32.mxu0 %v3198
        %4095 = vmatmul.mubr.f32.gmra.mxu0 %v3197
        %v4096 = vpop.f32.mrf.mxu0
        %v4097 = vadd.f32 %v3872, %v4096
        %v4098 = vpop.f32.mrf.mxu0
        %4099 = vmatprep.mubr.f32.mxu0 %v3207
        %4100 = vmatmul.mubr.f32.gmra.mxu0 %v3206
        %v4101 = vpop.f32.mrf.mxu0
        %v4102 = vadd.f32 %v3877, %v4101
        %v4103 = vpop.f32.mrf.mxu0
        %4104 = vmatprep.mubr.f32.mxu0 %v3216
        %4105 = vmatmul.mubr.f32.gmra.mxu0 %v3215
        %v4106 = vpop.f32.mrf.mxu0
        %v4107 = vadd.f32 %v3882, %v4106
        %v4108 = vpop.f32.mrf.mxu0
        %4109 = vmatprep.mubr.f32.mxu0 %v3225
        %4110 = vmatmul.mubr.f32.gmra.mxu0 %v3224
        %v4111 = vpop.f32.mrf.mxu0
        %v4112 = vadd.f32 %v3887, %v4111
        %v4113 = vpop.f32.mrf.mxu0
        %4114 = vmatprep.mubr.f32.mxu0 %v3234
        %4115 = vmatmul.mubr.f32.gmra.mxu0 %v3233
        %v4116 = vpop.f32.mrf.mxu0
        %v4117 = vadd.f32 %v3892, %v4116
        %v4118 = vpop.f32.mrf.mxu0
        %4119 = vmatprep.mubr.f32.mxu0 %v3243
        %4120 = vmatmul.mubr.f32.gmra.mxu0 %v3242
        %v4121 = vpop.f32.mrf.mxu0
        %v4122 = vadd.f32 %v3897, %v4121
        %v4123 = vpop.f32.mrf.mxu0
        %4124 = vmatprep.mubr.f32.mxu0 %v3252
        %4125 = vmatmul.mubr.f32.gmra.mxu0 %v3251
        %v4126 = vpop.f32.mrf.mxu0
        %v4127 = vadd.f32 %v3902, %v4126
        %v4128 = vpop.f32.mrf.mxu0
        %4129 = vmatprep.mubr.f32.mxu0 %v3261
        %4130 = vmatmul.mubr.f32.gmra.mxu0 %v3260
        %v4131 = vpop.f32.mrf.mxu0
        %v4132 = vadd.f32 %v3907, %v4131
        %v4133 = vpop.f32.mrf.mxu0
        %4134 = vmatprep.mubr.f32.mxu0 %v3270
        %4135 = vmatmul.mubr.f32.gmra.mxu0 %v3269
        %v4136 = vpop.f32.mrf.mxu0
        %v4137 = vadd.f32 %v3912, %v4136
        %v4138 = vpop.f32.mrf.mxu0
        %4139 = vmatprep.mubr.f32.mxu0 %v3279
        %4140 = vmatmul.mubr.f32.gmra.mxu0 %v3278
        %v4141 = vpop.f32.mrf.mxu0
        %v4142 = vadd.f32 %v3917, %v4141
        %v4143 = vpop.f32.mrf.mxu0
        %4144 = vmatprep.mubr.f32.mxu0 %v3288
        %4145 = vmatmul.mubr.f32.gmra.mxu0 %v3287
        %v4146 = vpop.f32.mrf.mxu0
        %v4147 = vadd.f32 %v3922, %v4146
        %v4148 = vpop.f32.mrf.mxu0
        %4149 = vmatprep.mubr.f32.mxu0 %v3297
        %4150 = vmatmul.mubr.f32.gmra.mxu0 %v3296
        %v4151 = vpop.f32.mrf.mxu0
        %v4152 = vadd.f32 %v3927, %v4151
        %v4153 = vpop.f32.mrf.mxu0
        %4154 = vmatprep.mubr.f32.mxu0 %v3306
        %4155 = vmatmul.mubr.f32.gmra.mxu0 %v3305
        %v4156 = vpop.f32.mrf.mxu0
        %v4157 = vadd.f32 %v3932, %v4156
        %v4158 = vpop.f32.mrf.mxu0
        %4159 = vmatprep.mubr.f32.mxu0 %v3315
        %4160 = vmatmul.mubr.f32.gmra.mxu0 %v3314
        %v4161 = vpop.f32.mrf.mxu0
        %v4162 = vadd.f32 %v3937, %v4161
        %v4163 = vpop.f32.mrf.mxu0
        %4164 = vmatprep.mubr.f32.mxu0 %v3324
        %4165 = vmatmul.mubr.f32.gmra.mxu0 %v3323
        %v4166 = vpop.f32.mrf.mxu0
        %v4167 = vadd.f32 %v3942, %v4166
        %v4168 = vpop.f32.mrf.mxu0
        %4169 = vmatprep.mubr.f32.mxu0 %v3333
        %4170 = vmatmul.mubr.f32.gmra.mxu0 %v3332
        %v4171 = vpop.f32.mrf.mxu0
        %v4172 = vadd.f32 %v3947, %v4171
        %v4173 = vpop.f32.mrf.mxu0
        %4174 = vmatprep.mubr.f32.mxu0 %v3342
        %4175 = vmatmul.mubr.f32.gmra.mxu0 %v3341
        %v4176 = vpop.f32.mrf.mxu0
        %v4177 = vadd.f32 %v3952, %v4176
        %v4178 = vpop.f32.mrf.mxu0
        %4179 = vmatprep.mubr.f32.mxu0 %v3351
        %4180 = vmatmul.mubr.f32.gmra.mxu0 %v3350
        %v4181 = vpop.f32.mrf.mxu0
        %v4182 = vadd.f32 %v3957, %v4181
        %v4183 = vpop.f32.mrf.mxu0
        %4184 = vmatprep.mubr.f32.mxu0 %v3360
        %4185 = vmatmul.mubr.f32.gmra.mxu0 %v3359
        %v4186 = vpop.f32.mrf.mxu0
        %v4187 = vadd.f32 %v3962, %v4186
        %v4188 = vpop.f32.mrf.mxu0
        %4189 = vdwg.mxu0
        %4190 = vmatprep.subr.mxu0 0.0
        %4191 = vmatpush1.msra.mxu0 %v3475
        %4192 = vmatprep.subr.mxu0 0.0
        %4193 = vmatpush1.msra.mxu0 %v3474
        %4194 = vmatprep.subr.mxu0 0.0
        %4195 = vmatpush1.msra.mxu0 %v3473
        %4196 = vmatprep.subr.mxu0 0.0
        %4197 = vmatpush1.msra.mxu0 %v3472
        %4198 = vmatprep.subr.mxu0 0.0
        %4199 = vmatpush1.msra.mxu0 %v3471
        %4200 = vmatprep.subr.mxu0 0.0
        %4201 = vmatpush1.msra.mxu0 %v3470
        %4202 = vmatprep.subr.mxu0 0.0
        %4203 = vmatpush1.msra.mxu0 %v3469
        %4204 = vmatprep.subr.mxu0 0.0
        %4205 = vmatpush1.msra.mxu0 %v3468
        %4206 = vmatprep.subr.mxu0 0.0
        %4207 = vmatpush1.msra.mxu0 %v3467
        %4208 = vmatprep.subr.mxu0 0.0
        %4209 = vmatpush1.msra.mxu0 %v3466
        %4210 = vmatprep.subr.mxu0 0.0
        %4211 = vmatpush1.msra.mxu0 %v3465
        %4212 = vmatprep.subr.mxu0 0.0
        %4213 = vmatpush1.msra.mxu0 %v3464
        %4214 = vmatprep.subr.mxu0 0.0
        %4215 = vmatpush1.msra.mxu0 %v3463
        %4216 = vmatprep.subr.mxu0 0.0
        %4217 = vmatpush1.msra.mxu0 %v3462
        %4218 = vmatprep.subr.mxu0 0.0
        %4219 = vmatpush1.msra.mxu0 %v3461
        %4220 = vmatprep.subr.mxu0 0.0
        %4221 = vmatpush1.msra.mxu0 %v3460
        %4222 = vmatprep.subr.mxu0 0.0
        %4223 = vmatpush2.msra.mxu0 %v3491
        %4224 = vmatprep.subr.mxu0 0.0
        %4225 = vmatpush2.msra.mxu0 %v3490
        %4226 = vmatprep.subr.mxu0 0.0
        %4227 = vmatpush2.msra.mxu0 %v3489
        %4228 = vmatprep.subr.mxu0 0.0
        %4229 = vmatpush2.msra.mxu0 %v3488
        %4230 = vmatprep.subr.mxu0 0.0
        %4231 = vmatpush2.msra.mxu0 %v3487
        %4232 = vmatprep.subr.mxu0 0.0
        %4233 = vmatpush2.msra.mxu0 %v3486
        %4234 = vmatprep.subr.mxu0 0.0
        %4235 = vmatpush2.msra.mxu0 %v3485
        %4236 = vmatprep.subr.mxu0 0.0
        %4237 = vmatpush2.msra.mxu0 %v3484
        %4238 = vmatprep.subr.mxu0 0.0
        %4239 = vmatpush2.msra.mxu0 %v3483
        %4240 = vmatprep.subr.mxu0 0.0
        %4241 = vmatpush2.msra.mxu0 %v3482
        %4242 = vmatprep.subr.mxu0 0.0
        %4243 = vmatpush2.msra.mxu0 %v3481
        %4244 = vmatprep.subr.mxu0 0.0
        %4245 = vmatpush2.msra.mxu0 %v3480
        %4246 = vmatprep.subr.mxu0 0.0
        %4247 = vmatpush2.msra.mxu0 %v3479
        %4248 = vmatprep.subr.mxu0 0.0
        %4249 = vmatpush2.msra.mxu0 %v3478
        %4250 = vmatprep.subr.mxu0 0.0
        %4251 = vmatpush2.msra.mxu0 %v3477
        %4252 = vmatprep.subr.mxu0 0.0
        %4253 = vmatpush2.msra.mxu0 %v3476
        %4254 = vmatprep.mubr.f32.mxu0 %v3083
        %4255 = vmatmul.mubr.f32.gmra.mxu0 %v3082
        %v4256 = vpop.f32.mrf.mxu0
        %v4257 = vadd.f32 %v4032, %v4256
        %v4258 = vpop.f32.mrf.mxu0
        %4259 = vmatprep.mubr.f32.mxu0 %v3092
        %4260 = vmatmul.mubr.f32.gmra.mxu0 %v3091
        %v4261 = vpop.f32.mrf.mxu0
        %v4262 = vadd.f32 %v4037, %v4261
        %v4263 = vpop.f32.mrf.mxu0
        %4264 = vmatprep.mubr.f32.mxu0 %v3101
        %4265 = vmatmul.mubr.f32.gmra.mxu0 %v3100
        %v4266 = vpop.f32.mrf.mxu0
        %v4267 = vadd.f32 %v4042, %v4266
        %v4268 = vpop.f32.mrf.mxu0
        %4269 = vmatprep.mubr.f32.mxu0 %v3110
        %4270 = vmatmul.mubr.f32.gmra.mxu0 %v3109
        %v4271 = vpop.f32.mrf.mxu0
        %v4272 = vadd.f32 %v4047, %v4271
        %v4273 = vpop.f32.mrf.mxu0
        %4274 = vmatprep.mubr.f32.mxu0 %v3119
        %4275 = vmatmul.mubr.f32.gmra.mxu0 %v3118
        %v4276 = vpop.f32.mrf.mxu0
        %v4277 = vadd.f32 %v4052, %v4276
        %v4278 = vpop.f32.mrf.mxu0
        %4279 = vmatprep.mubr.f32.mxu0 %v3128
        %4280 = vmatmul.mubr.f32.gmra.mxu0 %v3127
        %v4281 = vpop.f32.mrf.mxu0
        %v4282 = vadd.f32 %v4057, %v4281
        %v4283 = vpop.f32.mrf.mxu0
        %4284 = vmatprep.mubr.f32.mxu0 %v3137
        %4285 = vmatmul.mubr.f32.gmra.mxu0 %v3136
        %v4286 = vpop.f32.mrf.mxu0
        %v4287 = vadd.f32 %v4062, %v4286
        %v4288 = vpop.f32.mrf.mxu0
        %4289 = vmatprep.mubr.f32.mxu0 %v3146
        %4290 = vmatmul.mubr.f32.gmra.mxu0 %v3145
        %v4291 = vpop.f32.mrf.mxu0
        %v4292 = vadd.f32 %v4067, %v4291
        %v4293 = vpop.f32.mrf.mxu0
        %4294 = vmatprep.mubr.f32.mxu0 %v3155
        %4295 = vmatmul.mubr.f32.gmra.mxu0 %v3154
        %v4296 = vpop.f32.mrf.mxu0
        %v4297 = vadd.f32 %v4072, %v4296
        %v4298 = vpop.f32.mrf.mxu0
        %4299 = vmatprep.mubr.f32.mxu0 %v3164
        %4300 = vmatmul.mubr.f32.gmra.mxu0 %v3163
        %v4301 = vpop.f32.mrf.mxu0
        %v4302 = vadd.f32 %v4077, %v4301
        %v4303 = vpop.f32.mrf.mxu0
        %4304 = vmatprep.mubr.f32.mxu0 %v3173
        %4305 = vmatmul.mubr.f32.gmra.mxu0 %v3172
        %v4306 = vpop.f32.mrf.mxu0
        %v4307 = vadd.f32 %v4082, %v4306
        %v4308 = vpop.f32.mrf.mxu0
        %4309 = vmatprep.mubr.f32.mxu0 %v3182
        %4310 = vmatmul.mubr.f32.gmra.mxu0 %v3181
        %v4311 = vpop.f32.mrf.mxu0
        %v4312 = vadd.f32 %v4087, %v4311
        %v4313 = vpop.f32.mrf.mxu0
        %4314 = vmatprep.mubr.f32.mxu0 %v3191
        %4315 = vmatmul.mubr.f32.gmra.mxu0 %v3190
        %v4316 = vpop.f32.mrf.mxu0
        %v4317 = vadd.f32 %v4092, %v4316
        %v4318 = vpop.f32.mrf.mxu0
        %4319 = vmatprep.mubr.f32.mxu0 %v3200
        %4320 = vmatmul.mubr.f32.gmra.mxu0 %v3199
        %v4321 = vpop.f32.mrf.mxu0
        %v4322 = vadd.f32 %v4097, %v4321
        %v4323 = vpop.f32.mrf.mxu0
        %4324 = vmatprep.mubr.f32.mxu0 %v3209
        %4325 = vmatmul.mubr.f32.gmra.mxu0 %v3208
        %v4326 = vpop.f32.mrf.mxu0
        %v4327 = vadd.f32 %v4102, %v4326
        %v4328 = vpop.f32.mrf.mxu0
        %4329 = vmatprep.mubr.f32.mxu0 %v3218
        %4330 = vmatmul.mubr.f32.gmra.mxu0 %v3217
        %v4331 = vpop.f32.mrf.mxu0
        %v4332 = vadd.f32 %v4107, %v4331
        %v4333 = vpop.f32.mrf.mxu0
        %4334 = vmatprep.mubr.f32.mxu0 %v3227
        %4335 = vmatmul.mubr.f32.gmra.mxu0 %v3226
        %v4336 = vpop.f32.mrf.mxu0
        %v4337 = vadd.f32 %v4112, %v4336
        %v4338 = vpop.f32.mrf.mxu0
        %4339 = vmatprep.mubr.f32.mxu0 %v3236
        %4340 = vmatmul.mubr.f32.gmra.mxu0 %v3235
        %v4341 = vpop.f32.mrf.mxu0
        %v4342 = vadd.f32 %v4117, %v4341
        %v4343 = vpop.f32.mrf.mxu0
        %4344 = vmatprep.mubr.f32.mxu0 %v3245
        %4345 = vmatmul.mubr.f32.gmra.mxu0 %v3244
        %v4346 = vpop.f32.mrf.mxu0
        %v4347 = vadd.f32 %v4122, %v4346
        %v4348 = vpop.f32.mrf.mxu0
        %4349 = vmatprep.mubr.f32.mxu0 %v3254
        %4350 = vmatmul.mubr.f32.gmra.mxu0 %v3253
        %v4351 = vpop.f32.mrf.mxu0
        %v4352 = vadd.f32 %v4127, %v4351
        %v4353 = vpop.f32.mrf.mxu0
        %4354 = vmatprep.mubr.f32.mxu0 %v3263
        %4355 = vmatmul.mubr.f32.gmra.mxu0 %v3262
        %v4356 = vpop.f32.mrf.mxu0
        %v4357 = vadd.f32 %v4132, %v4356
        %v4358 = vpop.f32.mrf.mxu0
        %4359 = vmatprep.mubr.f32.mxu0 %v3272
        %4360 = vmatmul.mubr.f32.gmra.mxu0 %v3271
        %v4361 = vpop.f32.mrf.mxu0
        %v4362 = vadd.f32 %v4137, %v4361
        %v4363 = vpop.f32.mrf.mxu0
        %4364 = vmatprep.mubr.f32.mxu0 %v3281
        %4365 = vmatmul.mubr.f32.gmra.mxu0 %v3280
        %v4366 = vpop.f32.mrf.mxu0
        %v4367 = vadd.f32 %v4142, %v4366
        %v4368 = vpop.f32.mrf.mxu0
        %4369 = vmatprep.mubr.f32.mxu0 %v3290
        %4370 = vmatmul.mubr.f32.gmra.mxu0 %v3289
        %v4371 = vpop.f32.mrf.mxu0
        %v4372 = vadd.f32 %v4147, %v4371
        %v4373 = vpop.f32.mrf.mxu0
        %4374 = vmatprep.mubr.f32.mxu0 %v3299
        %4375 = vmatmul.mubr.f32.gmra.mxu0 %v3298
        %v4376 = vpop.f32.mrf.mxu0
        %v4377 = vadd.f32 %v4152, %v4376
        %v4378 = vpop.f32.mrf.mxu0
        %4379 = vmatprep.mubr.f32.mxu0 %v3308
        %4380 = vmatmul.mubr.f32.gmra.mxu0 %v3307
        %v4381 = vpop.f32.mrf.mxu0
        %v4382 = vadd.f32 %v4157, %v4381
        %v4383 = vpop.f32.mrf.mxu0
        %4384 = vmatprep.mubr.f32.mxu0 %v3317
        %4385 = vmatmul.mubr.f32.gmra.mxu0 %v3316
        %v4386 = vpop.f32.mrf.mxu0
        %v4387 = vadd.f32 %v4162, %v4386
        %v4388 = vpop.f32.mrf.mxu0
        %4389 = vmatprep.mubr.f32.mxu0 %v3326
        %4390 = vmatmul.mubr.f32.gmra.mxu0 %v3325
        %v4391 = vpop.f32.mrf.mxu0
        %v4392 = vadd.f32 %v4167, %v4391
        %v4393 = vpop.f32.mrf.mxu0
        %4394 = vmatprep.mubr.f32.mxu0 %v3335
        %4395 = vmatmul.mubr.f32.gmra.mxu0 %v3334
        %v4396 = vpop.f32.mrf.mxu0
        %v4397 = vadd.f32 %v4172, %v4396
        %v4398 = vpop.f32.mrf.mxu0
        %4399 = vmatprep.mubr.f32.mxu0 %v3344
        %4400 = vmatmul.mubr.f32.gmra.mxu0 %v3343
        %v4401 = vpop.f32.mrf.mxu0
        %v4402 = vadd.f32 %v4177, %v4401
        %v4403 = vpop.f32.mrf.mxu0
        %4404 = vmatprep.mubr.f32.mxu0 %v3353
        %4405 = vmatmul.mubr.f32.gmra.mxu0 %v3352
        %v4406 = vpop.f32.mrf.mxu0
        %v4407 = vadd.f32 %v4182, %v4406
        %v4408 = vpop.f32.mrf.mxu0
        %4409 = vmatprep.mubr.f32.mxu0 %v3362
        %4410 = vmatmul.mubr.f32.gmra.mxu0 %v3361
        %v4411 = vpop.f32.mrf.mxu0
        %v4412 = vadd.f32 %v4187, %v4411
        %v4413 = vpop.f32.mrf.mxu0
        %4414 = vdwg.mxu0
        %4415 = vmatprep.subr.mxu0 0.0
        %4416 = vmatpush1.msra.mxu0 %v3507
        %4417 = vmatprep.subr.mxu0 0.0
        %4418 = vmatpush1.msra.mxu0 %v3506
        %4419 = vmatprep.subr.mxu0 0.0
        %4420 = vmatpush1.msra.mxu0 %v3505
        %4421 = vmatprep.subr.mxu0 0.0
        %4422 = vmatpush1.msra.mxu0 %v3504
        %4423 = vmatprep.subr.mxu0 0.0
        %4424 = vmatpush1.msra.mxu0 %v3503
        %4425 = vmatprep.subr.mxu0 0.0
        %4426 = vmatpush1.msra.mxu0 %v3502
        %4427 = vmatprep.subr.mxu0 0.0
        %4428 = vmatpush1.msra.mxu0 %v3501
        %4429 = vmatprep.subr.mxu0 0.0
        %4430 = vmatpush1.msra.mxu0 %v3500
        %4431 = vmatprep.subr.mxu0 0.0
        %4432 = vmatpush1.msra.mxu0 %v3499
        %4433 = vmatprep.subr.mxu0 0.0
        %4434 = vmatpush1.msra.mxu0 %v3498
        %4435 = vmatprep.subr.mxu0 0.0
        %4436 = vmatpush1.msra.mxu0 %v3497
        %4437 = vmatprep.subr.mxu0 0.0
        %4438 = vmatpush1.msra.mxu0 %v3496
        %4439 = vmatprep.subr.mxu0 0.0
        %4440 = vmatpush1.msra.mxu0 %v3495
        %4441 = vmatprep.subr.mxu0 0.0
        %4442 = vmatpush1.msra.mxu0 %v3494
        %4443 = vmatprep.subr.mxu0 0.0
        %4444 = vmatpush1.msra.mxu0 %v3493
        %4445 = vmatprep.subr.mxu0 0.0
        %4446 = vmatpush1.msra.mxu0 %v3492
        %4447 = vmatprep.subr.mxu0 0.0
        %4448 = vmatpush2.msra.mxu0 0.0
        %4449 = vmatprep.subr.mxu0 0.0
        %4450 = vmatpush2.msra.mxu0 0.0
        %4451 = vmatprep.subr.mxu0 0.0
        %4452 = vmatpush2.msra.mxu0 0.0
        %4453 = vmatprep.subr.mxu0 0.0
        %4454 = vmatpush2.msra.mxu0 0.0
        %4455 = vmatprep.subr.mxu0 0.0
        %4456 = vmatpush2.msra.mxu0 0.0
        %4457 = vmatprep.subr.mxu0 0.0
        %4458 = vmatpush2.msra.mxu0 0.0
        %4459 = vmatprep.subr.mxu0 0.0
        %4460 = vmatpush2.msra.mxu0 0.0
        %4461 = vmatprep.subr.mxu0 0.0
        %4462 = vmatpush2.msra.mxu0 0.0
        %4463 = vmatprep.subr.mxu0 0.0
        %4464 = vmatpush2.msra.mxu0 0.0
        %4465 = vmatprep.subr.mxu0 0.0
        %4466 = vmatpush2.msra.mxu0 0.0
        %4467 = vmatprep.subr.mxu0 0.0
        %4468 = vmatpush2.msra.mxu0 0.0
        %4469 = vmatprep.subr.mxu0 0.0
        %4470 = vmatpush2.msra.mxu0 0.0
        %4471 = vmatprep.subr.mxu0 0.0
        %4472 = vmatpush2.msra.mxu0 0.0
        %4473 = vmatprep.subr.mxu0 0.0
        %4474 = vmatpush2.msra.mxu0 0.0
        %4475 = vmatprep.subr.mxu0 0.0
        %4476 = vmatpush2.msra.mxu0 0.0
        %4477 = vmatprep.subr.mxu0 0.0
        %4478 = vmatpush2.msra.mxu0 0.0
        %4479 = vmatprep.mubr.f32.mxu0 0.0
        %4480 = vmatmul.mubr.f32.gmra.mxu0 %v3084
        %v4481 = vpop.f32.mrf.mxu0
        %v4482 = vadd.f32 %v4257, %v4481
        %v4483 = vpop.f32.mrf.mxu0
        %4484 = vmatprep.mubr.f32.mxu0 0.0
        %4485 = vmatmul.mubr.f32.gmra.mxu0 %v3093
        %v4486 = vpop.f32.mrf.mxu0
        %v4487 = vadd.f32 %v4262, %v4486
        %v4488 = vpop.f32.mrf.mxu0
        %4489 = vmatprep.mubr.f32.mxu0 0.0
        %4490 = vmatmul.mubr.f32.gmra.mxu0 %v3102
        %v4491 = vpop.f32.mrf.mxu0
        %v4492 = vadd.f32 %v4267, %v4491
        %v4493 = vpop.f32.mrf.mxu0
        %4494 = vmatprep.mubr.f32.mxu0 0.0
        %4495 = vmatmul.mubr.f32.gmra.mxu0 %v3111
        %v4496 = vpop.f32.mrf.mxu0
        %v4497 = vadd.f32 %v4272, %v4496
        %v4498 = vpop.f32.mrf.mxu0
        %4499 = vmatprep.mubr.f32.mxu0 0.0
        %4500 = vmatmul.mubr.f32.gmra.mxu0 %v3120
        %v4501 = vpop.f32.mrf.mxu0
        %v4502 = vadd.f32 %v4277, %v4501
        %v4503 = vpop.f32.mrf.mxu0
        %4504 = vmatprep.mubr.f32.mxu0 0.0
        %4505 = vmatmul.mubr.f32.gmra.mxu0 %v3129
        %v4506 = vpop.f32.mrf.mxu0
        %v4507 = vadd.f32 %v4282, %v4506
        %v4508 = vpop.f32.mrf.mxu0
        %4509 = vmatprep.mubr.f32.mxu0 0.0
        %4510 = vmatmul.mubr.f32.gmra.mxu0 %v3138
        %v4511 = vpop.f32.mrf.mxu0
        %v4512 = vadd.f32 %v4287, %v4511
        %v4513 = vpop.f32.mrf.mxu0
        %4514 = vmatprep.mubr.f32.mxu0 0.0
        %4515 = vmatmul.mubr.f32.gmra.mxu0 %v3147
        %v4516 = vpop.f32.mrf.mxu0
        %v4517 = vadd.f32 %v4292, %v4516
        %v4518 = vpop.f32.mrf.mxu0
        %4519 = vmatprep.mubr.f32.mxu0 0.0
        %4520 = vmatmul.mubr.f32.gmra.mxu0 %v3156
        %v4521 = vpop.f32.mrf.mxu0
        %v4522 = vadd.f32 %v4297, %v4521
        %v4523 = vpop.f32.mrf.mxu0
        %4524 = vmatprep.mubr.f32.mxu0 0.0
        %4525 = vmatmul.mubr.f32.gmra.mxu0 %v3165
        %v4526 = vpop.f32.mrf.mxu0
        %v4527 = vadd.f32 %v4302, %v4526
        %v4528 = vpop.f32.mrf.mxu0
        %4529 = vmatprep.mubr.f32.mxu0 0.0
        %4530 = vmatmul.mubr.f32.gmra.mxu0 %v3174
        %v4531 = vpop.f32.mrf.mxu0
        %v4532 = vadd.f32 %v4307, %v4531
        %v4533 = vpop.f32.mrf.mxu0
        %4534 = vmatprep.mubr.f32.mxu0 0.0
        %4535 = vmatmul.mubr.f32.gmra.mxu0 %v3183
        %v4536 = vpop.f32.mrf.mxu0
        %v4537 = vadd.f32 %v4312, %v4536
        %v4538 = vpop.f32.mrf.mxu0
        %4539 = vmatprep.mubr.f32.mxu0 0.0
        %4540 = vmatmul.mubr.f32.gmra.mxu0 %v3192
        %v4541 = vpop.f32.mrf.mxu0
        %v4542 = vadd.f32 %v4317, %v4541
        %v4543 = vpop.f32.mrf.mxu0
        %4544 = vmatprep.mubr.f32.mxu0 0.0
        %4545 = vmatmul.mubr.f32.gmra.mxu0 %v3201
        %v4546 = vpop.f32.mrf.mxu0
        %v4547 = vadd.f32 %v4322, %v4546
        %v4548 = vpop.f32.mrf.mxu0
        %4549 = vmatprep.mubr.f32.mxu0 0.0
        %4550 = vmatmul.mubr.f32.gmra.mxu0 %v3210
        %v4551 = vpop.f32.mrf.mxu0
        %v4552 = vadd.f32 %v4327, %v4551
        %v4553 = vpop.f32.mrf.mxu0
        %4554 = vmatprep.mubr.f32.mxu0 0.0
        %4555 = vmatmul.mubr.f32.gmra.mxu0 %v3219
        %v4556 = vpop.f32.mrf.mxu0
        %v4557 = vadd.f32 %v4332, %v4556
        %v4558 = vpop.f32.mrf.mxu0
        %4559 = vmatprep.mubr.f32.mxu0 0.0
        %4560 = vmatmul.mubr.f32.gmra.mxu0 %v3228
        %v4561 = vpop.f32.mrf.mxu0
        %v4562 = vadd.f32 %v4337, %v4561
        %v4563 = vpop.f32.mrf.mxu0
        %4564 = vmatprep.mubr.f32.mxu0 0.0
        %4565 = vmatmul.mubr.f32.gmra.mxu0 %v3237
        %v4566 = vpop.f32.mrf.mxu0
        %v4567 = vadd.f32 %v4342, %v4566
        %v4568 = vpop.f32.mrf.mxu0
        %4569 = vmatprep.mubr.f32.mxu0 0.0
        %4570 = vmatmul.mubr.f32.gmra.mxu0 %v3246
        %v4571 = vpop.f32.mrf.mxu0
        %v4572 = vadd.f32 %v4347, %v4571
        %v4573 = vpop.f32.mrf.mxu0
        %4574 = vmatprep.mubr.f32.mxu0 0.0
        %4575 = vmatmul.mubr.f32.gmra.mxu0 %v3255
        %v4576 = vpop.f32.mrf.mxu0
        %v4577 = vadd.f32 %v4352, %v4576
        %v4578 = vpop.f32.mrf.mxu0
        %4579 = vmatprep.mubr.f32.mxu0 0.0
        %4580 = vmatmul.mubr.f32.gmra.mxu0 %v3264
        %v4581 = vpop.f32.mrf.mxu0
        %v4582 = vadd.f32 %v4357, %v4581
        %v4583 = vpop.f32.mrf.mxu0
        %4584 = vmatprep.mubr.f32.mxu0 0.0
        %4585 = vmatmul.mubr.f32.gmra.mxu0 %v3273
        %v4586 = vpop.f32.mrf.mxu0
        %v4587 = vadd.f32 %v4362, %v4586
        %v4588 = vpop.f32.mrf.mxu0
        %4589 = vmatprep.mubr.f32.mxu0 0.0
        %4590 = vmatmul.mubr.f32.gmra.mxu0 %v3282
        %v4591 = vpop.f32.mrf.mxu0
        %v4592 = vadd.f32 %v4367, %v4591
        %v4593 = vpop.f32.mrf.mxu0
        %4594 = vmatprep.mubr.f32.mxu0 0.0
        %4595 = vmatmul.mubr.f32.gmra.mxu0 %v3291
        %v4596 = vpop.f32.mrf.mxu0
        %v4597 = vadd.f32 %v4372, %v4596
        %v4598 = vpop.f32.mrf.mxu0
        %4599 = vmatprep.mubr.f32.mxu0 0.0
        %4600 = vmatmul.mubr.f32.gmra.mxu0 %v3300
        %v4601 = vpop.f32.mrf.mxu0
        %v4602 = vadd.f32 %v4377, %v4601
        %v4603 = vpop.f32.mrf.mxu0
        %4604 = vmatprep.mubr.f32.mxu0 0.0
        %4605 = vmatmul.mubr.f32.gmra.mxu0 %v3309
        %v4606 = vpop.f32.mrf.mxu0
        %v4607 = vadd.f32 %v4382, %v4606
        %v4608 = vpop.f32.mrf.mxu0
        %4609 = vmatprep.mubr.f32.mxu0 0.0
        %4610 = vmatmul.mubr.f32.gmra.mxu0 %v3318
        %v4611 = vpop.f32.mrf.mxu0
        %v4612 = vadd.f32 %v4387, %v4611
        %v4613 = vpop.f32.mrf.mxu0
        %4614 = vmatprep.mubr.f32.mxu0 0.0
        %4615 = vmatmul.mubr.f32.gmra.mxu0 %v3327
        %v4616 = vpop.f32.mrf.mxu0
        %v4617 = vadd.f32 %v4392, %v4616
        %v4618 = vpop.f32.mrf.mxu0
        %4619 = vmatprep.mubr.f32.mxu0 0.0
        %4620 = vmatmul.mubr.f32.gmra.mxu0 %v3336
        %v4621 = vpop.f32.mrf.mxu0
        %v4622 = vadd.f32 %v4397, %v4621
        %v4623 = vpop.f32.mrf.mxu0
        %4624 = vmatprep.mubr.f32.mxu0 0.0
        %4625 = vmatmul.mubr.f32.gmra.mxu0 %v3345
        %v4626 = vpop.f32.mrf.mxu0
        %v4627 = vadd.f32 %v4402, %v4626
        %v4628 = vpop.f32.mrf.mxu0
        %4629 = vmatprep.mubr.f32.mxu0 0.0
        %4630 = vmatmul.mubr.f32.gmra.mxu0 %v3354
        %v4631 = vpop.f32.mrf.mxu0
        %v4632 = vadd.f32 %v4407, %v4631
        %v4633 = vpop.f32.mrf.mxu0
        %4634 = vmatprep.mubr.f32.mxu0 0.0
        %4635 = vmatmul.mubr.f32.gmra.mxu0 %v3363
        %v4636 = vpop.f32.mrf.mxu0
        %v4637 = vadd.f32 %v4412, %v4636
        %v4638 = vpop.f32.mrf.mxu0
        %4639 = vdwg.mxu0
        %v4640 = vld [vmem:[%s430 + $0x1] sm:$0xff]
        %v4641 = vld [vmem:[%s430 + $0x9] sm:$0xff]
        %v4642 = vld [vmem:[%s430 + $0x19] sm:$0xff]
        %v4643 = vld [vmem:[%s430 + $0x21] sm:$0xff]
        %v4644 = vld [vmem:[%s430 + $0x31] sm:$0xff]
        %v4645 = vld [vmem:[%s430 + $0x39] sm:$0xff]
        %v4646 = vld [vmem:[%s430 + $0x49] sm:$0xff]
        %v4647 = vld [vmem:[%s430 + $0x51] sm:$0xff]
        %v4648 = vld [vmem:[%s430 + $0x61] sm:$0xff]
        %v4649 = vld [vmem:[%s430 + $0x69] sm:$0xff]
        %v4650 = vld [vmem:[%s430 + $0x79] sm:$0xff]
        %v4651 = vld [vmem:[%s430 + $0x81] sm:$0xff]
        %v4652 = vld [vmem:[%s430 + $0x91] sm:$0xff]
        %v4653 = vld [vmem:[%s430 + $0x99] sm:$0xff]
        %v4654 = vld [vmem:[%s430 + $0xa9] sm:$0xff]
        %v4655 = vld [vmem:[%s430 + $0xb1] sm:$0xff]
        %v4656 = vld [vmem:[%s430 + $0xc1] sm:$0xff]
        %v4657 = vld [vmem:[%s430 + $0xc9] sm:$0xff]
        %v4658 = vld [vmem:[%s430 + $0xd9] sm:$0xff]
        %v4659 = vld [vmem:[%s430 + $0xe1] sm:$0xff]
        %v4660 = vld [vmem:[%s430 + $0xf1] sm:$0xff]
        %v4661 = vld [vmem:[%s430 + $0xf9] sm:$0xff]
        %v4662 = vld [vmem:[%s430 + $0x109] sm:$0xff]
        %v4663 = vld [vmem:[%s430 + $0x111] sm:$0xff]
        %v4664 = vld [vmem:[%s430 + $0x121] sm:$0xff]
        %v4665 = vld [vmem:[%s430 + $0x129] sm:$0xff]
        %v4666 = vld [vmem:[%s430 + $0x139] sm:$0xff]
        %v4667 = vld [vmem:[%s430 + $0x141] sm:$0xff]
        %v4668 = vld [vmem:[%s430 + $0x151] sm:$0xff]
        %v4669 = vld [vmem:[%s430 + $0x159] sm:$0xff]
        %v4670 = vld [vmem:[%s430 + $0x169] sm:$0xff]
        %v4671 = vld [vmem:[%s430 + $0x171] sm:$0xff]
        %v4672 = vadd.f32 %v4482, %v4640
        %v4673 = vadd.f32 %v4487, %v4641
        %v4674 = vadd.f32 %v4492, %v4642
        %v4675 = vadd.f32 %v4497, %v4643
        %v4676 = vadd.f32 %v4502, %v4644
        %v4677 = vadd.f32 %v4507, %v4645
        %v4678 = vadd.f32 %v4512, %v4646
        %v4679 = vadd.f32 %v4517, %v4647
        %v4680 = vadd.f32 %v4522, %v4648
        %v4681 = vadd.f32 %v4527, %v4649
        %v4682 = vadd.f32 %v4532, %v4650
        %v4683 = vadd.f32 %v4537, %v4651
        %v4684 = vadd.f32 %v4542, %v4652
        %v4685 = vadd.f32 %v4547, %v4653
        %v4686 = vadd.f32 %v4552, %v4654
        %v4687 = vadd.f32 %v4557, %v4655
        %v4688 = vadd.f32 %v4562, %v4656
        %v4689 = vadd.f32 %v4567, %v4657
        %v4690 = vadd.f32 %v4572, %v4658
        %v4691 = vadd.f32 %v4577, %v4659
        %v4692 = vadd.f32 %v4582, %v4660
        %v4693 = vadd.f32 %v4587, %v4661
        %v4694 = vadd.f32 %v4592, %v4662
        %v4695 = vadd.f32 %v4597, %v4663
        %v4696 = vadd.f32 %v4602, %v4664
        %v4697 = vadd.f32 %v4607, %v4665
        %v4698 = vadd.f32 %v4612, %v4666
        %v4699 = vadd.f32 %v4617, %v4667
        %v4700 = vadd.f32 %v4622, %v4668
        %v4701 = vadd.f32 %v4627, %v4669
        %v4702 = vadd.f32 %v4632, %v4670
        %v4703 = vadd.f32 %v4637, %v4671
        %v4704 = vmax.f32 %v4672, 0.0
        %v4705 = vmax.f32 %v4673, 0.0
        %v4706 = vmax.f32 %v4674, 0.0
        %v4707 = vmax.f32 %v4675, 0.0
        %v4708 = vmax.f32 %v4676, 0.0
        %v4709 = vmax.f32 %v4677, 0.0
        %v4710 = vmax.f32 %v4678, 0.0
        %v4711 = vmax.f32 %v4679, 0.0
        %v4712 = vmax.f32 %v4680, 0.0
        %v4713 = vmax.f32 %v4681, 0.0
        %v4714 = vmax.f32 %v4682, 0.0
        %v4715 = vmax.f32 %v4683, 0.0
        %v4716 = vmax.f32 %v4684, 0.0
        %v4717 = vmax.f32 %v4685, 0.0
        %v4718 = vmax.f32 %v4686, 0.0
        %v4719 = vmax.f32 %v4687, 0.0
        %v4720 = vmax.f32 %v4688, 0.0
        %v4721 = vmax.f32 %v4689, 0.0
        %v4722 = vmax.f32 %v4690, 0.0
        %v4723 = vmax.f32 %v4691, 0.0
        %v4724 = vmax.f32 %v4692, 0.0
        %v4725 = vmax.f32 %v4693, 0.0
        %v4726 = vmax.f32 %v4694, 0.0
        %v4727 = vmax.f32 %v4695, 0.0
        %v4728 = vmax.f32 %v4696, 0.0
        %v4729 = vmax.f32 %v4697, 0.0
        %v4730 = vmax.f32 %v4698, 0.0
        %v4731 = vmax.f32 %v4699, 0.0
        %v4732 = vmax.f32 %v4700, 0.0
        %v4733 = vmax.f32 %v4701, 0.0
        %v4734 = vmax.f32 %v4702, 0.0
        %v4735 = vmax.f32 %v4703, 0.0
        %4736 = vst [vmem:[%s232] sm:$0xff] %v4704
        %4737 = vst [vmem:[%s232 + $0x8] sm:$0xff] %v4705
        %4738 = vst [vmem:[%s232 + $0x10] sm:$0xff] %v4706
        %4739 = vst [vmem:[%s232 + $0x18] sm:$0xff] %v4707
        %4740 = vst [vmem:[%s232 + $0x20] sm:$0xff] %v4708
        %4741 = vst [vmem:[%s232 + $0x28] sm:$0xff] %v4709
        %4742 = vst [vmem:[%s232 + $0x30] sm:$0xff] %v4710
        %4743 = vst [vmem:[%s232 + $0x38] sm:$0xff] %v4711
        %4744 = vst [vmem:[%s232 + $0x40] sm:$0xff] %v4712
        %4745 = vst [vmem:[%s232 + $0x48] sm:$0xff] %v4713
        %4746 = vst [vmem:[%s232 + $0x50] sm:$0xff] %v4714
        %4747 = vst [vmem:[%s232 + $0x58] sm:$0xff] %v4715
        %4748 = vst [vmem:[%s232 + $0x60] sm:$0xff] %v4716
        %4749 = vst [vmem:[%s232 + $0x68] sm:$0xff] %v4717
        %4750 = vst [vmem:[%s232 + $0x70] sm:$0xff] %v4718
        %4751 = vst [vmem:[%s232 + $0x78] sm:$0xff] %v4719
        %4752 = vst [vmem:[%s232 + $0x80] sm:$0xff] %v4720
        %4753 = vst [vmem:[%s232 + $0x88] sm:$0xff] %v4721
        %4754 = vst [vmem:[%s232 + $0x90] sm:$0xff] %v4722
        %4755 = vst [vmem:[%s232 + $0x98] sm:$0xff] %v4723
        %4756 = vst [vmem:[%s232 + $0xa0] sm:$0xff] %v4724
        %4757 = vst [vmem:[%s232 + $0xa8] sm:$0xff] %v4725
        %4758 = vst [vmem:[%s232 + $0xb0] sm:$0xff] %v4726
        %4759 = vst [vmem:[%s232 + $0xb8] sm:$0xff] %v4727
        %4760 = vst [vmem:[%s232 + $0xc0] sm:$0xff] %v4728
        %4761 = vst [vmem:[%s232 + $0xc8] sm:$0xff] %v4729
        %4762 = vst [vmem:[%s232 + $0xd0] sm:$0xff] %v4730
        %4763 = vst [vmem:[%s232 + $0xd8] sm:$0xff] %v4731
        %4764 = vst [vmem:[%s232 + $0xe0] sm:$0xff] %v4732
        %4765 = vst [vmem:[%s232 + $0xe8] sm:$0xff] %v4733
        %4766 = vst [vmem:[%s232 + $0xf0] sm:$0xff] %v4734
        %4767 = vst [vmem:[%s232 + $0xf8] sm:$0xff] %v4735
        %s4768 = sand.u32 %s138, 1
        %s4769 = scalar_lea.sflag [#allocation6], %s4768
        %s4770 = sand.u32 %s138, 1
        %s4771 = smul.addr %s4770, 256
        %s4772 = scalar_lea.vmem [#allocation7], %s4771
        // Predicated region
        $region45: #{tpu_custom_call.1} parent=39 // pred_check
          %p4773 = pneg %p148
        $region46: #{tpu_custom_call.1} parent=39 // pred_check_branch
          %4775 = sbr.rel (%p4773) target = $region48
        $region47: #{tpu_custom_call.1} parent=39 // pred_region
          %s4777 = ssub.s32 4096, 4096
          %4778 = vsyncadd %s4769, %s4777
          %s4779 = smul.addr %s20, 32
          %s4780 = smul.addr %s4779, 128
          %s4781 = scalar_lea.hbm %s5, %s4780
          %s4782 = sshll.u32 %s4772, 4
          %s4783 = int_to_ptr.vmem [resolvable:$true] %s4782
          %4788 = dma.vmem_to_hbm [thread:$0]  %s4783, 4096, %s4781, %s4769, 128, 128, 8
        $region48: #{tpu_custom_call.1} parent=39 // pred_fallthru
          _
      $region40: #{tpu_custom_call.1} parent=5 // pred_fallthru
        _
      %p4789 = scmp.le.s32.totalorder 2, %s15
      // Predicated region
      $region49: #{tpu_custom_call.1} parent=5 // pred_check
        %p4790 = pneg %p4789
      $region50: #{tpu_custom_call.1} parent=5 // pred_check_branch
        %4792 = sbr.rel (%p4790) target = $region52
      $region51: #{tpu_custom_call.1} parent=5 // pred_region
        %s4793 = ssub.s32 %s15, 2
        // Predicated region
        $region53: #{tpu_custom_call.1} parent=51 // pred_check
          %p4794 = pneg %p154
        $region54: #{tpu_custom_call.1} parent=51 // pred_check_branch
          %4796 = sbr.rel (%p4794) target = $region56
        $region55: #{tpu_custom_call.1} parent=51 // pred_region
          %s4797 = sand.u32 %s139, 1
          %s4798 = scalar_lea.sflag [#allocation6], %s4797
          %s4799 = sand.u32 %s139, 1
          %s4800 = smul.addr %s4799, 256
          %s4801 = scalar_lea.vmem [#allocation7], %s4800
          %4802 = dma.done %s4798, 4096
        $region56: #{tpu_custom_call.1} parent=51 // pred_fallthru
          _
      $region52: #{tpu_custom_call.1} parent=5 // pred_fallthru
        _
    $region6: #{tpu_custom_call.1} parent=1 // loop_footer
      %s19 = sadd.s32 1, %s15
    $region7: #{tpu_custom_call.1} parent=1 // loop_footer_branch
      %14 = sbr.rel target = $region3
    $region8: #{tpu_custom_call.1} parent=1 // loop_exit
      _
    %4803 = vsyncpa [#allocation5], 1
    %s4804 = scalar_lea.sflag [#allocation5], 1
    %4805 = vsyncpa %s4804, 1
    %4806 = vsyncpa [#allocation6], 1
    %s4807 = scalar_lea.sflag [#allocation6], 1
    %4808 = vsyncpa %s4807, 1

</llo_original>
